<compile_context>
chip_gen: v5e
topology: v5e:2x2
jax: 0.10.0
libtpu: 0.0.40
codegen_flags: <defaults>
</compile_context>

<pallas_src>
import jax
import jax.numpy as jnp
from jax.experimental import pallas as pl
from jax.experimental.pallas import tpu as pltpu

# ---------------- config (mirrors the fields SlidingRNN_v2 reads) ----------------
B, T = 2, 8
C = 16            # config.motion.dim
H = 32            # config.motion_rnn.rnn_state_size
STW = 2           # config.motion_rnn.short_term_window_size  (> 1 path)
L = 2             # config.motion_rnn.mlp_layers
SEQ = 1 + STW + 1 # encode_history=True -> history window contributes 1 token
LN_EPS = 1e-5


# ---------------------------------- kernel ----------------------------------
def sliding_rnn_kernel(x_ref, gru_ref, enc_ref, tmp_ref, outp_ref, out_ref):
  f32 = jnp.float32
  H2, H3 = 2 * H, 3 * H
  SB = SEQ * B

  # ---- hoist all parameter loads / static slab slices (done exactly once) ----
  g = gru_ref[...]
  wgx = g[0:C]                      # (C, 3H)  x-part, gate cols [n | r | z]
  wgh = g[C:C + H]                  # (H, 3H)  h-part, gate cols [n | r | z]
  bgx = g[C + H:C + H + 1]          # (1, 3H)  [bin | bir+bhr | biz+bhz]
  bgh = g[C + H + 1:C + H + 2]      # (1, 3H)  [bhn | 0 | 0]

  e = enc_ref[...]
  wenc = e[0:C]                     # (C, H)   fc_encoder (transposed)
  benc = e[C:C + 1]                 # (1, H)
  alpha = [e[C + 1 + l:C + 2 + l] for l in range(L)]            # spatial LN scale
  beta = [e[C + 1 + L + l:C + 2 + L + l] for l in range(L)]     # spatial LN shift

  tmp = tmp_ref[...]
  wt = [tmp[l * SB:(l + 1) * SB, 0:SB] for l in range(L)]       # token-major temporal FC
  bt = [tmp[l * SB:(l + 1) * SB, SB:SB + 1] for l in range(L)]  # (SB, 1)
  wm = tmp[L * SB:L * SB + B, 0:SB]                             # token-major merge (B, SB)

  o = outp_ref[...]
  wout = o[0:H]                     # (H, C)   motion_fc_out (transposed)
  bfin = o[H:H + 1]                 # (1, C)   sum(wmerge)*bout + bmerge

  xsm = x_ref[...]                  # (T*B, C), row = t*B + b  (frame-major)

  # ---- all input-frame GRU projections in ONE batched matmul (off the chain) ----
  xp_all = jnp.dot(xsm, wgx, preferred_element_type=f32) + bgx          # (T*B, 3H)

  def gru_step(xp, h):
    """One GRU cell step given the precomputed x-projection xp (B, 3H)."""
    hp = jnp.dot(h, wgh, preferred_element_type=f32) + bgh              # (B, 3H)
    rz = jax.nn.sigmoid(xp[:, H:H3] + hp[:, H:H3])                      # [r | z]
    r = rz[:, 0:H]
    z = rz[:, H:H2]
    n = jnp.tanh(xp[:, 0:H] + r * hp[:, 0:H])
    return (1.0 - z) * n + z * h

  # ---- encoder over frames 0..T-2, h0 = 0 (register-carried, unrolled) ----
  h = jnp.zeros((B, H), f32)
  for t in range(T - 1):
    h = gru_step(xp_all[t * B:(t + 1) * B], h)

  # ---- window_history: one GRU step on the last input frame; state NOT advanced ----
  xp_last = xp_all[(T - 1) * B:T * B]
  wh = gru_step(xp_last, h)                                             # (B, H)

  # ---- encode the seeded short-term window once (single matmul) ----
  seed = xsm[(T - STW) * B:T * B]                                       # (STW*B, C) old -> new
  enc_seed = jnp.dot(seed, wenc, preferred_element_type=f32) + benc     # (STW*B, H)
  enc_win = [enc_seed[s * B:(s + 1) * B] for s in range(STW)]           # STW x (B, H)

  # ---- autoregressive decode over T output frames (register-carried, unrolled) ----
  xp_cur = xp_last          # decode step 0 feeds the last input frame back in
  outs = []
  for step in range(T):
    h = gru_step(xp_cur, h)
    dec = h                                                             # decoder_out

    # token-major mlp_input: rows s*B + b, s = [history, window(old->new), decoder]
    u = jnp.concatenate([wh] + enc_win + [dec], axis=0)                 # (SB, H)

    # siMLPe_mini TransMLP: token-major temporal FC + spatial LN + residual.
    for l in range(L):
      xx = jnp.dot(wt[l], u, preferred_element_type=f32) + bt[l]
      mu = jnp.mean(xx, axis=-1, keepdims=True)
      var = jnp.mean((xx - mu) ** 2, axis=-1, keepdims=True)
      y = (xx - mu) * jax.lax.rsqrt(var + LN_EPS)
      u = u + y * alpha[l] + beta[l]

    # Fused temporal merge + output projection:
    #   (wmerge_tok @ u) @ wout + (sum(wmerge)*bout + bmerge)
    merged = jnp.dot(wm, u, preferred_element_type=f32)                 # (B, H)
    nf = jnp.dot(merged, wout, preferred_element_type=f32) + bfin       # (B, C)
    outs.append(nf)

    if step + 1 < T:
      # roll the ENCODED window and project the new frame for the next GRU step
      enc_nf = jnp.dot(nf, wenc, preferred_element_type=f32) + benc     # (B, H)
      enc_win = enc_win[1:] + [enc_nf]
      xp_cur = jnp.dot(nf, wgx, preferred_element_type=f32) + bgx       # (B, 3H)

  # single lane-dense store of all T output frames
  out_ref[...] = jnp.concatenate(outs, axis=-1)                         # (B, T*C)


# ------------------------- parameter packing (wrapper-side) -------------------------
def pack_params(p):
  """Fuse / permute the raw module parameters into the 4 kernel slabs."""
  f32 = jnp.float32

  # GRU split x-part / h-part with gate column layout [n | r | z].
  wgx = jnp.concatenate([p['win'], p['wir'], p['wiz']], axis=1)               # (C, 3H)
  wgh = jnp.concatenate([p['whn'], p['whr'], p['whz']], axis=1)               # (H, 3H)
  bgx = jnp.concatenate([p['bin'], p['bir'] + p['bhr'], p['biz'] + p['bhz']],
                        axis=1)                                               # (1, 3H)
  bgh = jnp.concatenate([p['bhn'], jnp.zeros((1, 2 * H), f32)], axis=1)       # (1, 3H)
  gru_slab = jnp.concatenate([wgx, wgh, bgx, bgh], axis=0)                    # (C+H+2, 3H)

  # fc_encoder + spatial LN affine params.
  enc_slab = jnp.concatenate(
      [p['wenc'], p['benc'], p['alpha'].reshape(L, H), p['beta'].reshape(L, H)],
      axis=0)                                                                 # (C+1+2L, H)

  # Token-major block-diagonal temporal weights: row/col index = s*B + b.
  SB = SEQ * B
  eye_b = jnp.eye(B, dtype=f32)
  rows = []
  for l in range(L):
    wt_tok = jnp.kron(p['wt'][l], eye_b)                                      # (SB, SB)
    bt_tok = jnp.repeat(p['bt'][l], B, axis=0)                                # (SB, 1)
    rows.append(jnp.concatenate([wt_tok, bt_tok], axis=1))                    # (SB, SB+1)
  wm_tok = jnp.kron(p['wmerge'], eye_b)                                       # (B, SB)
  rows.append(jnp.concatenate([wm_tok, jnp.zeros((B, 1), f32)], axis=1))      # (B, SB+1)
  tmp_slab = jnp.concatenate(rows, axis=0)                                    # (L*SB+B, SB+1)

  # Output projection with the merge bias algebraically folded in.
  bfin = p['wmerge'].sum() * p['bout'] + p['bmerge'][0, 0]                    # (1, C)
  out_slab = jnp.concatenate([p['wout'], bfin], axis=0)                       # (H+1, C)

  return gru_slab, enc_slab, tmp_slab, out_slab


# ---------------------------------- wrapper ----------------------------------
def sliding_rnn_pallas(x, p):
  Bx, Tx, Cx = x.shape
  gru_slab, enc_slab, tmp_slab, out_slab = pack_params(p)
  # frame-major input slab (row = t*B + b): lets the kernel batch-project all
  # frames in one matmul and slice seed frames with contiguous sublane slices.
  x_sm = jnp.transpose(x, (1, 0, 2)).reshape(Tx * Bx, Cx).astype(jnp.float32)

  inputs = [x_sm, gru_slab, enc_slab, tmp_slab, out_slab]

  def fullspec(a):
    nd = a.ndim
    return pl.BlockSpec(a.shape, lambda i, nd=nd: (0,) * nd)

  grid_spec = pltpu.PrefetchScalarGridSpec(
      num_scalar_prefetch=0,
      grid=(1,),                       # single invocation: nothing to pipeline
      in_specs=[fullspec(a) for a in inputs],
      out_specs=pl.BlockSpec((Bx, Tx * Cx), lambda i: (0, 0)))

  out = pl.pallas_call(
      sliding_rnn_kernel,
      out_shape=jax.ShapeDtypeStruct((Bx, Tx * Cx), jnp.float32),
      grid_spec=grid_spec,
      compiler_params=pltpu.CompilerParams(dimension_semantics=("arbitrary",)),
  )(*inputs)
  return out.reshape(Bx, Tx, Cx)


# ------------------------- deterministic parameter init -------------------------
def make_params(key):
  ks = jax.random.split(key, 16)

  def rnd(k, shape, scale):
    return (scale * jax.random.normal(k, shape)).astype(jnp.float32)

  s = 1.0 / (H ** 0.5)
  p = {}
  # GRU weights, stored pre-transposed: W_*^T so the kernel does x @ W.
  p['wir'] = rnd(ks[0], (C, H), s); p['wiz'] = rnd(ks[1], (C, H), s); p['win'] = rnd(ks[2], (C, H), s)
  p['whr'] = rnd(ks[3], (H, H), s); p['whz'] = rnd(ks[4], (H, H), s); p['whn'] = rnd(ks[5], (H, H), s)
  p['bir'] = rnd(ks[6], (1, H), s); p['biz'] = rnd(ks[7], (1, H), s); p['bin'] = rnd(ks[8], (1, H), s)
  p['bhr'] = rnd(ks[9], (1, H), s); p['bhz'] = rnd(ks[10], (1, H), s); p['bhn'] = rnd(ks[11], (1, H), s)
  # NOTE: the torch module initializes these fc layers with xavier(gain=1e-8) (~0);
  # we use small deterministic random values so the data path is meaningfully exercised.
  p['wenc'] = rnd(ks[12], (C, H), 0.3)            # fc_encoder (transposed)
  p['benc'] = jnp.zeros((1, H), jnp.float32)
  p['wt'] = rnd(ks[13], (L, SEQ, SEQ), 0.3)       # TransMLP temporal FC per layer
  p['bt'] = jnp.zeros((L, SEQ, 1), jnp.float32)
  p['alpha'] = jnp.ones((L, 1, H), jnp.float32)   # spatial LN scale
  p['beta'] = jnp.zeros((L, 1, H), jnp.float32)   # spatial LN shift
  p['wout'] = rnd(ks[14], (H, C), 0.3)            # motion_fc_out (transposed)
  p['bout'] = jnp.zeros((1, C), jnp.float32)
  p['wmerge'] = rnd(ks[15], (1, SEQ), 0.3)        # temporal_merge_fc
  p['bmerge'] = jnp.zeros((1, 1), jnp.float32)
  return p


# ---------------------------- pure-JAX reference ----------------------------
def ref_forward(x, p):
  Bx, Tx, Cx = x.shape

  def gru(xt, h):
    r = jax.nn.sigmoid(xt @ p['wir'] + p['bir'] + h @ p['whr'] + p['bhr'])
    z = jax.nn.sigmoid(xt @ p['wiz'] + p['biz'] + h @ p['whz'] + p['bhz'])
    n = jnp.tanh(xt @ p['win'] + p['bin'] + r * (h @ p['whn'] + p['bhn']))
    return (1.0 - z) * n + z * h

  def mlp_mini(minp):                        # (B, SEQ, H)
    u = minp
    for layer in range(L):
      xx = jnp.einsum('st,bth->bsh', p['wt'][layer], u) + p['bt'][layer][None, :, :]
      m = xx.mean(-1, keepdims=True)
      v = ((xx - m) ** 2).mean(-1, keepdims=True)
      y = (xx - m) / jnp.sqrt(v + LN_EPS) * p['alpha'][layer][None] + p['beta'][layer][None]
      u = u + y
    feats = u @ p['wout'] + p['bout']        # (B, SEQ, C)
    return jnp.einsum('s,bsc->bc', p['wmerge'][0], feats) + p['bmerge'][0, 0]

  h = jnp.zeros((Bx, H), jnp.float32)
  for t in range(Tx - 1):
    h = gru(x[:, t, :], h)
  wh = gru(x[:, Tx - 1, :], h)               # window_history (state not advanced)

  stbuf = x[:, Tx - STW:, :]
  outs = []
  for _t in range(Tx):
    last_in = stbuf[:, -1, :]
    h = gru(last_in, h)
    enc = stbuf @ p['wenc'] + p['benc']
    minp = jnp.concatenate([wh[:, None, :], enc, h[:, None, :]], axis=1)
    nf = mlp_mini(minp)
    outs.append(nf)
    stbuf = jnp.concatenate([stbuf[:, 1:, :], nf[:, None, :]], axis=1)
  return jnp.stack(outs, axis=1)


# ------------------------------------ main ------------------------------------
if __name__ == "__main__":
  key = jax.random.PRNGKey(0)
  kx, kp = jax.random.split(key)
  x = jax.random.normal(kx, (B, T, C), dtype=jnp.float32)
  params = make_params(kp)

  out = sliding_rnn_pallas(x, params)
  out = jax.block_until_ready(out)
  assert out.shape == (B, T, C)

  with jax.default_matmul_precision("highest"):
    ref = ref_forward(x, params)
  ref = jax.block_until_ready(ref)
  err = float(jnp.max(jnp.abs(out - ref)))
  # In-kernel matmuls run at DEFAULT precision (bf16 operands on the MXU, f32
  # accumulate) per the perf review; that truncation can compound over the ~24
  # recurrent steps, so the check allows 2e-2 absolute (output magnitudes are
  # O(1); any structural bug produces errors >= 1e-1).
  assert err < 2e-2, f"mismatch vs reference: max abs err {err}"
  print("KERNEL_OK")
</pallas_src>

<mosaic_0001>
module attributes {stable_mosaic.version = 11 : i64} {
  func.func @sliding_rnn_kernel(%arg0: i32, %arg1: memref<16x16xf32, #tpu.memory_space<vmem>>, %arg2: memref<50x96xf32, #tpu.memory_space<vmem>>, %arg3: memref<21x32xf32, #tpu.memory_space<vmem>>, %arg4: memref<18x9xf32, #tpu.memory_space<vmem>>, %arg5: memref<33x16xf32, #tpu.memory_space<vmem>>, %arg6: memref<2x128xf32, #tpu.memory_space<vmem>>) attributes {dimension_semantics = [#tpu.dimension_semantics<arbitrary>], iteration_bounds = array<i64: 1>, scalar_prefetch = 0 : i64, scratch_operands = 0 : i64, tpu.core_type = #tpu.core_type<tc>, window_params = [{pipeline_mode = #tpu.pipeline_mode<synchronous>, transform_indices = @transform_0, window_bounds = array<i64: 16, 16>}, {pipeline_mode = #tpu.pipeline_mode<synchronous>, transform_indices = @transform_1, window_bounds = array<i64: 50, 96>}, {pipeline_mode = #tpu.pipeline_mode<synchronous>, transform_indices = @transform_2, window_bounds = array<i64: 21, 32>}, {pipeline_mode = #tpu.pipeline_mode<synchronous>, transform_indices = @transform_3, window_bounds = array<i64: 18, 9>}, {pipeline_mode = #tpu.pipeline_mode<synchronous>, transform_indices = @transform_4, window_bounds = array<i64: 33, 16>}, {pipeline_mode = #tpu.pipeline_mode<synchronous>, transform_indices = @transform_5, window_bounds = array<i64: 2, 128>}]} {
    %c0 = arith.constant 0 : index
    %c0_0 = arith.constant 0 : index
    %0 = vector.load %arg2[%c0, %c0_0] : memref<50x96xf32, #tpu.memory_space<vmem>>, vector<50x96xf32>
    %1 = vector.extract_strided_slice %0 {offsets = [0, 0], sizes = [16, 96], strides = [1, 1]} : vector<50x96xf32> to vector<16x96xf32>
    %2 = vector.extract_strided_slice %0 {offsets = [16, 0], sizes = [32, 96], strides = [1, 1]} : vector<50x96xf32> to vector<32x96xf32>
    %3 = vector.extract_strided_slice %0 {offsets = [48, 0], sizes = [1, 96], strides = [1, 1]} : vector<50x96xf32> to vector<1x96xf32>
    %4 = vector.extract_strided_slice %0 {offsets = [49, 0], sizes = [1, 96], strides = [1, 1]} : vector<50x96xf32> to vector<1x96xf32>
    %c0_1 = arith.constant 0 : index
    %c0_2 = arith.constant 0 : index
    %5 = vector.load %arg3[%c0_1, %c0_2] : memref<21x32xf32, #tpu.memory_space<vmem>>, vector<21x32xf32>
    %6 = vector.extract_strided_slice %5 {offsets = [0, 0], sizes = [16, 32], strides = [1, 1]} : vector<21x32xf32> to vector<16x32xf32>
    %7 = vector.extract_strided_slice %5 {offsets = [16, 0], sizes = [1, 32], strides = [1, 1]} : vector<21x32xf32> to vector<1x32xf32>
    %8 = vector.extract_strided_slice %5 {offsets = [17, 0], sizes = [1, 32], strides = [1, 1]} : vector<21x32xf32> to vector<1x32xf32>
    %9 = vector.extract_strided_slice %5 {offsets = [18, 0], sizes = [1, 32], strides = [1, 1]} : vector<21x32xf32> to vector<1x32xf32>
    %10 = vector.extract_strided_slice %5 {offsets = [19, 0], sizes = [1, 32], strides = [1, 1]} : vector<21x32xf32> to vector<1x32xf32>
    %11 = vector.extract_strided_slice %5 {offsets = [20, 0], sizes = [1, 32], strides = [1, 1]} : vector<21x32xf32> to vector<1x32xf32>
    %c0_3 = arith.constant 0 : index
    %c0_4 = arith.constant 0 : index
    %12 = vector.load %arg4[%c0_3, %c0_4] : memref<18x9xf32, #tpu.memory_space<vmem>>, vector<18x9xf32>
    %13 = vector.extract_strided_slice %12 {offsets = [0, 0], sizes = [8, 8], strides = [1, 1]} : vector<18x9xf32> to vector<8x8xf32>
    %14 = vector.extract_strided_slice %12 {offsets = [8, 0], sizes = [8, 8], strides = [1, 1]} : vector<18x9xf32> to vector<8x8xf32>
    %15 = vector.extract_strided_slice %12 {offsets = [0, 8], sizes = [8, 1], strides = [1, 1]} : vector<18x9xf32> to vector<8x1xf32>
    %16 = vector.extract_strided_slice %12 {offsets = [8, 8], sizes = [8, 1], strides = [1, 1]} : vector<18x9xf32> to vector<8x1xf32>
    %17 = vector.extract_strided_slice %12 {offsets = [16, 0], sizes = [2, 8], strides = [1, 1]} : vector<18x9xf32> to vector<2x8xf32>
    %c0_5 = arith.constant 0 : index
    %c0_6 = arith.constant 0 : index
    %18 = vector.load %arg5[%c0_5, %c0_6] : memref<33x16xf32, #tpu.memory_space<vmem>>, vector<33x16xf32>
    %19 = vector.extract_strided_slice %18 {offsets = [0, 0], sizes = [32, 16], strides = [1, 1]} : vector<33x16xf32> to vector<32x16xf32>
    %20 = vector.extract_strided_slice %18 {offsets = [32, 0], sizes = [1, 16], strides = [1, 1]} : vector<33x16xf32> to vector<1x16xf32>
    %c0_7 = arith.constant 0 : index
    %c0_8 = arith.constant 0 : index
    %21 = vector.load %arg1[%c0_7, %c0_8] : memref<16x16xf32, #tpu.memory_space<vmem>>, vector<16x16xf32>
    %cst = arith.constant dense<0.000000e+00> : vector<16x96xf32>
    %22 = tpu.matmul %21, %1, %cst {dimension_numbers = #tpu.dot_dimension_numbers<[1], [0], [0], [1], [0, 0, 1, 1], [], []>} : vector<16x16xf32>, vector<16x96xf32>, vector<16x96xf32> -> vector<16x96xf32>
    %23 = vector.broadcast %3 : vector<1x96xf32> to vector<16x96xf32>
    %24 = arith.addf %22, %23 : vector<16x96xf32>
    %cst_9 = arith.constant 0.000000e+00 : f32
    %25 = vector.broadcast %cst_9 : f32 to vector<2x32xf32>
    %26 = vector.extract_strided_slice %24 {offsets = [0, 0], sizes = [2, 96], strides = [1, 1]} : vector<16x96xf32> to vector<2x96xf32>
    %cst_10 = arith.constant dense<0.000000e+00> : vector<2x96xf32>
    %27 = tpu.matmul %25, %2, %cst_10 {dimension_numbers = #tpu.dot_dimension_numbers<[1], [0], [0], [1], [0, 0, 1, 1], [], []>} : vector<2x32xf32>, vector<32x96xf32>, vector<2x96xf32> -> vector<2x96xf32>
    %28 = vector.broadcast %4 : vector<1x96xf32> to vector<2x96xf32>
    %29 = arith.addf %27, %28 : vector<2x96xf32>
    %30 = vector.extract_strided_slice %26 {offsets = [0, 32], sizes = [2, 64], strides = [1, 1]} : vector<2x96xf32> to vector<2x64xf32>
    %31 = vector.extract_strided_slice %29 {offsets = [0, 32], sizes = [2, 64], strides = [1, 1]} : vector<2x96xf32> to vector<2x64xf32>
    %32 = arith.addf %30, %31 : vector<2x64xf32>
    %33 = arith.negf %32 : vector<2x64xf32>
    %34 = math.exp %33 : vector<2x64xf32>
    %cst_11 = arith.constant 1.000000e+00 : f32
    %35 = vector.broadcast %cst_11 : f32 to vector<2x64xf32>
    %36 = arith.addf %35, %34 : vector<2x64xf32>
    %37 = arith.divf %35, %36 : vector<2x64xf32>
    %38 = vector.extract_strided_slice %37 {offsets = [0, 0], sizes = [2, 32], strides = [1, 1]} : vector<2x64xf32> to vector<2x32xf32>
    %39 = vector.extract_strided_slice %37 {offsets = [0, 32], sizes = [2, 32], strides = [1, 1]} : vector<2x64xf32> to vector<2x32xf32>
    %40 = vector.extract_strided_slice %26 {offsets = [0, 0], sizes = [2, 32], strides = [1, 1]} : vector<2x96xf32> to vector<2x32xf32>
    %41 = vector.extract_strided_slice %29 {offsets = [0, 0], sizes = [2, 32], strides = [1, 1]} : vector<2x96xf32> to vector<2x32xf32>
    %42 = arith.mulf %38, %41 : vector<2x32xf32>
    %43 = arith.addf %40, %42 : vector<2x32xf32>
    %44 = math.tanh %43 : vector<2x32xf32>
    %cst_12 = arith.constant 1.000000e+00 : f32
    %45 = vector.broadcast %cst_12 : f32 to vector<2x32xf32>
    %46 = arith.subf %45, %39 : vector<2x32xf32>
    %47 = arith.mulf %46, %44 : vector<2x32xf32>
    %48 = arith.mulf %39, %25 : vector<2x32xf32>
    %49 = arith.addf %47, %48 : vector<2x32xf32>
    %50 = vector.extract_strided_slice %24 {offsets = [2, 0], sizes = [2, 96], strides = [1, 1]} : vector<16x96xf32> to vector<2x96xf32>
    %cst_13 = arith.constant dense<0.000000e+00> : vector<2x96xf32>
    %51 = tpu.matmul %49, %2, %cst_13 {dimension_numbers = #tpu.dot_dimension_numbers<[1], [0], [0], [1], [0, 0, 1, 1], [], []>} : vector<2x32xf32>, vector<32x96xf32>, vector<2x96xf32> -> vector<2x96xf32>
    %52 = vector.broadcast %4 : vector<1x96xf32> to vector<2x96xf32>
    %53 = arith.addf %51, %52 : vector<2x96xf32>
    %54 = vector.extract_strided_slice %50 {offsets = [0, 32], sizes = [2, 64], strides = [1, 1]} : vector<2x96xf32> to vector<2x64xf32>
    %55 = vector.extract_strided_slice %53 {offsets = [0, 32], sizes = [2, 64], strides = [1, 1]} : vector<2x96xf32> to vector<2x64xf32>
    %56 = arith.addf %54, %55 : vector<2x64xf32>
    %57 = arith.negf %56 : vector<2x64xf32>
    %58 = math.exp %57 : vector<2x64xf32>
    %cst_14 = arith.constant 1.000000e+00 : f32
    %59 = vector.broadcast %cst_14 : f32 to vector<2x64xf32>
    %60 = arith.addf %59, %58 : vector<2x64xf32>
    %61 = arith.divf %59, %60 : vector<2x64xf32>
    %62 = vector.extract_strided_slice %61 {offsets = [0, 0], sizes = [2, 32], strides = [1, 1]} : vector<2x64xf32> to vector<2x32xf32>
    %63 = vector.extract_strided_slice %61 {offsets = [0, 32], sizes = [2, 32], strides = [1, 1]} : vector<2x64xf32> to vector<2x32xf32>
    %64 = vector.extract_strided_slice %50 {offsets = [0, 0], sizes = [2, 32], strides = [1, 1]} : vector<2x96xf32> to vector<2x32xf32>
    %65 = vector.extract_strided_slice %53 {offsets = [0, 0], sizes = [2, 32], strides = [1, 1]} : vector<2x96xf32> to vector<2x32xf32>
    %66 = arith.mulf %62, %65 : vector<2x32xf32>
    %67 = arith.addf %64, %66 : vector<2x32xf32>
    %68 = math.tanh %67 : vector<2x32xf32>
    %cst_15 = arith.constant 1.000000e+00 : f32
    %69 = vector.broadcast %cst_15 : f32 to vector<2x32xf32>
    %70 = arith.subf %69, %63 : vector<2x32xf32>
    %71 = arith.mulf %70, %68 : vector<2x32xf32>
    %72 = arith.mulf %63, %49 : vector<2x32xf32>
    %73 = arith.addf %71, %72 : vector<2x32xf32>
    %74 = vector.extract_strided_slice %24 {offsets = [4, 0], sizes = [2, 96], strides = [1, 1]} : vector<16x96xf32> to vector<2x96xf32>
    %cst_16 = arith.constant dense<0.000000e+00> : vector<2x96xf32>
    %75 = tpu.matmul %73, %2, %cst_16 {dimension_numbers = #tpu.dot_dimension_numbers<[1], [0], [0], [1], [0, 0, 1, 1], [], []>} : vector<2x32xf32>, vector<32x96xf32>, vector<2x96xf32> -> vector<2x96xf32>
    %76 = vector.broadcast %4 : vector<1x96xf32> to vector<2x96xf32>
    %77 = arith.addf %75, %76 : vector<2x96xf32>
    %78 = vector.extract_strided_slice %74 {offsets = [0, 32], sizes = [2, 64], strides = [1, 1]} : vector<2x96xf32> to vector<2x64xf32>
    %79 = vector.extract_strided_slice %77 {offsets = [0, 32], sizes = [2, 64], strides = [1, 1]} : vector<2x96xf32> to vector<2x64xf32>
    %80 = arith.addf %78, %79 : vector<2x64xf32>
    %81 = arith.negf %80 : vector<2x64xf32>
    %82 = math.exp %81 : vector<2x64xf32>
    %cst_17 = arith.constant 1.000000e+00 : f32
    %83 = vector.broadcast %cst_17 : f32 to vector<2x64xf32>
    %84 = arith.addf %83, %82 : vector<2x64xf32>
    %85 = arith.divf %83, %84 : vector<2x64xf32>
    %86 = vector.extract_strided_slice %85 {offsets = [0, 0], sizes = [2, 32], strides = [1, 1]} : vector<2x64xf32> to vector<2x32xf32>
    %87 = vector.extract_strided_slice %85 {offsets = [0, 32], sizes = [2, 32], strides = [1, 1]} : vector<2x64xf32> to vector<2x32xf32>
    %88 = vector.extract_strided_slice %74 {offsets = [0, 0], sizes = [2, 32], strides = [1, 1]} : vector<2x96xf32> to vector<2x32xf32>
    %89 = vector.extract_strided_slice %77 {offsets = [0, 0], sizes = [2, 32], strides = [1, 1]} : vector<2x96xf32> to vector<2x32xf32>
    %90 = arith.mulf %86, %89 : vector<2x32xf32>
    %91 = arith.addf %88, %90 : vector<2x32xf32>
    %92 = math.tanh %91 : vector<2x32xf32>
    %cst_18 = arith.constant 1.000000e+00 : f32
    %93 = vector.broadcast %cst_18 : f32 to vector<2x32xf32>
    %94 = arith.subf %93, %87 : vector<2x32xf32>
    %95 = arith.mulf %94, %92 : vector<2x32xf32>
    %96 = arith.mulf %87, %73 : vector<2x32xf32>
    %97 = arith.addf %95, %96 : vector<2x32xf32>
    %98 = vector.extract_strided_slice %24 {offsets = [6, 0], sizes = [2, 96], strides = [1, 1]} : vector<16x96xf32> to vector<2x96xf32>
    %cst_19 = arith.constant dense<0.000000e+00> : vector<2x96xf32>
    %99 = tpu.matmul %97, %2, %cst_19 {dimension_numbers = #tpu.dot_dimension_numbers<[1], [0], [0], [1], [0, 0, 1, 1], [], []>} : vector<2x32xf32>, vector<32x96xf32>, vector<2x96xf32> -> vector<2x96xf32>
    %100 = vector.broadcast %4 : vector<1x96xf32> to vector<2x96xf32>
    %101 = arith.addf %99, %100 : vector<2x96xf32>
    %102 = vector.extract_strided_slice %98 {offsets = [0, 32], sizes = [2, 64], strides = [1, 1]} : vector<2x96xf32> to vector<2x64xf32>
    %103 = vector.extract_strided_slice %101 {offsets = [0, 32], sizes = [2, 64], strides = [1, 1]} : vector<2x96xf32> to vector<2x64xf32>
    %104 = arith.addf %102, %103 : vector<2x64xf32>
    %105 = arith.negf %104 : vector<2x64xf32>
    %106 = math.exp %105 : vector<2x64xf32>
    %cst_20 = arith.constant 1.000000e+00 : f32
    %107 = vector.broadcast %cst_20 : f32 to vector<2x64xf32>
    %108 = arith.addf %107, %106 : vector<2x64xf32>
    %109 = arith.divf %107, %108 : vector<2x64xf32>
    %110 = vector.extract_strided_slice %109 {offsets = [0, 0], sizes = [2, 32], strides = [1, 1]} : vector<2x64xf32> to vector<2x32xf32>
    %111 = vector.extract_strided_slice %109 {offsets = [0, 32], sizes = [2, 32], strides = [1, 1]} : vector<2x64xf32> to vector<2x32xf32>
    %112 = vector.extract_strided_slice %98 {offsets = [0, 0], sizes = [2, 32], strides = [1, 1]} : vector<2x96xf32> to vector<2x32xf32>
    %113 = vector.extract_strided_slice %101 {offsets = [0, 0], sizes = [2, 32], strides = [1, 1]} : vector<2x96xf32> to vector<2x32xf32>
    %114 = arith.mulf %110, %113 : vector<2x32xf32>
    %115 = arith.addf %112, %114 : vector<2x32xf32>
    %116 = math.tanh %115 : vector<2x32xf32>
    %cst_21 = arith.constant 1.000000e+00 : f32
    %117 = vector.broadcast %cst_21 : f32 to vector<2x32xf32>
    %118 = arith.subf %117, %111 : vector<2x32xf32>
    %119 = arith.mulf %118, %116 : vector<2x32xf32>
    %120 = arith.mulf %111, %97 : vector<2x32xf32>
    %121 = arith.addf %119, %120 : vector<2x32xf32>
    %122 = vector.extract_strided_slice %24 {offsets = [8, 0], sizes = [2, 96], strides = [1, 1]} : vector<16x96xf32> to vector<2x96xf32>
    %cst_22 = arith.constant dense<0.000000e+00> : vector<2x96xf32>
    %123 = tpu.matmul %121, %2, %cst_22 {dimension_numbers = #tpu.dot_dimension_numbers<[1], [0], [0], [1], [0, 0, 1, 1], [], []>} : vector<2x32xf32>, vector<32x96xf32>, vector<2x96xf32> -> vector<2x96xf32>
    %124 = vector.broadcast %4 : vector<1x96xf32> to vector<2x96xf32>
    %125 = arith.addf %123, %124 : vector<2x96xf32>
    %126 = vector.extract_strided_slice %122 {offsets = [0, 32], sizes = [2, 64], strides = [1, 1]} : vector<2x96xf32> to vector<2x64xf32>
    %127 = vector.extract_strided_slice %125 {offsets = [0, 32], sizes = [2, 64], strides = [1, 1]} : vector<2x96xf32> to vector<2x64xf32>
    %128 = arith.addf %126, %127 : vector<2x64xf32>
    %129 = arith.negf %128 : vector<2x64xf32>
    %130 = math.exp %129 : vector<2x64xf32>
    %cst_23 = arith.constant 1.000000e+00 : f32
    %131 = vector.broadcast %cst_23 : f32 to vector<2x64xf32>
    %132 = arith.addf %131, %130 : vector<2x64xf32>
    %133 = arith.divf %131, %132 : vector<2x64xf32>
    %134 = vector.extract_strided_slice %133 {offsets = [0, 0], sizes = [2, 32], strides = [1, 1]} : vector<2x64xf32> to vector<2x32xf32>
    %135 = vector.extract_strided_slice %133 {offsets = [0, 32], sizes = [2, 32], strides = [1, 1]} : vector<2x64xf32> to vector<2x32xf32>
    %136 = vector.extract_strided_slice %122 {offsets = [0, 0], sizes = [2, 32], strides = [1, 1]} : vector<2x96xf32> to vector<2x32xf32>
    %137 = vector.extract_strided_slice %125 {offsets = [0, 0], sizes = [2, 32], strides = [1, 1]} : vector<2x96xf32> to vector<2x32xf32>
    %138 = arith.mulf %134, %137 : vector<2x32xf32>
    %139 = arith.addf %136, %138 : vector<2x32xf32>
    %140 = math.tanh %139 : vector<2x32xf32>
    %cst_24 = arith.constant 1.000000e+00 : f32
    %141 = vector.broadcast %cst_24 : f32 to vector<2x32xf32>
    %142 = arith.subf %141, %135 : vector<2x32xf32>
    %143 = arith.mulf %142, %140 : vector<2x32xf32>
    %144 = arith.mulf %135, %121 : vector<2x32xf32>
    %145 = arith.addf %143, %144 : vector<2x32xf32>
    %146 = vector.extract_strided_slice %24 {offsets = [10, 0], sizes = [2, 96], strides = [1, 1]} : vector<16x96xf32> to vector<2x96xf32>
    %cst_25 = arith.constant dense<0.000000e+00> : vector<2x96xf32>
    %147 = tpu.matmul %145, %2, %cst_25 {dimension_numbers = #tpu.dot_dimension_numbers<[1], [0], [0], [1], [0, 0, 1, 1], [], []>} : vector<2x32xf32>, vector<32x96xf32>, vector<2x96xf32> -> vector<2x96xf32>
    %148 = vector.broadcast %4 : vector<1x96xf32> to vector<2x96xf32>
    %149 = arith.addf %147, %148 : vector<2x96xf32>
    %150 = vector.extract_strided_slice %146 {offsets = [0, 32], sizes = [2, 64], strides = [1, 1]} : vector<2x96xf32> to vector<2x64xf32>
    %151 = vector.extract_strided_slice %149 {offsets = [0, 32], sizes = [2, 64], strides = [1, 1]} : vector<2x96xf32> to vector<2x64xf32>
    %152 = arith.addf %150, %151 : vector<2x64xf32>
    %153 = arith.negf %152 : vector<2x64xf32>
    %154 = math.exp %153 : vector<2x64xf32>
    %cst_26 = arith.constant 1.000000e+00 : f32
    %155 = vector.broadcast %cst_26 : f32 to vector<2x64xf32>
    %156 = arith.addf %155, %154 : vector<2x64xf32>
    %157 = arith.divf %155, %156 : vector<2x64xf32>
    %158 = vector.extract_strided_slice %157 {offsets = [0, 0], sizes = [2, 32], strides = [1, 1]} : vector<2x64xf32> to vector<2x32xf32>
    %159 = vector.extract_strided_slice %157 {offsets = [0, 32], sizes = [2, 32], strides = [1, 1]} : vector<2x64xf32> to vector<2x32xf32>
    %160 = vector.extract_strided_slice %146 {offsets = [0, 0], sizes = [2, 32], strides = [1, 1]} : vector<2x96xf32> to vector<2x32xf32>
    %161 = vector.extract_strided_slice %149 {offsets = [0, 0], sizes = [2, 32], strides = [1, 1]} : vector<2x96xf32> to vector<2x32xf32>
    %162 = arith.mulf %158, %161 : vector<2x32xf32>
    %163 = arith.addf %160, %162 : vector<2x32xf32>
    %164 = math.tanh %163 : vector<2x32xf32>
    %cst_27 = arith.constant 1.000000e+00 : f32
    %165 = vector.broadcast %cst_27 : f32 to vector<2x32xf32>
    %166 = arith.subf %165, %159 : vector<2x32xf32>
    %167 = arith.mulf %166, %164 : vector<2x32xf32>
    %168 = arith.mulf %159, %145 : vector<2x32xf32>
    %169 = arith.addf %167, %168 : vector<2x32xf32>
    %170 = vector.extract_strided_slice %24 {offsets = [12, 0], sizes = [2, 96], strides = [1, 1]} : vector<16x96xf32> to vector<2x96xf32>
    %cst_28 = arith.constant dense<0.000000e+00> : vector<2x96xf32>
    %171 = tpu.matmul %169, %2, %cst_28 {dimension_numbers = #tpu.dot_dimension_numbers<[1], [0], [0], [1], [0, 0, 1, 1], [], []>} : vector<2x32xf32>, vector<32x96xf32>, vector<2x96xf32> -> vector<2x96xf32>
    %172 = vector.broadcast %4 : vector<1x96xf32> to vector<2x96xf32>
    %173 = arith.addf %171, %172 : vector<2x96xf32>
    %174 = vector.extract_strided_slice %170 {offsets = [0, 32], sizes = [2, 64], strides = [1, 1]} : vector<2x96xf32> to vector<2x64xf32>
    %175 = vector.extract_strided_slice %173 {offsets = [0, 32], sizes = [2, 64], strides = [1, 1]} : vector<2x96xf32> to vector<2x64xf32>
    %176 = arith.addf %174, %175 : vector<2x64xf32>
    %177 = arith.negf %176 : vector<2x64xf32>
    %178 = math.exp %177 : vector<2x64xf32>
    %cst_29 = arith.constant 1.000000e+00 : f32
    %179 = vector.broadcast %cst_29 : f32 to vector<2x64xf32>
    %180 = arith.addf %179, %178 : vector<2x64xf32>
    %181 = arith.divf %179, %180 : vector<2x64xf32>
    %182 = vector.extract_strided_slice %181 {offsets = [0, 0], sizes = [2, 32], strides = [1, 1]} : vector<2x64xf32> to vector<2x32xf32>
    %183 = vector.extract_strided_slice %181 {offsets = [0, 32], sizes = [2, 32], strides = [1, 1]} : vector<2x64xf32> to vector<2x32xf32>
    %184 = vector.extract_strided_slice %170 {offsets = [0, 0], sizes = [2, 32], strides = [1, 1]} : vector<2x96xf32> to vector<2x32xf32>
    %185 = vector.extract_strided_slice %173 {offsets = [0, 0], sizes = [2, 32], strides = [1, 1]} : vector<2x96xf32> to vector<2x32xf32>
    %186 = arith.mulf %182, %185 : vector<2x32xf32>
    %187 = arith.addf %184, %186 : vector<2x32xf32>
    %188 = math.tanh %187 : vector<2x32xf32>
    %cst_30 = arith.constant 1.000000e+00 : f32
    %189 = vector.broadcast %cst_30 : f32 to vector<2x32xf32>
    %190 = arith.subf %189, %183 : vector<2x32xf32>
    %191 = arith.mulf %190, %188 : vector<2x32xf32>
    %192 = arith.mulf %183, %169 : vector<2x32xf32>
    %193 = arith.addf %191, %192 : vector<2x32xf32>
    %194 = vector.extract_strided_slice %24 {offsets = [14, 0], sizes = [2, 96], strides = [1, 1]} : vector<16x96xf32> to vector<2x96xf32>
    %cst_31 = arith.constant dense<0.000000e+00> : vector<2x96xf32>
    %195 = tpu.matmul %193, %2, %cst_31 {dimension_numbers = #tpu.dot_dimension_numbers<[1], [0], [0], [1], [0, 0, 1, 1], [], []>} : vector<2x32xf32>, vector<32x96xf32>, vector<2x96xf32> -> vector<2x96xf32>
    %196 = vector.broadcast %4 : vector<1x96xf32> to vector<2x96xf32>
    %197 = arith.addf %195, %196 : vector<2x96xf32>
    %198 = vector.extract_strided_slice %194 {offsets = [0, 32], sizes = [2, 64], strides = [1, 1]} : vector<2x96xf32> to vector<2x64xf32>
    %199 = vector.extract_strided_slice %197 {offsets = [0, 32], sizes = [2, 64], strides = [1, 1]} : vector<2x96xf32> to vector<2x64xf32>
    %200 = arith.addf %198, %199 : vector<2x64xf32>
    %201 = arith.negf %200 : vector<2x64xf32>
    %202 = math.exp %201 : vector<2x64xf32>
    %cst_32 = arith.constant 1.000000e+00 : f32
    %203 = vector.broadcast %cst_32 : f32 to vector<2x64xf32>
    %204 = arith.addf %203, %202 : vector<2x64xf32>
    %205 = arith.divf %203, %204 : vector<2x64xf32>
    %206 = vector.extract_strided_slice %205 {offsets = [0, 0], sizes = [2, 32], strides = [1, 1]} : vector<2x64xf32> to vector<2x32xf32>
    %207 = vector.extract_strided_slice %205 {offsets = [0, 32], sizes = [2, 32], strides = [1, 1]} : vector<2x64xf32> to vector<2x32xf32>
    %208 = vector.extract_strided_slice %194 {offsets = [0, 0], sizes = [2, 32], strides = [1, 1]} : vector<2x96xf32> to vector<2x32xf32>
    %209 = vector.extract_strided_slice %197 {offsets = [0, 0], sizes = [2, 32], strides = [1, 1]} : vector<2x96xf32> to vector<2x32xf32>
    %210 = arith.mulf %206, %209 : vector<2x32xf32>
    %211 = arith.addf %208, %210 : vector<2x32xf32>
    %212 = math.tanh %211 : vector<2x32xf32>
    %cst_33 = arith.constant 1.000000e+00 : f32
    %213 = vector.broadcast %cst_33 : f32 to vector<2x32xf32>
    %214 = arith.subf %213, %207 : vector<2x32xf32>
    %215 = arith.mulf %214, %212 : vector<2x32xf32>
    %216 = arith.mulf %207, %193 : vector<2x32xf32>
    %217 = arith.addf %215, %216 : vector<2x32xf32>
    %218 = vector.extract_strided_slice %21 {offsets = [12, 0], sizes = [4, 16], strides = [1, 1]} : vector<16x16xf32> to vector<4x16xf32>
    %cst_34 = arith.constant dense<0.000000e+00> : vector<4x32xf32>
    %219 = tpu.matmul %218, %6, %cst_34 {dimension_numbers = #tpu.dot_dimension_numbers<[1], [0], [0], [1], [0, 0, 1, 1], [], []>} : vector<4x16xf32>, vector<16x32xf32>, vector<4x32xf32> -> vector<4x32xf32>
    %220 = vector.broadcast %7 : vector<1x32xf32> to vector<4x32xf32>
    %221 = arith.addf %219, %220 : vector<4x32xf32>
    %222 = vector.extract_strided_slice %221 {offsets = [0, 0], sizes = [2, 32], strides = [1, 1]} : vector<4x32xf32> to vector<2x32xf32>
    %223 = vector.extract_strided_slice %221 {offsets = [2, 0], sizes = [2, 32], strides = [1, 1]} : vector<4x32xf32> to vector<2x32xf32>
    %cst_35 = arith.constant dense<0.000000e+00> : vector<2x96xf32>
    %224 = tpu.matmul %193, %2, %cst_35 {dimension_numbers = #tpu.dot_dimension_numbers<[1], [0], [0], [1], [0, 0, 1, 1], [], []>} : vector<2x32xf32>, vector<32x96xf32>, vector<2x96xf32> -> vector<2x96xf32>
    %225 = vector.broadcast %4 : vector<1x96xf32> to vector<2x96xf32>
    %226 = arith.addf %224, %225 : vector<2x96xf32>
    %227 = vector.extract_strided_slice %194 {offsets = [0, 32], sizes = [2, 64], strides = [1, 1]} : vector<2x96xf32> to vector<2x64xf32>
    %228 = vector.extract_strided_slice %226 {offsets = [0, 32], sizes = [2, 64], strides = [1, 1]} : vector<2x96xf32> to vector<2x64xf32>
    %229 = arith.addf %227, %228 : vector<2x64xf32>
    %230 = arith.negf %229 : vector<2x64xf32>
    %231 = math.exp %230 : vector<2x64xf32>
    %cst_36 = arith.constant 1.000000e+00 : f32
    %232 = vector.broadcast %cst_36 : f32 to vector<2x64xf32>
    %233 = arith.addf %232, %231 : vector<2x64xf32>
    %234 = arith.divf %232, %233 : vector<2x64xf32>
    %235 = vector.extract_strided_slice %234 {offsets = [0, 0], sizes = [2, 32], strides = [1, 1]} : vector<2x64xf32> to vector<2x32xf32>
    %236 = vector.extract_strided_slice %234 {offsets = [0, 32], sizes = [2, 32], strides = [1, 1]} : vector<2x64xf32> to vector<2x32xf32>
    %237 = vector.extract_strided_slice %194 {offsets = [0, 0], sizes = [2, 32], strides = [1, 1]} : vector<2x96xf32> to vector<2x32xf32>
    %238 = vector.extract_strided_slice %226 {offsets = [0, 0], sizes = [2, 32], strides = [1, 1]} : vector<2x96xf32> to vector<2x32xf32>
    %239 = arith.mulf %235, %238 : vector<2x32xf32>
    %240 = arith.addf %237, %239 : vector<2x32xf32>
    %241 = math.tanh %240 : vector<2x32xf32>
    %cst_37 = arith.constant 1.000000e+00 : f32
    %242 = vector.broadcast %cst_37 : f32 to vector<2x32xf32>
    %243 = arith.subf %242, %236 : vector<2x32xf32>
    %244 = arith.mulf %243, %241 : vector<2x32xf32>
    %245 = arith.mulf %236, %193 : vector<2x32xf32>
    %246 = arith.addf %244, %245 : vector<2x32xf32>
    %247 = tpu.concatenate %217, %222, %223, %246 in 0 : vector<2x32xf32>, vector<2x32xf32>, vector<2x32xf32>, vector<2x32xf32> -> vector<8x32xf32>
    %cst_38 = arith.constant dense<0.000000e+00> : vector<8x32xf32>
    %248 = tpu.matmul %13, %247, %cst_38 {dimension_numbers = #tpu.dot_dimension_numbers<[1], [0], [0], [1], [0, 0, 1, 1], [], []>} : vector<8x8xf32>, vector<8x32xf32>, vector<8x32xf32> -> vector<8x32xf32>
    %249 = vector.broadcast %15 : vector<8x1xf32> to vector<8x32xf32>
    %250 = arith.addf %248, %249 : vector<8x32xf32>
    %cst_39 = arith.constant dense<0.000000e+00> : vector<8xf32>
    %251 = vector.multi_reduction <add>, %250, %cst_39 [1] : vector<8x32xf32> to vector<8xf32>
    %252 = vector.shape_cast %251 : vector<8xf32> to vector<8x1xf32>
    %cst_40 = arith.constant 3.200000e+01 : f32
    %253 = vector.broadcast %cst_40 : f32 to vector<8x1xf32>
    %254 = arith.divf %252, %253 : vector<8x1xf32>
    %255 = vector.broadcast %254 : vector<8x1xf32> to vector<8x32xf32>
    %256 = arith.subf %250, %255 : vector<8x32xf32>
    %257 = arith.mulf %256, %256 : vector<8x32xf32>
    %cst_41 = arith.constant dense<0.000000e+00> : vector<8xf32>
    %258 = vector.multi_reduction <add>, %257, %cst_41 [1] : vector<8x32xf32> to vector<8xf32>
    %259 = vector.shape_cast %258 : vector<8xf32> to vector<8x1xf32>
    %cst_42 = arith.constant 3.200000e+01 : f32
    %260 = vector.broadcast %cst_42 : f32 to vector<8x1xf32>
    %261 = arith.divf %259, %260 : vector<8x1xf32>
    %262 = vector.broadcast %254 : vector<8x1xf32> to vector<8x32xf32>
    %263 = arith.subf %250, %262 : vector<8x32xf32>
    %cst_43 = arith.constant 9.99999974E-6 : f32
    %264 = vector.broadcast %cst_43 : f32 to vector<8x1xf32>
    %265 = arith.addf %261, %264 : vector<8x1xf32>
    %266 = math.rsqrt %265 : vector<8x1xf32>
    %267 = vector.broadcast %266 : vector<8x1xf32> to vector<8x32xf32>
    %268 = arith.mulf %263, %267 : vector<8x32xf32>
    %269 = vector.broadcast %8 : vector<1x32xf32> to vector<8x32xf32>
    %270 = arith.mulf %268, %269 : vector<8x32xf32>
    %271 = arith.addf %247, %270 : vector<8x32xf32>
    %272 = vector.broadcast %10 : vector<1x32xf32> to vector<8x32xf32>
    %273 = arith.addf %271, %272 : vector<8x32xf32>
    %cst_44 = arith.constant dense<0.000000e+00> : vector<8x32xf32>
    %274 = tpu.matmul %14, %273, %cst_44 {dimension_numbers = #tpu.dot_dimension_numbers<[1], [0], [0], [1], [0, 0, 1, 1], [], []>} : vector<8x8xf32>, vector<8x32xf32>, vector<8x32xf32> -> vector<8x32xf32>
    %275 = vector.broadcast %16 : vector<8x1xf32> to vector<8x32xf32>
    %276 = arith.addf %274, %275 : vector<8x32xf32>
    %cst_45 = arith.constant dense<0.000000e+00> : vector<8xf32>
    %277 = vector.multi_reduction <add>, %276, %cst_45 [1] : vector<8x32xf32> to vector<8xf32>
    %278 = vector.shape_cast %277 : vector<8xf32> to vector<8x1xf32>
    %cst_46 = arith.constant 3.200000e+01 : f32
    %279 = vector.broadcast %cst_46 : f32 to vector<8x1xf32>
    %280 = arith.divf %278, %279 : vector<8x1xf32>
    %281 = vector.broadcast %280 : vector<8x1xf32> to vector<8x32xf32>
    %282 = arith.subf %276, %281 : vector<8x32xf32>
    %283 = arith.mulf %282, %282 : vector<8x32xf32>
    %cst_47 = arith.constant dense<0.000000e+00> : vector<8xf32>
    %284 = vector.multi_reduction <add>, %283, %cst_47 [1] : vector<8x32xf32> to vector<8xf32>
    %285 = vector.shape_cast %284 : vector<8xf32> to vector<8x1xf32>
    %cst_48 = arith.constant 3.200000e+01 : f32
    %286 = vector.broadcast %cst_48 : f32 to vector<8x1xf32>
    %287 = arith.divf %285, %286 : vector<8x1xf32>
    %288 = vector.broadcast %280 : vector<8x1xf32> to vector<8x32xf32>
    %289 = arith.subf %276, %288 : vector<8x32xf32>
    %cst_49 = arith.constant 9.99999974E-6 : f32
    %290 = vector.broadcast %cst_49 : f32 to vector<8x1xf32>
    %291 = arith.addf %287, %290 : vector<8x1xf32>
    %292 = math.rsqrt %291 : vector<8x1xf32>
    %293 = vector.broadcast %292 : vector<8x1xf32> to vector<8x32xf32>
    %294 = arith.mulf %289, %293 : vector<8x32xf32>
    %295 = vector.broadcast %9 : vector<1x32xf32> to vector<8x32xf32>
    %296 = arith.mulf %294, %295 : vector<8x32xf32>
    %297 = arith.addf %273, %296 : vector<8x32xf32>
    %298 = vector.broadcast %11 : vector<1x32xf32> to vector<8x32xf32>
    %299 = arith.addf %297, %298 : vector<8x32xf32>
    %cst_50 = arith.constant dense<0.000000e+00> : vector<2x32xf32>
    %300 = tpu.matmul %17, %299, %cst_50 {dimension_numbers = #tpu.dot_dimension_numbers<[1], [0], [0], [1], [0, 0, 1, 1], [], []>} : vector<2x8xf32>, vector<8x32xf32>, vector<2x32xf32> -> vector<2x32xf32>
    %cst_51 = arith.constant dense<0.000000e+00> : vector<2x16xf32>
    %301 = tpu.matmul %300, %19, %cst_51 {dimension_numbers = #tpu.dot_dimension_numbers<[1], [0], [0], [1], [0, 0, 1, 1], [], []>} : vector<2x32xf32>, vector<32x16xf32>, vector<2x16xf32> -> vector<2x16xf32>
    %302 = vector.broadcast %20 : vector<1x16xf32> to vector<2x16xf32>
    %303 = arith.addf %301, %302 : vector<2x16xf32>
    %cst_52 = arith.constant dense<0.000000e+00> : vector<2x32xf32>
    %304 = tpu.matmul %303, %6, %cst_52 {dimension_numbers = #tpu.dot_dimension_numbers<[1], [0], [0], [1], [0, 0, 1, 1], [], []>} : vector<2x16xf32>, vector<16x32xf32>, vector<2x32xf32> -> vector<2x32xf32>
    %305 = vector.broadcast %7 : vector<1x32xf32> to vector<2x32xf32>
    %306 = arith.addf %304, %305 : vector<2x32xf32>
    %cst_53 = arith.constant dense<0.000000e+00> : vector<2x96xf32>
    %307 = tpu.matmul %303, %1, %cst_53 {dimension_numbers = #tpu.dot_dimension_numbers<[1], [0], [0], [1], [0, 0, 1, 1], [], []>} : vector<2x16xf32>, vector<16x96xf32>, vector<2x96xf32> -> vector<2x96xf32>
    %308 = vector.broadcast %3 : vector<1x96xf32> to vector<2x96xf32>
    %309 = arith.addf %307, %308 : vector<2x96xf32>
    %cst_54 = arith.constant dense<0.000000e+00> : vector<2x96xf32>
    %310 = tpu.matmul %246, %2, %cst_54 {dimension_numbers = #tpu.dot_dimension_numbers<[1], [0], [0], [1], [0, 0, 1, 1], [], []>} : vector<2x32xf32>, vector<32x96xf32>, vector<2x96xf32> -> vector<2x96xf32>
    %311 = vector.broadcast %4 : vector<1x96xf32> to vector<2x96xf32>
    %312 = arith.addf %310, %311 : vector<2x96xf32>
    %313 = vector.extract_strided_slice %309 {offsets = [0, 32], sizes = [2, 64], strides = [1, 1]} : vector<2x96xf32> to vector<2x64xf32>
    %314 = vector.extract_strided_slice %312 {offsets = [0, 32], sizes = [2, 64], strides = [1, 1]} : vector<2x96xf32> to vector<2x64xf32>
    %315 = arith.addf %313, %314 : vector<2x64xf32>
    %316 = arith.negf %315 : vector<2x64xf32>
    %317 = math.exp %316 : vector<2x64xf32>
    %cst_55 = arith.constant 1.000000e+00 : f32
    %318 = vector.broadcast %cst_55 : f32 to vector<2x64xf32>
    %319 = arith.addf %318, %317 : vector<2x64xf32>
    %320 = arith.divf %318, %319 : vector<2x64xf32>
    %321 = vector.extract_strided_slice %320 {offsets = [0, 0], sizes = [2, 32], strides = [1, 1]} : vector<2x64xf32> to vector<2x32xf32>
    %322 = vector.extract_strided_slice %320 {offsets = [0, 32], sizes = [2, 32], strides = [1, 1]} : vector<2x64xf32> to vector<2x32xf32>
    %323 = vector.extract_strided_slice %309 {offsets = [0, 0], sizes = [2, 32], strides = [1, 1]} : vector<2x96xf32> to vector<2x32xf32>
    %324 = vector.extract_strided_slice %312 {offsets = [0, 0], sizes = [2, 32], strides = [1, 1]} : vector<2x96xf32> to vector<2x32xf32>
    %325 = arith.mulf %321, %324 : vector<2x32xf32>
    %326 = arith.addf %323, %325 : vector<2x32xf32>
    %327 = math.tanh %326 : vector<2x32xf32>
    %cst_56 = arith.constant 1.000000e+00 : f32
    %328 = vector.broadcast %cst_56 : f32 to vector<2x32xf32>
    %329 = arith.subf %328, %322 : vector<2x32xf32>
    %330 = arith.mulf %329, %327 : vector<2x32xf32>
    %331 = arith.mulf %322, %246 : vector<2x32xf32>
    %332 = arith.addf %330, %331 : vector<2x32xf32>
    %333 = tpu.concatenate %217, %223, %306, %332 in 0 : vector<2x32xf32>, vector<2x32xf32>, vector<2x32xf32>, vector<2x32xf32> -> vector<8x32xf32>
    %cst_57 = arith.constant dense<0.000000e+00> : vector<8x32xf32>
    %334 = tpu.matmul %13, %333, %cst_57 {dimension_numbers = #tpu.dot_dimension_numbers<[1], [0], [0], [1], [0, 0, 1, 1], [], []>} : vector<8x8xf32>, vector<8x32xf32>, vector<8x32xf32> -> vector<8x32xf32>
    %335 = vector.broadcast %15 : vector<8x1xf32> to vector<8x32xf32>
    %336 = arith.addf %334, %335 : vector<8x32xf32>
    %cst_58 = arith.constant dense<0.000000e+00> : vector<8xf32>
    %337 = vector.multi_reduction <add>, %336, %cst_58 [1] : vector<8x32xf32> to vector<8xf32>
    %338 = vector.shape_cast %337 : vector<8xf32> to vector<8x1xf32>
    %cst_59 = arith.constant 3.200000e+01 : f32
    %339 = vector.broadcast %cst_59 : f32 to vector<8x1xf32>
    %340 = arith.divf %338, %339 : vector<8x1xf32>
    %341 = vector.broadcast %340 : vector<8x1xf32> to vector<8x32xf32>
    %342 = arith.subf %336, %341 : vector<8x32xf32>
    %343 = arith.mulf %342, %342 : vector<8x32xf32>
    %cst_60 = arith.constant dense<0.000000e+00> : vector<8xf32>
    %344 = vector.multi_reduction <add>, %343, %cst_60 [1] : vector<8x32xf32> to vector<8xf32>
    %345 = vector.shape_cast %344 : vector<8xf32> to vector<8x1xf32>
    %cst_61 = arith.constant 3.200000e+01 : f32
    %346 = vector.broadcast %cst_61 : f32 to vector<8x1xf32>
    %347 = arith.divf %345, %346 : vector<8x1xf32>
    %348 = vector.broadcast %340 : vector<8x1xf32> to vector<8x32xf32>
    %349 = arith.subf %336, %348 : vector<8x32xf32>
    %cst_62 = arith.constant 9.99999974E-6 : f32
    %350 = vector.broadcast %cst_62 : f32 to vector<8x1xf32>
    %351 = arith.addf %347, %350 : vector<8x1xf32>
    %352 = math.rsqrt %351 : vector<8x1xf32>
    %353 = vector.broadcast %352 : vector<8x1xf32> to vector<8x32xf32>
    %354 = arith.mulf %349, %353 : vector<8x32xf32>
    %355 = vector.broadcast %8 : vector<1x32xf32> to vector<8x32xf32>
    %356 = arith.mulf %354, %355 : vector<8x32xf32>
    %357 = arith.addf %333, %356 : vector<8x32xf32>
    %358 = vector.broadcast %10 : vector<1x32xf32> to vector<8x32xf32>
    %359 = arith.addf %357, %358 : vector<8x32xf32>
    %cst_63 = arith.constant dense<0.000000e+00> : vector<8x32xf32>
    %360 = tpu.matmul %14, %359, %cst_63 {dimension_numbers = #tpu.dot_dimension_numbers<[1], [0], [0], [1], [0, 0, 1, 1], [], []>} : vector<8x8xf32>, vector<8x32xf32>, vector<8x32xf32> -> vector<8x32xf32>
    %361 = vector.broadcast %16 : vector<8x1xf32> to vector<8x32xf32>
    %362 = arith.addf %360, %361 : vector<8x32xf32>
    %cst_64 = arith.constant dense<0.000000e+00> : vector<8xf32>
    %363 = vector.multi_reduction <add>, %362, %cst_64 [1] : vector<8x32xf32> to vector<8xf32>
    %364 = vector.shape_cast %363 : vector<8xf32> to vector<8x1xf32>
    %cst_65 = arith.constant 3.200000e+01 : f32
    %365 = vector.broadcast %cst_65 : f32 to vector<8x1xf32>
    %366 = arith.divf %364, %365 : vector<8x1xf32>
    %367 = vector.broadcast %366 : vector<8x1xf32> to vector<8x32xf32>
    %368 = arith.subf %362, %367 : vector<8x32xf32>
    %369 = arith.mulf %368, %368 : vector<8x32xf32>
    %cst_66 = arith.constant dense<0.000000e+00> : vector<8xf32>
    %370 = vector.multi_reduction <add>, %369, %cst_66 [1] : vector<8x32xf32> to vector<8xf32>
    %371 = vector.shape_cast %370 : vector<8xf32> to vector<8x1xf32>
    %cst_67 = arith.constant 3.200000e+01 : f32
    %372 = vector.broadcast %cst_67 : f32 to vector<8x1xf32>
    %373 = arith.divf %371, %372 : vector<8x1xf32>
    %374 = vector.broadcast %366 : vector<8x1xf32> to vector<8x32xf32>
    %375 = arith.subf %362, %374 : vector<8x32xf32>
    %cst_68 = arith.constant 9.99999974E-6 : f32
    %376 = vector.broadcast %cst_68 : f32 to vector<8x1xf32>
    %377 = arith.addf %373, %376 : vector<8x1xf32>
    %378 = math.rsqrt %377 : vector<8x1xf32>
    %379 = vector.broadcast %378 : vector<8x1xf32> to vector<8x32xf32>
    %380 = arith.mulf %375, %379 : vector<8x32xf32>
    %381 = vector.broadcast %9 : vector<1x32xf32> to vector<8x32xf32>
    %382 = arith.mulf %380, %381 : vector<8x32xf32>
    %383 = arith.addf %359, %382 : vector<8x32xf32>
    %384 = vector.broadcast %11 : vector<1x32xf32> to vector<8x32xf32>
    %385 = arith.addf %383, %384 : vector<8x32xf32>
    %cst_69 = arith.constant dense<0.000000e+00> : vector<2x32xf32>
    %386 = tpu.matmul %17, %385, %cst_69 {dimension_numbers = #tpu.dot_dimension_numbers<[1], [0], [0], [1], [0, 0, 1, 1], [], []>} : vector<2x8xf32>, vector<8x32xf32>, vector<2x32xf32> -> vector<2x32xf32>
    %cst_70 = arith.constant dense<0.000000e+00> : vector<2x16xf32>
    %387 = tpu.matmul %386, %19, %cst_70 {dimension_numbers = #tpu.dot_dimension_numbers<[1], [0], [0], [1], [0, 0, 1, 1], [], []>} : vector<2x32xf32>, vector<32x16xf32>, vector<2x16xf32> -> vector<2x16xf32>
    %388 = vector.broadcast %20 : vector<1x16xf32> to vector<2x16xf32>
    %389 = arith.addf %387, %388 : vector<2x16xf32>
    %cst_71 = arith.constant dense<0.000000e+00> : vector<2x32xf32>
    %390 = tpu.matmul %389, %6, %cst_71 {dimension_numbers = #tpu.dot_dimension_numbers<[1], [0], [0], [1], [0, 0, 1, 1], [], []>} : vector<2x16xf32>, vector<16x32xf32>, vector<2x32xf32> -> vector<2x32xf32>
    %391 = vector.broadcast %7 : vector<1x32xf32> to vector<2x32xf32>
    %392 = arith.addf %390, %391 : vector<2x32xf32>
    %cst_72 = arith.constant dense<0.000000e+00> : vector<2x96xf32>
    %393 = tpu.matmul %389, %1, %cst_72 {dimension_numbers = #tpu.dot_dimension_numbers<[1], [0], [0], [1], [0, 0, 1, 1], [], []>} : vector<2x16xf32>, vector<16x96xf32>, vector<2x96xf32> -> vector<2x96xf32>
    %394 = vector.broadcast %3 : vector<1x96xf32> to vector<2x96xf32>
    %395 = arith.addf %393, %394 : vector<2x96xf32>
    %cst_73 = arith.constant dense<0.000000e+00> : vector<2x96xf32>
    %396 = tpu.matmul %332, %2, %cst_73 {dimension_numbers = #tpu.dot_dimension_numbers<[1], [0], [0], [1], [0, 0, 1, 1], [], []>} : vector<2x32xf32>, vector<32x96xf32>, vector<2x96xf32> -> vector<2x96xf32>
    %397 = vector.broadcast %4 : vector<1x96xf32> to vector<2x96xf32>
    %398 = arith.addf %396, %397 : vector<2x96xf32>
    %399 = vector.extract_strided_slice %395 {offsets = [0, 32], sizes = [2, 64], strides = [1, 1]} : vector<2x96xf32> to vector<2x64xf32>
    %400 = vector.extract_strided_slice %398 {offsets = [0, 32], sizes = [2, 64], strides = [1, 1]} : vector<2x96xf32> to vector<2x64xf32>
    %401 = arith.addf %399, %400 : vector<2x64xf32>
    %402 = arith.negf %401 : vector<2x64xf32>
    %403 = math.exp %402 : vector<2x64xf32>
    %cst_74 = arith.constant 1.000000e+00 : f32
    %404 = vector.broadcast %cst_74 : f32 to vector<2x64xf32>
    %405 = arith.addf %404, %403 : vector<2x64xf32>
    %406 = arith.divf %404, %405 : vector<2x64xf32>
    %407 = vector.extract_strided_slice %406 {offsets = [0, 0], sizes = [2, 32], strides = [1, 1]} : vector<2x64xf32> to vector<2x32xf32>
    %408 = vector.extract_strided_slice %406 {offsets = [0, 32], sizes = [2, 32], strides = [1, 1]} : vector<2x64xf32> to vector<2x32xf32>
    %409 = vector.extract_strided_slice %395 {offsets = [0, 0], sizes = [2, 32], strides = [1, 1]} : vector<2x96xf32> to vector<2x32xf32>
    %410 = vector.extract_strided_slice %398 {offsets = [0, 0], sizes = [2, 32], strides = [1, 1]} : vector<2x96xf32> to vector<2x32xf32>
    %411 = arith.mulf %407, %410 : vector<2x32xf32>
    %412 = arith.addf %409, %411 : vector<2x32xf32>
    %413 = math.tanh %412 : vector<2x32xf32>
    %cst_75 = arith.constant 1.000000e+00 : f32
    %414 = vector.broadcast %cst_75 : f32 to vector<2x32xf32>
    %415 = arith.subf %414, %408 : vector<2x32xf32>
    %416 = arith.mulf %415, %413 : vector<2x32xf32>
    %417 = arith.mulf %408, %332 : vector<2x32xf32>
    %418 = arith.addf %416, %417 : vector<2x32xf32>
    %419 = tpu.concatenate %217, %306, %392, %418 in 0 : vector<2x32xf32>, vector<2x32xf32>, vector<2x32xf32>, vector<2x32xf32> -> vector<8x32xf32>
    %cst_76 = arith.constant dense<0.000000e+00> : vector<8x32xf32>
    %420 = tpu.matmul %13, %419, %cst_76 {dimension_numbers = #tpu.dot_dimension_numbers<[1], [0], [0], [1], [0, 0, 1, 1], [], []>} : vector<8x8xf32>, vector<8x32xf32>, vector<8x32xf32> -> vector<8x32xf32>
    %421 = vector.broadcast %15 : vector<8x1xf32> to vector<8x32xf32>
    %422 = arith.addf %420, %421 : vector<8x32xf32>
    %cst_77 = arith.constant dense<0.000000e+00> : vector<8xf32>
    %423 = vector.multi_reduction <add>, %422, %cst_77 [1] : vector<8x32xf32> to vector<8xf32>
    %424 = vector.shape_cast %423 : vector<8xf32> to vector<8x1xf32>
    %cst_78 = arith.constant 3.200000e+01 : f32
    %425 = vector.broadcast %cst_78 : f32 to vector<8x1xf32>
    %426 = arith.divf %424, %425 : vector<8x1xf32>
    %427 = vector.broadcast %426 : vector<8x1xf32> to vector<8x32xf32>
    %428 = arith.subf %422, %427 : vector<8x32xf32>
    %429 = arith.mulf %428, %428 : vector<8x32xf32>
    %cst_79 = arith.constant dense<0.000000e+00> : vector<8xf32>
    %430 = vector.multi_reduction <add>, %429, %cst_79 [1] : vector<8x32xf32> to vector<8xf32>
    %431 = vector.shape_cast %430 : vector<8xf32> to vector<8x1xf32>
    %cst_80 = arith.constant 3.200000e+01 : f32
    %432 = vector.broadcast %cst_80 : f32 to vector<8x1xf32>
    %433 = arith.divf %431, %432 : vector<8x1xf32>
    %434 = vector.broadcast %426 : vector<8x1xf32> to vector<8x32xf32>
    %435 = arith.subf %422, %434 : vector<8x32xf32>
    %cst_81 = arith.constant 9.99999974E-6 : f32
    %436 = vector.broadcast %cst_81 : f32 to vector<8x1xf32>
    %437 = arith.addf %433, %436 : vector<8x1xf32>
    %438 = math.rsqrt %437 : vector<8x1xf32>
    %439 = vector.broadcast %438 : vector<8x1xf32> to vector<8x32xf32>
    %440 = arith.mulf %435, %439 : vector<8x32xf32>
    %441 = vector.broadcast %8 : vector<1x32xf32> to vector<8x32xf32>
    %442 = arith.mulf %440, %441 : vector<8x32xf32>
    %443 = arith.addf %419, %442 : vector<8x32xf32>
    %444 = vector.broadcast %10 : vector<1x32xf32> to vector<8x32xf32>
    %445 = arith.addf %443, %444 : vector<8x32xf32>
    %cst_82 = arith.constant dense<0.000000e+00> : vector<8x32xf32>
    %446 = tpu.matmul %14, %445, %cst_82 {dimension_numbers = #tpu.dot_dimension_numbers<[1], [0], [0], [1], [0, 0, 1, 1], [], []>} : vector<8x8xf32>, vector<8x32xf32>, vector<8x32xf32> -> vector<8x32xf32>
    %447 = vector.broadcast %16 : vector<8x1xf32> to vector<8x32xf32>
    %448 = arith.addf %446, %447 : vector<8x32xf32>
    %cst_83 = arith.constant dense<0.000000e+00> : vector<8xf32>
    %449 = vector.multi_reduction <add>, %448, %cst_83 [1] : vector<8x32xf32> to vector<8xf32>
    %450 = vector.shape_cast %449 : vector<8xf32> to vector<8x1xf32>
    %cst_84 = arith.constant 3.200000e+01 : f32
    %451 = vector.broadcast %cst_84 : f32 to vector<8x1xf32>
    %452 = arith.divf %450, %451 : vector<8x1xf32>
    %453 = vector.broadcast %452 : vector<8x1xf32> to vector<8x32xf32>
    %454 = arith.subf %448, %453 : vector<8x32xf32>
    %455 = arith.mulf %454, %454 : vector<8x32xf32>
    %cst_85 = arith.constant dense<0.000000e+00> : vector<8xf32>
    %456 = vector.multi_reduction <add>, %455, %cst_85 [1] : vector<8x32xf32> to vector<8xf32>
    %457 = vector.shape_cast %456 : vector<8xf32> to vector<8x1xf32>
    %cst_86 = arith.constant 3.200000e+01 : f32
    %458 = vector.broadcast %cst_86 : f32 to vector<8x1xf32>
    %459 = arith.divf %457, %458 : vector<8x1xf32>
    %460 = vector.broadcast %452 : vector<8x1xf32> to vector<8x32xf32>
    %461 = arith.subf %448, %460 : vector<8x32xf32>
    %cst_87 = arith.constant 9.99999974E-6 : f32
    %462 = vector.broadcast %cst_87 : f32 to vector<8x1xf32>
    %463 = arith.addf %459, %462 : vector<8x1xf32>
    %464 = math.rsqrt %463 : vector<8x1xf32>
    %465 = vector.broadcast %464 : vector<8x1xf32> to vector<8x32xf32>
    %466 = arith.mulf %461, %465 : vector<8x32xf32>
    %467 = vector.broadcast %9 : vector<1x32xf32> to vector<8x32xf32>
    %468 = arith.mulf %466, %467 : vector<8x32xf32>
    %469 = arith.addf %445, %468 : vector<8x32xf32>
    %470 = vector.broadcast %11 : vector<1x32xf32> to vector<8x32xf32>
    %471 = arith.addf %469, %470 : vector<8x32xf32>
    %cst_88 = arith.constant dense<0.000000e+00> : vector<2x32xf32>
    %472 = tpu.matmul %17, %471, %cst_88 {dimension_numbers = #tpu.dot_dimension_numbers<[1], [0], [0], [1], [0, 0, 1, 1], [], []>} : vector<2x8xf32>, vector<8x32xf32>, vector<2x32xf32> -> vector<2x32xf32>
    %cst_89 = arith.constant dense<0.000000e+00> : vector<2x16xf32>
    %473 = tpu.matmul %472, %19, %cst_89 {dimension_numbers = #tpu.dot_dimension_numbers<[1], [0], [0], [1], [0, 0, 1, 1], [], []>} : vector<2x32xf32>, vector<32x16xf32>, vector<2x16xf32> -> vector<2x16xf32>
    %474 = vector.broadcast %20 : vector<1x16xf32> to vector<2x16xf32>
    %475 = arith.addf %473, %474 : vector<2x16xf32>
    %cst_90 = arith.constant dense<0.000000e+00> : vector<2x32xf32>
    %476 = tpu.matmul %475, %6, %cst_90 {dimension_numbers = #tpu.dot_dimension_numbers<[1], [0], [0], [1], [0, 0, 1, 1], [], []>} : vector<2x16xf32>, vector<16x32xf32>, vector<2x32xf32> -> vector<2x32xf32>
    %477 = vector.broadcast %7 : vector<1x32xf32> to vector<2x32xf32>
    %478 = arith.addf %476, %477 : vector<2x32xf32>
    %cst_91 = arith.constant dense<0.000000e+00> : vector<2x96xf32>
    %479 = tpu.matmul %475, %1, %cst_91 {dimension_numbers = #tpu.dot_dimension_numbers<[1], [0], [0], [1], [0, 0, 1, 1], [], []>} : vector<2x16xf32>, vector<16x96xf32>, vector<2x96xf32> -> vector<2x96xf32>
    %480 = vector.broadcast %3 : vector<1x96xf32> to vector<2x96xf32>
    %481 = arith.addf %479, %480 : vector<2x96xf32>
    %cst_92 = arith.constant dense<0.000000e+00> : vector<2x96xf32>
    %482 = tpu.matmul %418, %2, %cst_92 {dimension_numbers = #tpu.dot_dimension_numbers<[1], [0], [0], [1], [0, 0, 1, 1], [], []>} : vector<2x32xf32>, vector<32x96xf32>, vector<2x96xf32> -> vector<2x96xf32>
    %483 = vector.broadcast %4 : vector<1x96xf32> to vector<2x96xf32>
    %484 = arith.addf %482, %483 : vector<2x96xf32>
    %485 = vector.extract_strided_slice %481 {offsets = [0, 32], sizes = [2, 64], strides = [1, 1]} : vector<2x96xf32> to vector<2x64xf32>
    %486 = vector.extract_strided_slice %484 {offsets = [0, 32], sizes = [2, 64], strides = [1, 1]} : vector<2x96xf32> to vector<2x64xf32>
    %487 = arith.addf %485, %486 : vector<2x64xf32>
    %488 = arith.negf %487 : vector<2x64xf32>
    %489 = math.exp %488 : vector<2x64xf32>
    %cst_93 = arith.constant 1.000000e+00 : f32
    %490 = vector.broadcast %cst_93 : f32 to vector<2x64xf32>
    %491 = arith.addf %490, %489 : vector<2x64xf32>
    %492 = arith.divf %490, %491 : vector<2x64xf32>
    %493 = vector.extract_strided_slice %492 {offsets = [0, 0], sizes = [2, 32], strides = [1, 1]} : vector<2x64xf32> to vector<2x32xf32>
    %494 = vector.extract_strided_slice %492 {offsets = [0, 32], sizes = [2, 32], strides = [1, 1]} : vector<2x64xf32> to vector<2x32xf32>
    %495 = vector.extract_strided_slice %481 {offsets = [0, 0], sizes = [2, 32], strides = [1, 1]} : vector<2x96xf32> to vector<2x32xf32>
    %496 = vector.extract_strided_slice %484 {offsets = [0, 0], sizes = [2, 32], strides = [1, 1]} : vector<2x96xf32> to vector<2x32xf32>
    %497 = arith.mulf %493, %496 : vector<2x32xf32>
    %498 = arith.addf %495, %497 : vector<2x32xf32>
    %499 = math.tanh %498 : vector<2x32xf32>
    %cst_94 = arith.constant 1.000000e+00 : f32
    %500 = vector.broadcast %cst_94 : f32 to vector<2x32xf32>
    %501 = arith.subf %500, %494 : vector<2x32xf32>
    %502 = arith.mulf %501, %499 : vector<2x32xf32>
    %503 = arith.mulf %494, %418 : vector<2x32xf32>
    %504 = arith.addf %502, %503 : vector<2x32xf32>
    %505 = tpu.concatenate %217, %392, %478, %504 in 0 : vector<2x32xf32>, vector<2x32xf32>, vector<2x32xf32>, vector<2x32xf32> -> vector<8x32xf32>
    %cst_95 = arith.constant dense<0.000000e+00> : vector<8x32xf32>
    %506 = tpu.matmul %13, %505, %cst_95 {dimension_numbers = #tpu.dot_dimension_numbers<[1], [0], [0], [1], [0, 0, 1, 1], [], []>} : vector<8x8xf32>, vector<8x32xf32>, vector<8x32xf32> -> vector<8x32xf32>
    %507 = vector.broadcast %15 : vector<8x1xf32> to vector<8x32xf32>
    %508 = arith.addf %506, %507 : vector<8x32xf32>
    %cst_96 = arith.constant dense<0.000000e+00> : vector<8xf32>
    %509 = vector.multi_reduction <add>, %508, %cst_96 [1] : vector<8x32xf32> to vector<8xf32>
    %510 = vector.shape_cast %509 : vector<8xf32> to vector<8x1xf32>
    %cst_97 = arith.constant 3.200000e+01 : f32
    %511 = vector.broadcast %cst_97 : f32 to vector<8x1xf32>
    %512 = arith.divf %510, %511 : vector<8x1xf32>
    %513 = vector.broadcast %512 : vector<8x1xf32> to vector<8x32xf32>
    %514 = arith.subf %508, %513 : vector<8x32xf32>
    %515 = arith.mulf %514, %514 : vector<8x32xf32>
    %cst_98 = arith.constant dense<0.000000e+00> : vector<8xf32>
    %516 = vector.multi_reduction <add>, %515, %cst_98 [1] : vector<8x32xf32> to vector<8xf32>
    %517 = vector.shape_cast %516 : vector<8xf32> to vector<8x1xf32>
    %cst_99 = arith.constant 3.200000e+01 : f32
    %518 = vector.broadcast %cst_99 : f32 to vector<8x1xf32>
    %519 = arith.divf %517, %518 : vector<8x1xf32>
    %520 = vector.broadcast %512 : vector<8x1xf32> to vector<8x32xf32>
    %521 = arith.subf %508, %520 : vector<8x32xf32>
    %cst_100 = arith.constant 9.99999974E-6 : f32
    %522 = vector.broadcast %cst_100 : f32 to vector<8x1xf32>
    %523 = arith.addf %519, %522 : vector<8x1xf32>
    %524 = math.rsqrt %523 : vector<8x1xf32>
    %525 = vector.broadcast %524 : vector<8x1xf32> to vector<8x32xf32>
    %526 = arith.mulf %521, %525 : vector<8x32xf32>
    %527 = vector.broadcast %8 : vector<1x32xf32> to vector<8x32xf32>
    %528 = arith.mulf %526, %527 : vector<8x32xf32>
    %529 = arith.addf %505, %528 : vector<8x32xf32>
    %530 = vector.broadcast %10 : vector<1x32xf32> to vector<8x32xf32>
    %531 = arith.addf %529, %530 : vector<8x32xf32>
    %cst_101 = arith.constant dense<0.000000e+00> : vector<8x32xf32>
    %532 = tpu.matmul %14, %531, %cst_101 {dimension_numbers = #tpu.dot_dimension_numbers<[1], [0], [0], [1], [0, 0, 1, 1], [], []>} : vector<8x8xf32>, vector<8x32xf32>, vector<8x32xf32> -> vector<8x32xf32>
    %533 = vector.broadcast %16 : vector<8x1xf32> to vector<8x32xf32>
    %534 = arith.addf %532, %533 : vector<8x32xf32>
    %cst_102 = arith.constant dense<0.000000e+00> : vector<8xf32>
    %535 = vector.multi_reduction <add>, %534, %cst_102 [1] : vector<8x32xf32> to vector<8xf32>
    %536 = vector.shape_cast %535 : vector<8xf32> to vector<8x1xf32>
    %cst_103 = arith.constant 3.200000e+01 : f32
    %537 = vector.broadcast %cst_103 : f32 to vector<8x1xf32>
    %538 = arith.divf %536, %537 : vector<8x1xf32>
    %539 = vector.broadcast %538 : vector<8x1xf32> to vector<8x32xf32>
    %540 = arith.subf %534, %539 : vector<8x32xf32>
    %541 = arith.mulf %540, %540 : vector<8x32xf32>
    %cst_104 = arith.constant dense<0.000000e+00> : vector<8xf32>
    %542 = vector.multi_reduction <add>, %541, %cst_104 [1] : vector<8x32xf32> to vector<8xf32>
    %543 = vector.shape_cast %542 : vector<8xf32> to vector<8x1xf32>
    %cst_105 = arith.constant 3.200000e+01 : f32
    %544 = vector.broadcast %cst_105 : f32 to vector<8x1xf32>
    %545 = arith.divf %543, %544 : vector<8x1xf32>
    %546 = vector.broadcast %538 : vector<8x1xf32> to vector<8x32xf32>
    %547 = arith.subf %534, %546 : vector<8x32xf32>
    %cst_106 = arith.constant 9.99999974E-6 : f32
    %548 = vector.broadcast %cst_106 : f32 to vector<8x1xf32>
    %549 = arith.addf %545, %548 : vector<8x1xf32>
    %550 = math.rsqrt %549 : vector<8x1xf32>
    %551 = vector.broadcast %550 : vector<8x1xf32> to vector<8x32xf32>
    %552 = arith.mulf %547, %551 : vector<8x32xf32>
    %553 = vector.broadcast %9 : vector<1x32xf32> to vector<8x32xf32>
    %554 = arith.mulf %552, %553 : vector<8x32xf32>
    %555 = arith.addf %531, %554 : vector<8x32xf32>
    %556 = vector.broadcast %11 : vector<1x32xf32> to vector<8x32xf32>
    %557 = arith.addf %555, %556 : vector<8x32xf32>
    %cst_107 = arith.constant dense<0.000000e+00> : vector<2x32xf32>
    %558 = tpu.matmul %17, %557, %cst_107 {dimension_numbers = #tpu.dot_dimension_numbers<[1], [0], [0], [1], [0, 0, 1, 1], [], []>} : vector<2x8xf32>, vector<8x32xf32>, vector<2x32xf32> -> vector<2x32xf32>
    %cst_108 = arith.constant dense<0.000000e+00> : vector<2x16xf32>
    %559 = tpu.matmul %558, %19, %cst_108 {dimension_numbers = #tpu.dot_dimension_numbers<[1], [0], [0], [1], [0, 0, 1, 1], [], []>} : vector<2x32xf32>, vector<32x16xf32>, vector<2x16xf32> -> vector<2x16xf32>
    %560 = vector.broadcast %20 : vector<1x16xf32> to vector<2x16xf32>
    %561 = arith.addf %559, %560 : vector<2x16xf32>
    %cst_109 = arith.constant dense<0.000000e+00> : vector<2x32xf32>
    %562 = tpu.matmul %561, %6, %cst_109 {dimension_numbers = #tpu.dot_dimension_numbers<[1], [0], [0], [1], [0, 0, 1, 1], [], []>} : vector<2x16xf32>, vector<16x32xf32>, vector<2x32xf32> -> vector<2x32xf32>
    %563 = vector.broadcast %7 : vector<1x32xf32> to vector<2x32xf32>
    %564 = arith.addf %562, %563 : vector<2x32xf32>
    %cst_110 = arith.constant dense<0.000000e+00> : vector<2x96xf32>
    %565 = tpu.matmul %561, %1, %cst_110 {dimension_numbers = #tpu.dot_dimension_numbers<[1], [0], [0], [1], [0, 0, 1, 1], [], []>} : vector<2x16xf32>, vector<16x96xf32>, vector<2x96xf32> -> vector<2x96xf32>
    %566 = vector.broadcast %3 : vector<1x96xf32> to vector<2x96xf32>
    %567 = arith.addf %565, %566 : vector<2x96xf32>
    %cst_111 = arith.constant dense<0.000000e+00> : vector<2x96xf32>
    %568 = tpu.matmul %504, %2, %cst_111 {dimension_numbers = #tpu.dot_dimension_numbers<[1], [0], [0], [1], [0, 0, 1, 1], [], []>} : vector<2x32xf32>, vector<32x96xf32>, vector<2x96xf32> -> vector<2x96xf32>
    %569 = vector.broadcast %4 : vector<1x96xf32> to vector<2x96xf32>
    %570 = arith.addf %568, %569 : vector<2x96xf32>
    %571 = vector.extract_strided_slice %567 {offsets = [0, 32], sizes = [2, 64], strides = [1, 1]} : vector<2x96xf32> to vector<2x64xf32>
    %572 = vector.extract_strided_slice %570 {offsets = [0, 32], sizes = [2, 64], strides = [1, 1]} : vector<2x96xf32> to vector<2x64xf32>
    %573 = arith.addf %571, %572 : vector<2x64xf32>
    %574 = arith.negf %573 : vector<2x64xf32>
    %575 = math.exp %574 : vector<2x64xf32>
    %cst_112 = arith.constant 1.000000e+00 : f32
    %576 = vector.broadcast %cst_112 : f32 to vector<2x64xf32>
    %577 = arith.addf %576, %575 : vector<2x64xf32>
    %578 = arith.divf %576, %577 : vector<2x64xf32>
    %579 = vector.extract_strided_slice %578 {offsets = [0, 0], sizes = [2, 32], strides = [1, 1]} : vector<2x64xf32> to vector<2x32xf32>
    %580 = vector.extract_strided_slice %578 {offsets = [0, 32], sizes = [2, 32], strides = [1, 1]} : vector<2x64xf32> to vector<2x32xf32>
    %581 = vector.extract_strided_slice %567 {offsets = [0, 0], sizes = [2, 32], strides = [1, 1]} : vector<2x96xf32> to vector<2x32xf32>
    %582 = vector.extract_strided_slice %570 {offsets = [0, 0], sizes = [2, 32], strides = [1, 1]} : vector<2x96xf32> to vector<2x32xf32>
    %583 = arith.mulf %579, %582 : vector<2x32xf32>
    %584 = arith.addf %581, %583 : vector<2x32xf32>
    %585 = math.tanh %584 : vector<2x32xf32>
    %cst_113 = arith.constant 1.000000e+00 : f32
    %586 = vector.broadcast %cst_113 : f32 to vector<2x32xf32>
    %587 = arith.subf %586, %580 : vector<2x32xf32>
    %588 = arith.mulf %587, %585 : vector<2x32xf32>
    %589 = arith.mulf %580, %504 : vector<2x32xf32>
    %590 = arith.addf %588, %589 : vector<2x32xf32>
    %591 = tpu.concatenate %217, %478, %564, %590 in 0 : vector<2x32xf32>, vector<2x32xf32>, vector<2x32xf32>, vector<2x32xf32> -> vector<8x32xf32>
    %cst_114 = arith.constant dense<0.000000e+00> : vector<8x32xf32>
    %592 = tpu.matmul %13, %591, %cst_114 {dimension_numbers = #tpu.dot_dimension_numbers<[1], [0], [0], [1], [0, 0, 1, 1], [], []>} : vector<8x8xf32>, vector<8x32xf32>, vector<8x32xf32> -> vector<8x32xf32>
    %593 = vector.broadcast %15 : vector<8x1xf32> to vector<8x32xf32>
    %594 = arith.addf %592, %593 : vector<8x32xf32>
    %cst_115 = arith.constant dense<0.000000e+00> : vector<8xf32>
    %595 = vector.multi_reduction <add>, %594, %cst_115 [1] : vector<8x32xf32> to vector<8xf32>
    %596 = vector.shape_cast %595 : vector<8xf32> to vector<8x1xf32>
    %cst_116 = arith.constant 3.200000e+01 : f32
    %597 = vector.broadcast %cst_116 : f32 to vector<8x1xf32>
    %598 = arith.divf %596, %597 : vector<8x1xf32>
    %599 = vector.broadcast %598 : vector<8x1xf32> to vector<8x32xf32>
    %600 = arith.subf %594, %599 : vector<8x32xf32>
    %601 = arith.mulf %600, %600 : vector<8x32xf32>
    %cst_117 = arith.constant dense<0.000000e+00> : vector<8xf32>
    %602 = vector.multi_reduction <add>, %601, %cst_117 [1] : vector<8x32xf32> to vector<8xf32>
    %603 = vector.shape_cast %602 : vector<8xf32> to vector<8x1xf32>
    %cst_118 = arith.constant 3.200000e+01 : f32
    %604 = vector.broadcast %cst_118 : f32 to vector<8x1xf32>
    %605 = arith.divf %603, %604 : vector<8x1xf32>
    %606 = vector.broadcast %598 : vector<8x1xf32> to vector<8x32xf32>
    %607 = arith.subf %594, %606 : vector<8x32xf32>
    %cst_119 = arith.constant 9.99999974E-6 : f32
    %608 = vector.broadcast %cst_119 : f32 to vector<8x1xf32>
    %609 = arith.addf %605, %608 : vector<8x1xf32>
    %610 = math.rsqrt %609 : vector<8x1xf32>
    %611 = vector.broadcast %610 : vector<8x1xf32> to vector<8x32xf32>
    %612 = arith.mulf %607, %611 : vector<8x32xf32>
    %613 = vector.broadcast %8 : vector<1x32xf32> to vector<8x32xf32>
    %614 = arith.mulf %612, %613 : vector<8x32xf32>
    %615 = arith.addf %591, %614 : vector<8x32xf32>
    %616 = vector.broadcast %10 : vector<1x32xf32> to vector<8x32xf32>
    %617 = arith.addf %615, %616 : vector<8x32xf32>
    %cst_120 = arith.constant dense<0.000000e+00> : vector<8x32xf32>
    %618 = tpu.matmul %14, %617, %cst_120 {dimension_numbers = #tpu.dot_dimension_numbers<[1], [0], [0], [1], [0, 0, 1, 1], [], []>} : vector<8x8xf32>, vector<8x32xf32>, vector<8x32xf32> -> vector<8x32xf32>
    %619 = vector.broadcast %16 : vector<8x1xf32> to vector<8x32xf32>
    %620 = arith.addf %618, %619 : vector<8x32xf32>
    %cst_121 = arith.constant dense<0.000000e+00> : vector<8xf32>
    %621 = vector.multi_reduction <add>, %620, %cst_121 [1] : vector<8x32xf32> to vector<8xf32>
    %622 = vector.shape_cast %621 : vector<8xf32> to vector<8x1xf32>
    %cst_122 = arith.constant 3.200000e+01 : f32
    %623 = vector.broadcast %cst_122 : f32 to vector<8x1xf32>
    %624 = arith.divf %622, %623 : vector<8x1xf32>
    %625 = vector.broadcast %624 : vector<8x1xf32> to vector<8x32xf32>
    %626 = arith.subf %620, %625 : vector<8x32xf32>
    %627 = arith.mulf %626, %626 : vector<8x32xf32>
    %cst_123 = arith.constant dense<0.000000e+00> : vector<8xf32>
    %628 = vector.multi_reduction <add>, %627, %cst_123 [1] : vector<8x32xf32> to vector<8xf32>
    %629 = vector.shape_cast %628 : vector<8xf32> to vector<8x1xf32>
    %cst_124 = arith.constant 3.200000e+01 : f32
    %630 = vector.broadcast %cst_124 : f32 to vector<8x1xf32>
    %631 = arith.divf %629, %630 : vector<8x1xf32>
    %632 = vector.broadcast %624 : vector<8x1xf32> to vector<8x32xf32>
    %633 = arith.subf %620, %632 : vector<8x32xf32>
    %cst_125 = arith.constant 9.99999974E-6 : f32
    %634 = vector.broadcast %cst_125 : f32 to vector<8x1xf32>
    %635 = arith.addf %631, %634 : vector<8x1xf32>
    %636 = math.rsqrt %635 : vector<8x1xf32>
    %637 = vector.broadcast %636 : vector<8x1xf32> to vector<8x32xf32>
    %638 = arith.mulf %633, %637 : vector<8x32xf32>
    %639 = vector.broadcast %9 : vector<1x32xf32> to vector<8x32xf32>
    %640 = arith.mulf %638, %639 : vector<8x32xf32>
    %641 = arith.addf %617, %640 : vector<8x32xf32>
    %642 = vector.broadcast %11 : vector<1x32xf32> to vector<8x32xf32>
    %643 = arith.addf %641, %642 : vector<8x32xf32>
    %cst_126 = arith.constant dense<0.000000e+00> : vector<2x32xf32>
    %644 = tpu.matmul %17, %643, %cst_126 {dimension_numbers = #tpu.dot_dimension_numbers<[1], [0], [0], [1], [0, 0, 1, 1], [], []>} : vector<2x8xf32>, vector<8x32xf32>, vector<2x32xf32> -> vector<2x32xf32>
    %cst_127 = arith.constant dense<0.000000e+00> : vector<2x16xf32>
    %645 = tpu.matmul %644, %19, %cst_127 {dimension_numbers = #tpu.dot_dimension_numbers<[1], [0], [0], [1], [0, 0, 1, 1], [], []>} : vector<2x32xf32>, vector<32x16xf32>, vector<2x16xf32> -> vector<2x16xf32>
    %646 = vector.broadcast %20 : vector<1x16xf32> to vector<2x16xf32>
    %647 = arith.addf %645, %646 : vector<2x16xf32>
    %cst_128 = arith.constant dense<0.000000e+00> : vector<2x32xf32>
    %648 = tpu.matmul %647, %6, %cst_128 {dimension_numbers = #tpu.dot_dimension_numbers<[1], [0], [0], [1], [0, 0, 1, 1], [], []>} : vector<2x16xf32>, vector<16x32xf32>, vector<2x32xf32> -> vector<2x32xf32>
    %649 = vector.broadcast %7 : vector<1x32xf32> to vector<2x32xf32>
    %650 = arith.addf %648, %649 : vector<2x32xf32>
    %cst_129 = arith.constant dense<0.000000e+00> : vector<2x96xf32>
    %651 = tpu.matmul %647, %1, %cst_129 {dimension_numbers = #tpu.dot_dimension_numbers<[1], [0], [0], [1], [0, 0, 1, 1], [], []>} : vector<2x16xf32>, vector<16x96xf32>, vector<2x96xf32> -> vector<2x96xf32>
    %652 = vector.broadcast %3 : vector<1x96xf32> to vector<2x96xf32>
    %653 = arith.addf %651, %652 : vector<2x96xf32>
    %cst_130 = arith.constant dense<0.000000e+00> : vector<2x96xf32>
    %654 = tpu.matmul %590, %2, %cst_130 {dimension_numbers = #tpu.dot_dimension_numbers<[1], [0], [0], [1], [0, 0, 1, 1], [], []>} : vector<2x32xf32>, vector<32x96xf32>, vector<2x96xf32> -> vector<2x96xf32>
    %655 = vector.broadcast %4 : vector<1x96xf32> to vector<2x96xf32>
    %656 = arith.addf %654, %655 : vector<2x96xf32>
    %657 = vector.extract_strided_slice %653 {offsets = [0, 32], sizes = [2, 64], strides = [1, 1]} : vector<2x96xf32> to vector<2x64xf32>
    %658 = vector.extract_strided_slice %656 {offsets = [0, 32], sizes = [2, 64], strides = [1, 1]} : vector<2x96xf32> to vector<2x64xf32>
    %659 = arith.addf %657, %658 : vector<2x64xf32>
    %660 = arith.negf %659 : vector<2x64xf32>
    %661 = math.exp %660 : vector<2x64xf32>
    %cst_131 = arith.constant 1.000000e+00 : f32
    %662 = vector.broadcast %cst_131 : f32 to vector<2x64xf32>
    %663 = arith.addf %662, %661 : vector<2x64xf32>
    %664 = arith.divf %662, %663 : vector<2x64xf32>
    %665 = vector.extract_strided_slice %664 {offsets = [0, 0], sizes = [2, 32], strides = [1, 1]} : vector<2x64xf32> to vector<2x32xf32>
    %666 = vector.extract_strided_slice %664 {offsets = [0, 32], sizes = [2, 32], strides = [1, 1]} : vector<2x64xf32> to vector<2x32xf32>
    %667 = vector.extract_strided_slice %653 {offsets = [0, 0], sizes = [2, 32], strides = [1, 1]} : vector<2x96xf32> to vector<2x32xf32>
    %668 = vector.extract_strided_slice %656 {offsets = [0, 0], sizes = [2, 32], strides = [1, 1]} : vector<2x96xf32> to vector<2x32xf32>
    %669 = arith.mulf %665, %668 : vector<2x32xf32>
    %670 = arith.addf %667, %669 : vector<2x32xf32>
    %671 = math.tanh %670 : vector<2x32xf32>
    %cst_132 = arith.constant 1.000000e+00 : f32
    %672 = vector.broadcast %cst_132 : f32 to vector<2x32xf32>
    %673 = arith.subf %672, %666 : vector<2x32xf32>
    %674 = arith.mulf %673, %671 : vector<2x32xf32>
    %675 = arith.mulf %666, %590 : vector<2x32xf32>
    %676 = arith.addf %674, %675 : vector<2x32xf32>
    %677 = tpu.concatenate %217, %564, %650, %676 in 0 : vector<2x32xf32>, vector<2x32xf32>, vector<2x32xf32>, vector<2x32xf32> -> vector<8x32xf32>
    %cst_133 = arith.constant dense<0.000000e+00> : vector<8x32xf32>
    %678 = tpu.matmul %13, %677, %cst_133 {dimension_numbers = #tpu.dot_dimension_numbers<[1], [0], [0], [1], [0, 0, 1, 1], [], []>} : vector<8x8xf32>, vector<8x32xf32>, vector<8x32xf32> -> vector<8x32xf32>
    %679 = vector.broadcast %15 : vector<8x1xf32> to vector<8x32xf32>
    %680 = arith.addf %678, %679 : vector<8x32xf32>
    %cst_134 = arith.constant dense<0.000000e+00> : vector<8xf32>
    %681 = vector.multi_reduction <add>, %680, %cst_134 [1] : vector<8x32xf32> to vector<8xf32>
    %682 = vector.shape_cast %681 : vector<8xf32> to vector<8x1xf32>
    %cst_135 = arith.constant 3.200000e+01 : f32
    %683 = vector.broadcast %cst_135 : f32 to vector<8x1xf32>
    %684 = arith.divf %682, %683 : vector<8x1xf32>
    %685 = vector.broadcast %684 : vector<8x1xf32> to vector<8x32xf32>
    %686 = arith.subf %680, %685 : vector<8x32xf32>
    %687 = arith.mulf %686, %686 : vector<8x32xf32>
    %cst_136 = arith.constant dense<0.000000e+00> : vector<8xf32>
    %688 = vector.multi_reduction <add>, %687, %cst_136 [1] : vector<8x32xf32> to vector<8xf32>
    %689 = vector.shape_cast %688 : vector<8xf32> to vector<8x1xf32>
    %cst_137 = arith.constant 3.200000e+01 : f32
    %690 = vector.broadcast %cst_137 : f32 to vector<8x1xf32>
    %691 = arith.divf %689, %690 : vector<8x1xf32>
    %692 = vector.broadcast %684 : vector<8x1xf32> to vector<8x32xf32>
    %693 = arith.subf %680, %692 : vector<8x32xf32>
    %cst_138 = arith.constant 9.99999974E-6 : f32
    %694 = vector.broadcast %cst_138 : f32 to vector<8x1xf32>
    %695 = arith.addf %691, %694 : vector<8x1xf32>
    %696 = math.rsqrt %695 : vector<8x1xf32>
    %697 = vector.broadcast %696 : vector<8x1xf32> to vector<8x32xf32>
    %698 = arith.mulf %693, %697 : vector<8x32xf32>
    %699 = vector.broadcast %8 : vector<1x32xf32> to vector<8x32xf32>
    %700 = arith.mulf %698, %699 : vector<8x32xf32>
    %701 = arith.addf %677, %700 : vector<8x32xf32>
    %702 = vector.broadcast %10 : vector<1x32xf32> to vector<8x32xf32>
    %703 = arith.addf %701, %702 : vector<8x32xf32>
    %cst_139 = arith.constant dense<0.000000e+00> : vector<8x32xf32>
    %704 = tpu.matmul %14, %703, %cst_139 {dimension_numbers = #tpu.dot_dimension_numbers<[1], [0], [0], [1], [0, 0, 1, 1], [], []>} : vector<8x8xf32>, vector<8x32xf32>, vector<8x32xf32> -> vector<8x32xf32>
    %705 = vector.broadcast %16 : vector<8x1xf32> to vector<8x32xf32>
    %706 = arith.addf %704, %705 : vector<8x32xf32>
    %cst_140 = arith.constant dense<0.000000e+00> : vector<8xf32>
    %707 = vector.multi_reduction <add>, %706, %cst_140 [1] : vector<8x32xf32> to vector<8xf32>
    %708 = vector.shape_cast %707 : vector<8xf32> to vector<8x1xf32>
    %cst_141 = arith.constant 3.200000e+01 : f32
    %709 = vector.broadcast %cst_141 : f32 to vector<8x1xf32>
    %710 = arith.divf %708, %709 : vector<8x1xf32>
    %711 = vector.broadcast %710 : vector<8x1xf32> to vector<8x32xf32>
    %712 = arith.subf %706, %711 : vector<8x32xf32>
    %713 = arith.mulf %712, %712 : vector<8x32xf32>
    %cst_142 = arith.constant dense<0.000000e+00> : vector<8xf32>
    %714 = vector.multi_reduction <add>, %713, %cst_142 [1] : vector<8x32xf32> to vector<8xf32>
    %715 = vector.shape_cast %714 : vector<8xf32> to vector<8x1xf32>
    %cst_143 = arith.constant 3.200000e+01 : f32
    %716 = vector.broadcast %cst_143 : f32 to vector<8x1xf32>
    %717 = arith.divf %715, %716 : vector<8x1xf32>
    %718 = vector.broadcast %710 : vector<8x1xf32> to vector<8x32xf32>
    %719 = arith.subf %706, %718 : vector<8x32xf32>
    %cst_144 = arith.constant 9.99999974E-6 : f32
    %720 = vector.broadcast %cst_144 : f32 to vector<8x1xf32>
    %721 = arith.addf %717, %720 : vector<8x1xf32>
    %722 = math.rsqrt %721 : vector<8x1xf32>
    %723 = vector.broadcast %722 : vector<8x1xf32> to vector<8x32xf32>
    %724 = arith.mulf %719, %723 : vector<8x32xf32>
    %725 = vector.broadcast %9 : vector<1x32xf32> to vector<8x32xf32>
    %726 = arith.mulf %724, %725 : vector<8x32xf32>
    %727 = arith.addf %703, %726 : vector<8x32xf32>
    %728 = vector.broadcast %11 : vector<1x32xf32> to vector<8x32xf32>
    %729 = arith.addf %727, %728 : vector<8x32xf32>
    %cst_145 = arith.constant dense<0.000000e+00> : vector<2x32xf32>
    %730 = tpu.matmul %17, %729, %cst_145 {dimension_numbers = #tpu.dot_dimension_numbers<[1], [0], [0], [1], [0, 0, 1, 1], [], []>} : vector<2x8xf32>, vector<8x32xf32>, vector<2x32xf32> -> vector<2x32xf32>
    %cst_146 = arith.constant dense<0.000000e+00> : vector<2x16xf32>
    %731 = tpu.matmul %730, %19, %cst_146 {dimension_numbers = #tpu.dot_dimension_numbers<[1], [0], [0], [1], [0, 0, 1, 1], [], []>} : vector<2x32xf32>, vector<32x16xf32>, vector<2x16xf32> -> vector<2x16xf32>
    %732 = vector.broadcast %20 : vector<1x16xf32> to vector<2x16xf32>
    %733 = arith.addf %731, %732 : vector<2x16xf32>
    %cst_147 = arith.constant dense<0.000000e+00> : vector<2x32xf32>
    %734 = tpu.matmul %733, %6, %cst_147 {dimension_numbers = #tpu.dot_dimension_numbers<[1], [0], [0], [1], [0, 0, 1, 1], [], []>} : vector<2x16xf32>, vector<16x32xf32>, vector<2x32xf32> -> vector<2x32xf32>
    %735 = vector.broadcast %7 : vector<1x32xf32> to vector<2x32xf32>
    %736 = arith.addf %734, %735 : vector<2x32xf32>
    %cst_148 = arith.constant dense<0.000000e+00> : vector<2x96xf32>
    %737 = tpu.matmul %733, %1, %cst_148 {dimension_numbers = #tpu.dot_dimension_numbers<[1], [0], [0], [1], [0, 0, 1, 1], [], []>} : vector<2x16xf32>, vector<16x96xf32>, vector<2x96xf32> -> vector<2x96xf32>
    %738 = vector.broadcast %3 : vector<1x96xf32> to vector<2x96xf32>
    %739 = arith.addf %737, %738 : vector<2x96xf32>
    %cst_149 = arith.constant dense<0.000000e+00> : vector<2x96xf32>
    %740 = tpu.matmul %676, %2, %cst_149 {dimension_numbers = #tpu.dot_dimension_numbers<[1], [0], [0], [1], [0, 0, 1, 1], [], []>} : vector<2x32xf32>, vector<32x96xf32>, vector<2x96xf32> -> vector<2x96xf32>
    %741 = vector.broadcast %4 : vector<1x96xf32> to vector<2x96xf32>
    %742 = arith.addf %740, %741 : vector<2x96xf32>
    %743 = vector.extract_strided_slice %739 {offsets = [0, 32], sizes = [2, 64], strides = [1, 1]} : vector<2x96xf32> to vector<2x64xf32>
    %744 = vector.extract_strided_slice %742 {offsets = [0, 32], sizes = [2, 64], strides = [1, 1]} : vector<2x96xf32> to vector<2x64xf32>
    %745 = arith.addf %743, %744 : vector<2x64xf32>
    %746 = arith.negf %745 : vector<2x64xf32>
    %747 = math.exp %746 : vector<2x64xf32>
    %cst_150 = arith.constant 1.000000e+00 : f32
    %748 = vector.broadcast %cst_150 : f32 to vector<2x64xf32>
    %749 = arith.addf %748, %747 : vector<2x64xf32>
    %750 = arith.divf %748, %749 : vector<2x64xf32>
    %751 = vector.extract_strided_slice %750 {offsets = [0, 0], sizes = [2, 32], strides = [1, 1]} : vector<2x64xf32> to vector<2x32xf32>
    %752 = vector.extract_strided_slice %750 {offsets = [0, 32], sizes = [2, 32], strides = [1, 1]} : vector<2x64xf32> to vector<2x32xf32>
    %753 = vector.extract_strided_slice %739 {offsets = [0, 0], sizes = [2, 32], strides = [1, 1]} : vector<2x96xf32> to vector<2x32xf32>
    %754 = vector.extract_strided_slice %742 {offsets = [0, 0], sizes = [2, 32], strides = [1, 1]} : vector<2x96xf32> to vector<2x32xf32>
    %755 = arith.mulf %751, %754 : vector<2x32xf32>
    %756 = arith.addf %753, %755 : vector<2x32xf32>
    %757 = math.tanh %756 : vector<2x32xf32>
    %cst_151 = arith.constant 1.000000e+00 : f32
    %758 = vector.broadcast %cst_151 : f32 to vector<2x32xf32>
    %759 = arith.subf %758, %752 : vector<2x32xf32>
    %760 = arith.mulf %759, %757 : vector<2x32xf32>
    %761 = arith.mulf %752, %676 : vector<2x32xf32>
    %762 = arith.addf %760, %761 : vector<2x32xf32>
    %763 = tpu.concatenate %217, %650, %736, %762 in 0 : vector<2x32xf32>, vector<2x32xf32>, vector<2x32xf32>, vector<2x32xf32> -> vector<8x32xf32>
    %cst_152 = arith.constant dense<0.000000e+00> : vector<8x32xf32>
    %764 = tpu.matmul %13, %763, %cst_152 {dimension_numbers = #tpu.dot_dimension_numbers<[1], [0], [0], [1], [0, 0, 1, 1], [], []>} : vector<8x8xf32>, vector<8x32xf32>, vector<8x32xf32> -> vector<8x32xf32>
    %765 = vector.broadcast %15 : vector<8x1xf32> to vector<8x32xf32>
    %766 = arith.addf %764, %765 : vector<8x32xf32>
    %cst_153 = arith.constant dense<0.000000e+00> : vector<8xf32>
    %767 = vector.multi_reduction <add>, %766, %cst_153 [1] : vector<8x32xf32> to vector<8xf32>
    %768 = vector.shape_cast %767 : vector<8xf32> to vector<8x1xf32>
    %cst_154 = arith.constant 3.200000e+01 : f32
    %769 = vector.broadcast %cst_154 : f32 to vector<8x1xf32>
    %770 = arith.divf %768, %769 : vector<8x1xf32>
    %771 = vector.broadcast %770 : vector<8x1xf32> to vector<8x32xf32>
    %772 = arith.subf %766, %771 : vector<8x32xf32>
    %773 = arith.mulf %772, %772 : vector<8x32xf32>
    %cst_155 = arith.constant dense<0.000000e+00> : vector<8xf32>
    %774 = vector.multi_reduction <add>, %773, %cst_155 [1] : vector<8x32xf32> to vector<8xf32>
    %775 = vector.shape_cast %774 : vector<8xf32> to vector<8x1xf32>
    %cst_156 = arith.constant 3.200000e+01 : f32
    %776 = vector.broadcast %cst_156 : f32 to vector<8x1xf32>
    %777 = arith.divf %775, %776 : vector<8x1xf32>
    %778 = vector.broadcast %770 : vector<8x1xf32> to vector<8x32xf32>
    %779 = arith.subf %766, %778 : vector<8x32xf32>
    %cst_157 = arith.constant 9.99999974E-6 : f32
    %780 = vector.broadcast %cst_157 : f32 to vector<8x1xf32>
    %781 = arith.addf %777, %780 : vector<8x1xf32>
    %782 = math.rsqrt %781 : vector<8x1xf32>
    %783 = vector.broadcast %782 : vector<8x1xf32> to vector<8x32xf32>
    %784 = arith.mulf %779, %783 : vector<8x32xf32>
    %785 = vector.broadcast %8 : vector<1x32xf32> to vector<8x32xf32>
    %786 = arith.mulf %784, %785 : vector<8x32xf32>
    %787 = arith.addf %763, %786 : vector<8x32xf32>
    %788 = vector.broadcast %10 : vector<1x32xf32> to vector<8x32xf32>
    %789 = arith.addf %787, %788 : vector<8x32xf32>
    %cst_158 = arith.constant dense<0.000000e+00> : vector<8x32xf32>
    %790 = tpu.matmul %14, %789, %cst_158 {dimension_numbers = #tpu.dot_dimension_numbers<[1], [0], [0], [1], [0, 0, 1, 1], [], []>} : vector<8x8xf32>, vector<8x32xf32>, vector<8x32xf32> -> vector<8x32xf32>
    %791 = vector.broadcast %16 : vector<8x1xf32> to vector<8x32xf32>
    %792 = arith.addf %790, %791 : vector<8x32xf32>
    %cst_159 = arith.constant dense<0.000000e+00> : vector<8xf32>
    %793 = vector.multi_reduction <add>, %792, %cst_159 [1] : vector<8x32xf32> to vector<8xf32>
    %794 = vector.shape_cast %793 : vector<8xf32> to vector<8x1xf32>
    %cst_160 = arith.constant 3.200000e+01 : f32
    %795 = vector.broadcast %cst_160 : f32 to vector<8x1xf32>
    %796 = arith.divf %794, %795 : vector<8x1xf32>
    %797 = vector.broadcast %796 : vector<8x1xf32> to vector<8x32xf32>
    %798 = arith.subf %792, %797 : vector<8x32xf32>
    %799 = arith.mulf %798, %798 : vector<8x32xf32>
    %cst_161 = arith.constant dense<0.000000e+00> : vector<8xf32>
    %800 = vector.multi_reduction <add>, %799, %cst_161 [1] : vector<8x32xf32> to vector<8xf32>
    %801 = vector.shape_cast %800 : vector<8xf32> to vector<8x1xf32>
    %cst_162 = arith.constant 3.200000e+01 : f32
    %802 = vector.broadcast %cst_162 : f32 to vector<8x1xf32>
    %803 = arith.divf %801, %802 : vector<8x1xf32>
    %804 = vector.broadcast %796 : vector<8x1xf32> to vector<8x32xf32>
    %805 = arith.subf %792, %804 : vector<8x32xf32>
    %cst_163 = arith.constant 9.99999974E-6 : f32
    %806 = vector.broadcast %cst_163 : f32 to vector<8x1xf32>
    %807 = arith.addf %803, %806 : vector<8x1xf32>
    %808 = math.rsqrt %807 : vector<8x1xf32>
    %809 = vector.broadcast %808 : vector<8x1xf32> to vector<8x32xf32>
    %810 = arith.mulf %805, %809 : vector<8x32xf32>
    %811 = vector.broadcast %9 : vector<1x32xf32> to vector<8x32xf32>
    %812 = arith.mulf %810, %811 : vector<8x32xf32>
    %813 = arith.addf %789, %812 : vector<8x32xf32>
    %814 = vector.broadcast %11 : vector<1x32xf32> to vector<8x32xf32>
    %815 = arith.addf %813, %814 : vector<8x32xf32>
    %cst_164 = arith.constant dense<0.000000e+00> : vector<2x32xf32>
    %816 = tpu.matmul %17, %815, %cst_164 {dimension_numbers = #tpu.dot_dimension_numbers<[1], [0], [0], [1], [0, 0, 1, 1], [], []>} : vector<2x8xf32>, vector<8x32xf32>, vector<2x32xf32> -> vector<2x32xf32>
    %cst_165 = arith.constant dense<0.000000e+00> : vector<2x16xf32>
    %817 = tpu.matmul %816, %19, %cst_165 {dimension_numbers = #tpu.dot_dimension_numbers<[1], [0], [0], [1], [0, 0, 1, 1], [], []>} : vector<2x32xf32>, vector<32x16xf32>, vector<2x16xf32> -> vector<2x16xf32>
    %818 = vector.broadcast %20 : vector<1x16xf32> to vector<2x16xf32>
    %819 = arith.addf %817, %818 : vector<2x16xf32>
    %cst_166 = arith.constant dense<0.000000e+00> : vector<2x32xf32>
    %820 = tpu.matmul %819, %6, %cst_166 {dimension_numbers = #tpu.dot_dimension_numbers<[1], [0], [0], [1], [0, 0, 1, 1], [], []>} : vector<2x16xf32>, vector<16x32xf32>, vector<2x32xf32> -> vector<2x32xf32>
    %821 = vector.broadcast %7 : vector<1x32xf32> to vector<2x32xf32>
    %822 = arith.addf %820, %821 : vector<2x32xf32>
    %cst_167 = arith.constant dense<0.000000e+00> : vector<2x96xf32>
    %823 = tpu.matmul %819, %1, %cst_167 {dimension_numbers = #tpu.dot_dimension_numbers<[1], [0], [0], [1], [0, 0, 1, 1], [], []>} : vector<2x16xf32>, vector<16x96xf32>, vector<2x96xf32> -> vector<2x96xf32>
    %824 = vector.broadcast %3 : vector<1x96xf32> to vector<2x96xf32>
    %825 = arith.addf %823, %824 : vector<2x96xf32>
    %cst_168 = arith.constant dense<0.000000e+00> : vector<2x96xf32>
    %826 = tpu.matmul %762, %2, %cst_168 {dimension_numbers = #tpu.dot_dimension_numbers<[1], [0], [0], [1], [0, 0, 1, 1], [], []>} : vector<2x32xf32>, vector<32x96xf32>, vector<2x96xf32> -> vector<2x96xf32>
    %827 = vector.broadcast %4 : vector<1x96xf32> to vector<2x96xf32>
    %828 = arith.addf %826, %827 : vector<2x96xf32>
    %829 = vector.extract_strided_slice %825 {offsets = [0, 32], sizes = [2, 64], strides = [1, 1]} : vector<2x96xf32> to vector<2x64xf32>
    %830 = vector.extract_strided_slice %828 {offsets = [0, 32], sizes = [2, 64], strides = [1, 1]} : vector<2x96xf32> to vector<2x64xf32>
    %831 = arith.addf %829, %830 : vector<2x64xf32>
    %832 = arith.negf %831 : vector<2x64xf32>
    %833 = math.exp %832 : vector<2x64xf32>
    %cst_169 = arith.constant 1.000000e+00 : f32
    %834 = vector.broadcast %cst_169 : f32 to vector<2x64xf32>
    %835 = arith.addf %834, %833 : vector<2x64xf32>
    %836 = arith.divf %834, %835 : vector<2x64xf32>
    %837 = vector.extract_strided_slice %836 {offsets = [0, 0], sizes = [2, 32], strides = [1, 1]} : vector<2x64xf32> to vector<2x32xf32>
    %838 = vector.extract_strided_slice %836 {offsets = [0, 32], sizes = [2, 32], strides = [1, 1]} : vector<2x64xf32> to vector<2x32xf32>
    %839 = vector.extract_strided_slice %825 {offsets = [0, 0], sizes = [2, 32], strides = [1, 1]} : vector<2x96xf32> to vector<2x32xf32>
    %840 = vector.extract_strided_slice %828 {offsets = [0, 0], sizes = [2, 32], strides = [1, 1]} : vector<2x96xf32> to vector<2x32xf32>
    %841 = arith.mulf %837, %840 : vector<2x32xf32>
    %842 = arith.addf %839, %841 : vector<2x32xf32>
    %843 = math.tanh %842 : vector<2x32xf32>
    %cst_170 = arith.constant 1.000000e+00 : f32
    %844 = vector.broadcast %cst_170 : f32 to vector<2x32xf32>
    %845 = arith.subf %844, %838 : vector<2x32xf32>
    %846 = arith.mulf %845, %843 : vector<2x32xf32>
    %847 = arith.mulf %838, %762 : vector<2x32xf32>
    %848 = arith.addf %846, %847 : vector<2x32xf32>
    %849 = tpu.concatenate %217, %736, %822, %848 in 0 : vector<2x32xf32>, vector<2x32xf32>, vector<2x32xf32>, vector<2x32xf32> -> vector<8x32xf32>
    %cst_171 = arith.constant dense<0.000000e+00> : vector<8x32xf32>
    %850 = tpu.matmul %13, %849, %cst_171 {dimension_numbers = #tpu.dot_dimension_numbers<[1], [0], [0], [1], [0, 0, 1, 1], [], []>} : vector<8x8xf32>, vector<8x32xf32>, vector<8x32xf32> -> vector<8x32xf32>
    %851 = vector.broadcast %15 : vector<8x1xf32> to vector<8x32xf32>
    %852 = arith.addf %850, %851 : vector<8x32xf32>
    %cst_172 = arith.constant dense<0.000000e+00> : vector<8xf32>
    %853 = vector.multi_reduction <add>, %852, %cst_172 [1] : vector<8x32xf32> to vector<8xf32>
    %854 = vector.shape_cast %853 : vector<8xf32> to vector<8x1xf32>
    %cst_173 = arith.constant 3.200000e+01 : f32
    %855 = vector.broadcast %cst_173 : f32 to vector<8x1xf32>
    %856 = arith.divf %854, %855 : vector<8x1xf32>
    %857 = vector.broadcast %856 : vector<8x1xf32> to vector<8x32xf32>
    %858 = arith.subf %852, %857 : vector<8x32xf32>
    %859 = arith.mulf %858, %858 : vector<8x32xf32>
    %cst_174 = arith.constant dense<0.000000e+00> : vector<8xf32>
    %860 = vector.multi_reduction <add>, %859, %cst_174 [1] : vector<8x32xf32> to vector<8xf32>
    %861 = vector.shape_cast %860 : vector<8xf32> to vector<8x1xf32>
    %cst_175 = arith.constant 3.200000e+01 : f32
    %862 = vector.broadcast %cst_175 : f32 to vector<8x1xf32>
    %863 = arith.divf %861, %862 : vector<8x1xf32>
    %864 = vector.broadcast %856 : vector<8x1xf32> to vector<8x32xf32>
    %865 = arith.subf %852, %864 : vector<8x32xf32>
    %cst_176 = arith.constant 9.99999974E-6 : f32
    %866 = vector.broadcast %cst_176 : f32 to vector<8x1xf32>
    %867 = arith.addf %863, %866 : vector<8x1xf32>
    %868 = math.rsqrt %867 : vector<8x1xf32>
    %869 = vector.broadcast %868 : vector<8x1xf32> to vector<8x32xf32>
    %870 = arith.mulf %865, %869 : vector<8x32xf32>
    %871 = vector.broadcast %8 : vector<1x32xf32> to vector<8x32xf32>
    %872 = arith.mulf %870, %871 : vector<8x32xf32>
    %873 = arith.addf %849, %872 : vector<8x32xf32>
    %874 = vector.broadcast %10 : vector<1x32xf32> to vector<8x32xf32>
    %875 = arith.addf %873, %874 : vector<8x32xf32>
    %cst_177 = arith.constant dense<0.000000e+00> : vector<8x32xf32>
    %876 = tpu.matmul %14, %875, %cst_177 {dimension_numbers = #tpu.dot_dimension_numbers<[1], [0], [0], [1], [0, 0, 1, 1], [], []>} : vector<8x8xf32>, vector<8x32xf32>, vector<8x32xf32> -> vector<8x32xf32>
    %877 = vector.broadcast %16 : vector<8x1xf32> to vector<8x32xf32>
    %878 = arith.addf %876, %877 : vector<8x32xf32>
    %cst_178 = arith.constant dense<0.000000e+00> : vector<8xf32>
    %879 = vector.multi_reduction <add>, %878, %cst_178 [1] : vector<8x32xf32> to vector<8xf32>
    %880 = vector.shape_cast %879 : vector<8xf32> to vector<8x1xf32>
    %cst_179 = arith.constant 3.200000e+01 : f32
    %881 = vector.broadcast %cst_179 : f32 to vector<8x1xf32>
    %882 = arith.divf %880, %881 : vector<8x1xf32>
    %883 = vector.broadcast %882 : vector<8x1xf32> to vector<8x32xf32>
    %884 = arith.subf %878, %883 : vector<8x32xf32>
    %885 = arith.mulf %884, %884 : vector<8x32xf32>
    %cst_180 = arith.constant dense<0.000000e+00> : vector<8xf32>
    %886 = vector.multi_reduction <add>, %885, %cst_180 [1] : vector<8x32xf32> to vector<8xf32>
    %887 = vector.shape_cast %886 : vector<8xf32> to vector<8x1xf32>
    %cst_181 = arith.constant 3.200000e+01 : f32
    %888 = vector.broadcast %cst_181 : f32 to vector<8x1xf32>
    %889 = arith.divf %887, %888 : vector<8x1xf32>
    %890 = vector.broadcast %882 : vector<8x1xf32> to vector<8x32xf32>
    %891 = arith.subf %878, %890 : vector<8x32xf32>
    %cst_182 = arith.constant 9.99999974E-6 : f32
    %892 = vector.broadcast %cst_182 : f32 to vector<8x1xf32>
    %893 = arith.addf %889, %892 : vector<8x1xf32>
    %894 = math.rsqrt %893 : vector<8x1xf32>
    %895 = vector.broadcast %894 : vector<8x1xf32> to vector<8x32xf32>
    %896 = arith.mulf %891, %895 : vector<8x32xf32>
    %897 = vector.broadcast %9 : vector<1x32xf32> to vector<8x32xf32>
    %898 = arith.mulf %896, %897 : vector<8x32xf32>
    %899 = arith.addf %875, %898 : vector<8x32xf32>
    %900 = vector.broadcast %11 : vector<1x32xf32> to vector<8x32xf32>
    %901 = arith.addf %899, %900 : vector<8x32xf32>
    %cst_183 = arith.constant dense<0.000000e+00> : vector<2x32xf32>
    %902 = tpu.matmul %17, %901, %cst_183 {dimension_numbers = #tpu.dot_dimension_numbers<[1], [0], [0], [1], [0, 0, 1, 1], [], []>} : vector<2x8xf32>, vector<8x32xf32>, vector<2x32xf32> -> vector<2x32xf32>
    %cst_184 = arith.constant dense<0.000000e+00> : vector<2x16xf32>
    %903 = tpu.matmul %902, %19, %cst_184 {dimension_numbers = #tpu.dot_dimension_numbers<[1], [0], [0], [1], [0, 0, 1, 1], [], []>} : vector<2x32xf32>, vector<32x16xf32>, vector<2x16xf32> -> vector<2x16xf32>
    %904 = vector.broadcast %20 : vector<1x16xf32> to vector<2x16xf32>
    %905 = arith.addf %903, %904 : vector<2x16xf32>
    %906 = tpu.concatenate %303, %389, %475, %561, %647, %733, %819, %905 in 1 : vector<2x16xf32>, vector<2x16xf32>, vector<2x16xf32>, vector<2x16xf32>, vector<2x16xf32>, vector<2x16xf32>, vector<2x16xf32>, vector<2x16xf32> -> vector<2x128xf32>
    %c0_185 = arith.constant 0 : index
    %c0_186 = arith.constant 0 : index
    %907 = vector.load %arg6[%c0_185, %c0_186] : memref<2x128xf32, #tpu.memory_space<vmem>>, vector<2x128xf32>
    tpu.vector_store %arg6[%c0_185, %c0_186], %906 {strides = array<i32>} : memref<2x128xf32, #tpu.memory_space<vmem>>, vector<2x128xf32>,
    return
  }
  func.func @transform_0(%arg0: i32) -> (i32, i32) {
    %c0_i32 = arith.constant 0 : i32
    %c0_i32_0 = arith.constant 0 : i32
    %c0_i32_1 = arith.constant 0 : i32
    return %c0_i32, %c0_i32_0 : i32, i32
  }
  func.func @transform_1(%arg0: i32) -> (i32, i32) {
    %c0_i32 = arith.constant 0 : i32
    %c0_i32_0 = arith.constant 0 : i32
    %c0_i32_1 = arith.constant 0 : i32
    return %c0_i32, %c0_i32_0 : i32, i32
  }
  func.func @transform_2(%arg0: i32) -> (i32, i32) {
    %c0_i32 = arith.constant 0 : i32
    %c0_i32_0 = arith.constant 0 : i32
    %c0_i32_1 = arith.constant 0 : i32
    return %c0_i32, %c0_i32_0 : i32, i32
  }
  func.func @transform_3(%arg0: i32) -> (i32, i32) {
    %c0_i32 = arith.constant 0 : i32
    %c0_i32_0 = arith.constant 0 : i32
    %c0_i32_1 = arith.constant 0 : i32
    return %c0_i32, %c0_i32_0 : i32, i32
  }
  func.func @transform_4(%arg0: i32) -> (i32, i32) {
    %c0_i32 = arith.constant 0 : i32
    %c0_i32_0 = arith.constant 0 : i32
    %c0_i32_1 = arith.constant 0 : i32
    return %c0_i32, %c0_i32_0 : i32, i32
  }
  func.func @transform_5(%arg0: i32) -> (i32, i32) {
    %c0_i32 = arith.constant 0 : i32
    %c0_i32_0 = arith.constant 0 : i32
    %c0_i32_1 = arith.constant 0 : i32
    return %c0_i32, %c0_i32_0 : i32, i32
  }
}

</mosaic_0001>

<llo_original>
// kernel: tpu_custom_call.1
$region0: #{tpu_custom_call.1}
  #allocation0 [shape = 'u32[]', space=smem, size = 0x4, offset = 0x4, fixed_abs, tag = 'smem constant byte address 0x4 - core index']
  #allocation1 [shape = 'u32[72,128]{1,0:T(1,128)}', space=vmem, size = 0x9000, scoped, tag = 'internal scratch']
  %s0 = inlined_call_operand.hbm [shape: f32[16,16], index: 0, kind: input, shape index: {}]
  %s1 = inlined_call_operand.vmem [shape: f32[50,96], index: 1, kind: input, shape index: {}]
  %s2 = inlined_call_operand.vmem [shape: f32[21,32], index: 2, kind: input, shape index: {}]
  %s3 = inlined_call_operand.vmem [shape: f32[18,9], index: 3, kind: input, shape index: {}]
  %s4 = inlined_call_operand.vmem [shape: f32[33,16], index: 4, kind: input, shape index: {}]
  %s5 = inlined_call_operand.hbm [shape: f32[2,128], index: 5, kind: output, shape index: {}]
  %s6 = sld [smem:[#allocation0]]
  $region34: #{tpu_custom_call.1} parent=0
    _
  %s8 = ssub.s32 1, %s6
  %s9 = scalar_select 0, %s8, %s6
  $region1: #{tpu_custom_call.1} parent=0
    #allocation2 [shape = 'u8[8192]{0}', space=vmem, size = 0x2000, scoped, tag = 'input window, operand 0, single buffered']
    #allocation3 [shape = 's32[1]{0}', space=sflag, size = 0x4, scoped, tag = 'scoped memory for tpu_custom_call.1']
    #allocation4 [shape = 's32[1]{0}', space=sflag, size = 0x4, scoped, tag = 'scoped memory for tpu_custom_call.1']
    #allocation5 [shape = 'u8[1024]{0}', space=vmem, size = 0x400, scoped, tag = 'output window, operand 0, single buffered']
    %10 = vsyncpa [#allocation3], 0
    %11 = vsyncpa [#allocation4], 0
    // Predicated region
    $region2: #{tpu_custom_call.1} parent=1 // pred_check
      _
    $region3: #{tpu_custom_call.1} parent=1 // pred_check_branch
      %13 = sbr.rel (0) target = $region5
    $region4: #{tpu_custom_call.1} parent=1 // pred_region
      %15 = vsyncadd [#allocation3], 0
      %s16 = sshll.u32 %s0, 4
      %s17 = int_to_ptr.hbm [resolvable:$true] %s16
      %s18 = sshll.u32 [#allocation2], 4
      %s19 = int_to_ptr.vmem [resolvable:$true] %s18
      %24 = dma.hbm_to_vmem [thread:$0]  %s17, 256, %s19, [#allocation3], 128, 128, 8
    $region5: #{tpu_custom_call.1} parent=1 // pred_fallthru
      _
    // Predicated region
    $region6: #{tpu_custom_call.1} parent=1 // pred_check
      _
    $region7: #{tpu_custom_call.1} parent=1 // pred_check_branch
      %26 = sbr.rel (0) target = $region9
    $region8: #{tpu_custom_call.1} parent=1 // pred_region
      _
    $region9: #{tpu_custom_call.1} parent=1 // pred_fallthru
      _
    // Predicated region
    $region10: #{tpu_custom_call.1} parent=1 // pred_check
      _
    $region11: #{tpu_custom_call.1} parent=1 // pred_check_branch
      %28 = sbr.rel (0) target = $region13
    $region12: #{tpu_custom_call.1} parent=1 // pred_region
      _
    $region13: #{tpu_custom_call.1} parent=1 // pred_fallthru
      _
    // Predicated region
    $region14: #{tpu_custom_call.1} parent=1 // pred_check
      _
    $region15: #{tpu_custom_call.1} parent=1 // pred_check_branch
      %30 = sbr.rel (0) target = $region17
    $region16: #{tpu_custom_call.1} parent=1 // pred_region
      _
    $region17: #{tpu_custom_call.1} parent=1 // pred_fallthru
      _
    // Predicated region
    $region18: #{tpu_custom_call.1} parent=1 // pred_check
      _
    $region19: #{tpu_custom_call.1} parent=1 // pred_check_branch
      %32 = sbr.rel (0) target = $region21
    $region20: #{tpu_custom_call.1} parent=1 // pred_region
      _
    $region21: #{tpu_custom_call.1} parent=1 // pred_fallthru
      _
    // Predicated region
    $region22: #{tpu_custom_call.1} parent=1 // pred_check
      _
    $region23: #{tpu_custom_call.1} parent=1 // pred_check_branch
      %34 = sbr.rel (0) target = $region25
    $region24: #{tpu_custom_call.1} parent=1 // pred_region
      %36 = dma.done [#allocation3], 256
    $region25: #{tpu_custom_call.1} parent=1 // pred_fallthru
      _
    %v37 = vld [vmem:[%s1] sm:$0xff]
    %v38 = vld [vmem:[%s1 + $0x8] sm:$0xff]
    %v39 = vld [vmem:[%s1 + $0x10] sm:$0xff]
    %v40 = vld [vmem:[%s1 + $0x18] sm:$0xff]
    %v41 = vld [vmem:[%s1 + $0x20] sm:$0xff]
    %v42 = vld [vmem:[%s1 + $0x28] sm:$0xff]
    %v43 = vld [vmem:[%s1 + $0x30] sm:$0x3]
    %v44 = vld [vmem:[%s2] sm:$0xff]
    %v45 = vld [vmem:[%s2 + $0x8] sm:$0xff]
    %v46 = vld [vmem:[%s2 + $0x10] sm:$0x1f]
    %v47 = vld [vmem:[%s3] sm:$0xff]
    %v48 = vld [vmem:[%s3 + $0x8] sm:$0xff]
    %v49 = vld [vmem:[%s3 + $0x10] sm:$0x3]
    %v50 = vld [vmem:[%s4] sm:$0xff]
    %v51 = vld [vmem:[%s4 + $0x8] sm:$0xff]
    %v52 = vld [vmem:[%s4 + $0x10] sm:$0xff]
    %v53 = vld [vmem:[%s4 + $0x18] sm:$0xff]
    %v54 = vld [vmem:[%s4 + $0x20] sm:$0x1]
    %v55 = vld [vmem:[#allocation2] sm:$0xff]
    %v56 = vld [vmem:[#allocation2 + $0x8] sm:$0xff]
    %v57 = vperm.slane %v43, 0
    %vm58 = vcmask 130048
    %v60 = vsel %vm58, %v55, 0
    %v63 = vsel %vm58, %v56, 0
    %65 = vmatpush.msra.mxu0 0.0
    %66 = vmatpush.msra.mxu0 0.0
    %67 = vmatpush.msra.mxu0 0.0
    %68 = vmatpush.msra.mxu0 0.0
    %69 = vmatpush.msra.mxu0 0.0
    %70 = vmatpush.msra.mxu0 0.0
    %71 = vmatpush.msra.mxu0 0.0
    %72 = vmatpush.msra.mxu0 0.0
    %73 = vmatpush.msra.mxu0 0.0
    %74 = vmatpush.msra.mxu0 0.0
    %75 = vmatpush.msra.mxu0 0.0
    %76 = vmatpush.msra.mxu0 0.0
    %77 = vmatpush.msra.mxu0 0.0
    %78 = vmatpush.msra.mxu0 0.0
    %79 = vmatpush.msra.mxu0 %v38
    %80 = vmatpush.msra.mxu0 %v37
    %81 = vmatmul.f32.gmra.mxu0 %v60
    %v82 = vpop.f32.mrf.mxu0
    %v83 = vadd.f32 %v57, %v82
    %84 = vmatmul.f32.gmra.mxu0 %v63
    %v85 = vpop.f32.mrf.mxu0
    %v86 = vadd.f32 %v57, %v85
    %87 = vdwg.mxu0
    %v88 = vperm.slane %v43, 1
    %vm89 = vcmask 261120
    %v91 = vsel %vm89, 0.0, 0
    %93 = vmatpush.msra.mxu0 0.0
    %94 = vmatpush.msra.mxu0 0.0
    %95 = vmatpush.msra.mxu0 0.0
    %96 = vmatpush.msra.mxu0 0.0
    %97 = vmatpush.msra.mxu0 0.0
    %98 = vmatpush.msra.mxu0 0.0
    %99 = vmatpush.msra.mxu0 0.0
    %100 = vmatpush.msra.mxu0 0.0
    %101 = vmatpush.msra.mxu0 0.0
    %102 = vmatpush.msra.mxu0 0.0
    %103 = vmatpush.msra.mxu0 0.0
    %104 = vmatpush.msra.mxu0 0.0
    %105 = vmatpush.msra.mxu0 %v42
    %106 = vmatpush.msra.mxu0 %v41
    %107 = vmatpush.msra.mxu0 %v40
    %108 = vmatpush.msra.mxu0 %v39
    %109 = vmatmul.f32.gmra.mxu0 %v91
    %v110 = vpop.f32.mrf.mxu0
    %v111 = vadd.f32 %v88, %v110
    %112 = vdwg.mxu0
    %v113 = vadd.f32 %v83, %v111
    %v114 = vxor.u32 %v113, 2147483648
    %v115 = vmul.f32 %v114, 1.442695
    %v116 = vpow.pop %v115
    %v117 = vadd.f32 %v116, 1.0
    %v118 = vrcp.pop %v117
    %v119 = vmul.f32 %v117, %v118
    %v120 = vsub.f32 1.0, %v119
    %v121 = vmul.f32 %v118, %v120
    %v122 = vadd.f32 %v118, %v121
    %vm123 = vweird.f32 %v117
    %vm124 = vweird.f32 %v118
    %vm125 = vmor %vm123, %vm124
    %v126 = vsel %vm125, %v118, %v122
    %v127 = vand.u32 2147483647, %v117
    %vm128 = vcmp.eq.f32.partialorder %v127, 8.507059e+37
    %v129 = vand.u32 %v117, 2147483648
    %v130 = vor.u32 1.1754944e-38, %v129
    %v131 = vsel %vm128, %v130, %v126
    %v132 = vmul.f32 1.0, %v131
    %134 = vrot.lane.b32.xlu0 %v111, 32
    %v135 = vpop.permute.xlu0 %134
    %v137 = vmul.f32 %v132, %v135
    %139 = vrot.lane.b32.xlu0 %v137, 96
    %v140 = vpop.permute.xlu0 %139
    %v142 = vadd.f32 %v83, %v140
    %v143 = vtanh.pop %v142
    %v144 = vsub.f32 1.0, %v132
    %146 = vrot.lane.b32.xlu0 %v143, 64
    %v147 = vpop.permute.xlu0 %146
    %v149 = vmul.f32 %v144, %v147
    %v150 = vmul.f32 %v132, 0.0
    %v151 = vadd.f32 %v149, %v150
    %153 = vrot.lane.b32.xlu0 %v151, 64
    %v154 = vpop.permute.xlu0 %153
    %v155 = vsel %vm89, %v154, 0
    %157 = vmatpush.msra.mxu0 0.0
    %158 = vmatpush.msra.mxu0 0.0
    %159 = vmatpush.msra.mxu0 0.0
    %160 = vmatpush.msra.mxu0 0.0
    %161 = vmatpush.msra.mxu0 0.0
    %162 = vmatpush.msra.mxu0 0.0
    %163 = vmatpush.msra.mxu0 0.0
    %164 = vmatpush.msra.mxu0 0.0
    %165 = vmatpush.msra.mxu0 0.0
    %166 = vmatpush.msra.mxu0 0.0
    %167 = vmatpush.msra.mxu0 0.0
    %168 = vmatpush.msra.mxu0 0.0
    %169 = vmatpush.msra.mxu0 %v42
    %170 = vmatpush.msra.mxu0 %v41
    %171 = vmatpush.msra.mxu0 %v40
    %172 = vmatpush.msra.mxu0 %v39
    %173 = vmatmul.f32.gmra.mxu0 %v155
    %v174 = vpop.f32.mrf.mxu0
    %v175 = vadd.f32 %v88, %v174
    %176 = vdwg.mxu0
    %v178 = vrot.slane %v175, 6
    %v180 = vadd.f32 %v83, %v178
    %v181 = vxor.u32 %v180, 2147483648
    %v182 = vmul.f32 %v181, 1.442695
    %v183 = vpow.pop %v182
    %v184 = vadd.f32 %v183, 1.0
    %v185 = vrcp.pop %v184
    %v186 = vmul.f32 %v184, %v185
    %v187 = vsub.f32 1.0, %v186
    %v188 = vmul.f32 %v185, %v187
    %v189 = vadd.f32 %v185, %v188
    %vm190 = vweird.f32 %v184
    %vm191 = vweird.f32 %v185
    %vm192 = vmor %vm190, %vm191
    %v193 = vsel %vm192, %v185, %v189
    %v194 = vand.u32 2147483647, %v184
    %vm195 = vcmp.eq.f32.partialorder %v194, 8.507059e+37
    %v196 = vand.u32 %v184, 2147483648
    %v197 = vor.u32 1.1754944e-38, %v196
    %v198 = vsel %vm195, %v197, %v193
    %v199 = vmul.f32 1.0, %v198
    %200 = vrot.lane.b32.xlu0 %v178, 32
    %v201 = vpop.permute.xlu0 %200
    %v203 = vmul.f32 %v199, %v201
    %205 = vrot.lane.b32.xlu0 %v203, 96
    %v206 = vpop.permute.xlu0 %205
    %v208 = vadd.f32 %v83, %v206
    %v209 = vtanh.pop %v208
    %v210 = vsub.f32 1.0, %v199
    %212 = vrot.lane.b32.xlu0 %v209, 64
    %v213 = vpop.permute.xlu0 %212
    %v215 = vmul.f32 %v210, %v213
    %v216 = vrot.slane %v151, 6
    %v218 = vmul.f32 %v199, %v216
    %v219 = vadd.f32 %v215, %v218
    %v221 = vrot.slane %v219, 2
    %222 = vrot.lane.b32.xlu0 %v221, 64
    %v223 = vpop.permute.xlu0 %222
    %v224 = vsel %vm89, %v223, 0
    %226 = vmatpush.msra.mxu0 0.0
    %227 = vmatpush.msra.mxu0 0.0
    %228 = vmatpush.msra.mxu0 0.0
    %229 = vmatpush.msra.mxu0 0.0
    %230 = vmatpush.msra.mxu0 0.0
    %231 = vmatpush.msra.mxu0 0.0
    %232 = vmatpush.msra.mxu0 0.0
    %233 = vmatpush.msra.mxu0 0.0
    %234 = vmatpush.msra.mxu0 0.0
    %235 = vmatpush.msra.mxu0 0.0
    %236 = vmatpush.msra.mxu0 0.0
    %237 = vmatpush.msra.mxu0 0.0
    %238 = vmatpush.msra.mxu0 %v42
    %239 = vmatpush.msra.mxu0 %v41
    %240 = vmatpush.msra.mxu0 %v40
    %241 = vmatpush.msra.mxu0 %v39
    %242 = vmatmul.f32.gmra.mxu0 %v224
    %v243 = vpop.f32.mrf.mxu0
    %v244 = vadd.f32 %v88, %v243
    %245 = vdwg.mxu0
    %v247 = vrot.slane %v244, 4
    %v249 = vadd.f32 %v83, %v247
    %v250 = vxor.u32 %v249, 2147483648
    %v251 = vmul.f32 %v250, 1.442695
    %v252 = vpow.pop %v251
    %v253 = vadd.f32 %v252, 1.0
    %v254 = vrcp.pop %v253
    %v255 = vmul.f32 %v253, %v254
    %v256 = vsub.f32 1.0, %v255
    %v257 = vmul.f32 %v254, %v256
    %v258 = vadd.f32 %v254, %v257
    %vm259 = vweird.f32 %v253
    %vm260 = vweird.f32 %v254
    %vm261 = vmor %vm259, %vm260
    %v262 = vsel %vm261, %v254, %v258
    %v263 = vand.u32 2147483647, %v253
    %vm264 = vcmp.eq.f32.partialorder %v263, 8.507059e+37
    %v265 = vand.u32 %v253, 2147483648
    %v266 = vor.u32 1.1754944e-38, %v265
    %v267 = vsel %vm264, %v266, %v262
    %v268 = vmul.f32 1.0, %v267
    %269 = vrot.lane.b32.xlu0 %v247, 32
    %v270 = vpop.permute.xlu0 %269
    %v272 = vmul.f32 %v268, %v270
    %274 = vrot.lane.b32.xlu0 %v272, 96
    %v275 = vpop.permute.xlu0 %274
    %v277 = vadd.f32 %v83, %v275
    %v278 = vtanh.pop %v277
    %v279 = vsub.f32 1.0, %v268
    %281 = vrot.lane.b32.xlu0 %v278, 64
    %v282 = vpop.permute.xlu0 %281
    %v284 = vmul.f32 %v279, %v282
    %v285 = vrot.slane %v219, 6
    %v287 = vmul.f32 %v268, %v285
    %v288 = vadd.f32 %v284, %v287
    %v290 = vrot.slane %v288, 4
    %291 = vrot.lane.b32.xlu0 %v290, 64
    %v292 = vpop.permute.xlu0 %291
    %v293 = vsel %vm89, %v292, 0
    %295 = vmatpush.msra.mxu0 0.0
    %296 = vmatpush.msra.mxu0 0.0
    %297 = vmatpush.msra.mxu0 0.0
    %298 = vmatpush.msra.mxu0 0.0
    %299 = vmatpush.msra.mxu0 0.0
    %300 = vmatpush.msra.mxu0 0.0
    %301 = vmatpush.msra.mxu0 0.0
    %302 = vmatpush.msra.mxu0 0.0
    %303 = vmatpush.msra.mxu0 0.0
    %304 = vmatpush.msra.mxu0 0.0
    %305 = vmatpush.msra.mxu0 0.0
    %306 = vmatpush.msra.mxu0 0.0
    %307 = vmatpush.msra.mxu0 %v42
    %308 = vmatpush.msra.mxu0 %v41
    %309 = vmatpush.msra.mxu0 %v40
    %310 = vmatpush.msra.mxu0 %v39
    %311 = vmatmul.f32.gmra.mxu0 %v293
    %v312 = vpop.f32.mrf.mxu0
    %v313 = vadd.f32 %v88, %v312
    %314 = vdwg.mxu0
    %v316 = vrot.slane %v313, 2
    %v318 = vadd.f32 %v83, %v316
    %v319 = vxor.u32 %v318, 2147483648
    %v320 = vmul.f32 %v319, 1.442695
    %v321 = vpow.pop %v320
    %v322 = vadd.f32 %v321, 1.0
    %v323 = vrcp.pop %v322
    %v324 = vmul.f32 %v322, %v323
    %v325 = vsub.f32 1.0, %v324
    %v326 = vmul.f32 %v323, %v325
    %v327 = vadd.f32 %v323, %v326
    %vm328 = vweird.f32 %v322
    %vm329 = vweird.f32 %v323
    %vm330 = vmor %vm328, %vm329
    %v331 = vsel %vm330, %v323, %v327
    %v332 = vand.u32 2147483647, %v322
    %vm333 = vcmp.eq.f32.partialorder %v332, 8.507059e+37
    %v334 = vand.u32 %v322, 2147483648
    %v335 = vor.u32 1.1754944e-38, %v334
    %v336 = vsel %vm333, %v335, %v331
    %v337 = vmul.f32 1.0, %v336
    %338 = vrot.lane.b32.xlu0 %v316, 32
    %v339 = vpop.permute.xlu0 %338
    %v341 = vmul.f32 %v337, %v339
    %343 = vrot.lane.b32.xlu0 %v341, 96
    %v344 = vpop.permute.xlu0 %343
    %v346 = vadd.f32 %v83, %v344
    %v347 = vtanh.pop %v346
    %v348 = vsub.f32 1.0, %v337
    %350 = vrot.lane.b32.xlu0 %v347, 64
    %v351 = vpop.permute.xlu0 %350
    %v353 = vmul.f32 %v348, %v351
    %v354 = vrot.slane %v288, 6
    %v356 = vmul.f32 %v337, %v354
    %v357 = vadd.f32 %v353, %v356
    %v359 = vrot.slane %v357, 6
    %360 = vrot.lane.b32.xlu0 %v359, 64
    %v361 = vpop.permute.xlu0 %360
    %v362 = vsel %vm89, %v361, 0
    %364 = vmatpush.msra.mxu0 0.0
    %365 = vmatpush.msra.mxu0 0.0
    %366 = vmatpush.msra.mxu0 0.0
    %367 = vmatpush.msra.mxu0 0.0
    %368 = vmatpush.msra.mxu0 0.0
    %369 = vmatpush.msra.mxu0 0.0
    %370 = vmatpush.msra.mxu0 0.0
    %371 = vmatpush.msra.mxu0 0.0
    %372 = vmatpush.msra.mxu0 0.0
    %373 = vmatpush.msra.mxu0 0.0
    %374 = vmatpush.msra.mxu0 0.0
    %375 = vmatpush.msra.mxu0 0.0
    %376 = vmatpush.msra.mxu0 %v42
    %377 = vmatpush.msra.mxu0 %v41
    %378 = vmatpush.msra.mxu0 %v40
    %379 = vmatpush.msra.mxu0 %v39
    %380 = vmatmul.f32.gmra.mxu0 %v362
    %v381 = vpop.f32.mrf.mxu0
    %v382 = vadd.f32 %v88, %v381
    %383 = vdwg.mxu0
    %v384 = vadd.f32 %v86, %v382
    %v385 = vxor.u32 %v384, 2147483648
    %v386 = vmul.f32 %v385, 1.442695
    %v387 = vpow.pop %v386
    %v388 = vadd.f32 %v387, 1.0
    %v389 = vrcp.pop %v388
    %v390 = vmul.f32 %v388, %v389
    %v391 = vsub.f32 1.0, %v390
    %v392 = vmul.f32 %v389, %v391
    %v393 = vadd.f32 %v389, %v392
    %vm394 = vweird.f32 %v388
    %vm395 = vweird.f32 %v389
    %vm396 = vmor %vm394, %vm395
    %v397 = vsel %vm396, %v389, %v393
    %v398 = vand.u32 2147483647, %v388
    %vm399 = vcmp.eq.f32.partialorder %v398, 8.507059e+37
    %v400 = vand.u32 %v388, 2147483648
    %v401 = vor.u32 1.1754944e-38, %v400
    %v402 = vsel %vm399, %v401, %v397
    %v403 = vmul.f32 1.0, %v402
    %405 = vrot.lane.b32.xlu0 %v382, 32
    %v406 = vpop.permute.xlu0 %405
    %v408 = vmul.f32 %v403, %v406
    %410 = vrot.lane.b32.xlu0 %v408, 96
    %v411 = vpop.permute.xlu0 %410
    %v413 = vadd.f32 %v86, %v411
    %v414 = vtanh.pop %v413
    %v415 = vsub.f32 1.0, %v403
    %417 = vrot.lane.b32.xlu0 %v414, 64
    %v418 = vpop.permute.xlu0 %417
    %v420 = vmul.f32 %v415, %v418
    %v422 = vmul.f32 %v403, %v359
    %v423 = vadd.f32 %v420, %v422
    %425 = vrot.lane.b32.xlu0 %v423, 64
    %v426 = vpop.permute.xlu0 %425
    %v427 = vsel %vm89, %v426, 0
    %429 = vmatpush.msra.mxu0 0.0
    %430 = vmatpush.msra.mxu0 0.0
    %431 = vmatpush.msra.mxu0 0.0
    %432 = vmatpush.msra.mxu0 0.0
    %433 = vmatpush.msra.mxu0 0.0
    %434 = vmatpush.msra.mxu0 0.0
    %435 = vmatpush.msra.mxu0 0.0
    %436 = vmatpush.msra.mxu0 0.0
    %437 = vmatpush.msra.mxu0 0.0
    %438 = vmatpush.msra.mxu0 0.0
    %439 = vmatpush.msra.mxu0 0.0
    %440 = vmatpush.msra.mxu0 0.0
    %441 = vmatpush.msra.mxu0 %v42
    %442 = vmatpush.msra.mxu0 %v41
    %443 = vmatpush.msra.mxu0 %v40
    %444 = vmatpush.msra.mxu0 %v39
    %445 = vmatmul.f32.gmra.mxu0 %v427
    %v446 = vpop.f32.mrf.mxu0
    %v447 = vadd.f32 %v88, %v446
    %448 = vdwg.mxu0
    %v450 = vrot.slane %v447, 6
    %v452 = vadd.f32 %v86, %v450
    %v453 = vxor.u32 %v452, 2147483648
    %v454 = vmul.f32 %v453, 1.442695
    %v455 = vpow.pop %v454
    %v456 = vadd.f32 %v455, 1.0
    %v457 = vrcp.pop %v456
    %v458 = vmul.f32 %v456, %v457
    %v459 = vsub.f32 1.0, %v458
    %v460 = vmul.f32 %v457, %v459
    %v461 = vadd.f32 %v457, %v460
    %vm462 = vweird.f32 %v456
    %vm463 = vweird.f32 %v457
    %vm464 = vmor %vm462, %vm463
    %v465 = vsel %vm464, %v457, %v461
    %v466 = vand.u32 2147483647, %v456
    %vm467 = vcmp.eq.f32.partialorder %v466, 8.507059e+37
    %v468 = vand.u32 %v456, 2147483648
    %v469 = vor.u32 1.1754944e-38, %v468
    %v470 = vsel %vm467, %v469, %v465
    %v471 = vmul.f32 1.0, %v470
    %472 = vrot.lane.b32.xlu0 %v450, 32
    %v473 = vpop.permute.xlu0 %472
    %v475 = vmul.f32 %v471, %v473
    %477 = vrot.lane.b32.xlu0 %v475, 96
    %v478 = vpop.permute.xlu0 %477
    %v480 = vadd.f32 %v86, %v478
    %v481 = vtanh.pop %v480
    %v482 = vsub.f32 1.0, %v471
    %484 = vrot.lane.b32.xlu0 %v481, 64
    %v485 = vpop.permute.xlu0 %484
    %v487 = vmul.f32 %v482, %v485
    %v488 = vrot.slane %v423, 6
    %v490 = vmul.f32 %v471, %v488
    %v491 = vadd.f32 %v487, %v490
    %v493 = vrot.slane %v491, 2
    %494 = vrot.lane.b32.xlu0 %v493, 64
    %v495 = vpop.permute.xlu0 %494
    %v496 = vsel %vm89, %v495, 0
    %498 = vmatpush.msra.mxu0 0.0
    %499 = vmatpush.msra.mxu0 0.0
    %500 = vmatpush.msra.mxu0 0.0
    %501 = vmatpush.msra.mxu0 0.0
    %502 = vmatpush.msra.mxu0 0.0
    %503 = vmatpush.msra.mxu0 0.0
    %504 = vmatpush.msra.mxu0 0.0
    %505 = vmatpush.msra.mxu0 0.0
    %506 = vmatpush.msra.mxu0 0.0
    %507 = vmatpush.msra.mxu0 0.0
    %508 = vmatpush.msra.mxu0 0.0
    %509 = vmatpush.msra.mxu0 0.0
    %510 = vmatpush.msra.mxu0 %v42
    %511 = vmatpush.msra.mxu0 %v41
    %512 = vmatpush.msra.mxu0 %v40
    %513 = vmatpush.msra.mxu0 %v39
    %514 = vmatmul.f32.gmra.mxu0 %v496
    %v515 = vpop.f32.mrf.mxu0
    %v516 = vadd.f32 %v88, %v515
    %517 = vdwg.mxu0
    %v519 = vrot.slane %v516, 4
    %v521 = vadd.f32 %v86, %v519
    %v522 = vxor.u32 %v521, 2147483648
    %v523 = vmul.f32 %v522, 1.442695
    %v524 = vpow.pop %v523
    %v525 = vadd.f32 %v524, 1.0
    %v526 = vrcp.pop %v525
    %v527 = vmul.f32 %v525, %v526
    %v528 = vsub.f32 1.0, %v527
    %v529 = vmul.f32 %v526, %v528
    %v530 = vadd.f32 %v526, %v529
    %vm531 = vweird.f32 %v525
    %vm532 = vweird.f32 %v526
    %vm533 = vmor %vm531, %vm532
    %v534 = vsel %vm533, %v526, %v530
    %v535 = vand.u32 2147483647, %v525
    %vm536 = vcmp.eq.f32.partialorder %v535, 8.507059e+37
    %v537 = vand.u32 %v525, 2147483648
    %v538 = vor.u32 1.1754944e-38, %v537
    %v539 = vsel %vm536, %v538, %v534
    %v540 = vmul.f32 1.0, %v539
    %541 = vrot.lane.b32.xlu0 %v519, 32
    %v542 = vpop.permute.xlu0 %541
    %v544 = vmul.f32 %v540, %v542
    %546 = vrot.lane.b32.xlu0 %v544, 96
    %v547 = vpop.permute.xlu0 %546
    %v549 = vadd.f32 %v86, %v547
    %v550 = vtanh.pop %v549
    %v551 = vsub.f32 1.0, %v540
    %553 = vrot.lane.b32.xlu0 %v550, 64
    %v554 = vpop.permute.xlu0 %553
    %v556 = vmul.f32 %v551, %v554
    %v557 = vrot.slane %v491, 6
    %v559 = vmul.f32 %v540, %v557
    %v560 = vadd.f32 %v556, %v559
    %v562 = vrot.slane %v560, 4
    %563 = vrot.lane.b32.xlu0 %v562, 64
    %v564 = vpop.permute.xlu0 %563
    %v565 = vsel %vm89, %v564, 0
    %567 = vmatpush.msra.mxu0 0.0
    %568 = vmatpush.msra.mxu0 0.0
    %569 = vmatpush.msra.mxu0 0.0
    %570 = vmatpush.msra.mxu0 0.0
    %571 = vmatpush.msra.mxu0 0.0
    %572 = vmatpush.msra.mxu0 0.0
    %573 = vmatpush.msra.mxu0 0.0
    %574 = vmatpush.msra.mxu0 0.0
    %575 = vmatpush.msra.mxu0 0.0
    %576 = vmatpush.msra.mxu0 0.0
    %577 = vmatpush.msra.mxu0 0.0
    %578 = vmatpush.msra.mxu0 0.0
    %579 = vmatpush.msra.mxu0 %v42
    %580 = vmatpush.msra.mxu0 %v41
    %581 = vmatpush.msra.mxu0 %v40
    %582 = vmatpush.msra.mxu0 %v39
    %583 = vmatmul.f32.gmra.mxu0 %v565
    %v584 = vpop.f32.mrf.mxu0
    %v585 = vadd.f32 %v88, %v584
    %586 = vdwg.mxu0
    %v588 = vrot.slane %v585, 2
    %v590 = vadd.f32 %v86, %v588
    %v591 = vxor.u32 %v590, 2147483648
    %v592 = vmul.f32 %v591, 1.442695
    %v593 = vpow.pop %v592
    %v594 = vadd.f32 %v593, 1.0
    %v595 = vrcp.pop %v594
    %v596 = vmul.f32 %v594, %v595
    %v597 = vsub.f32 1.0, %v596
    %v598 = vmul.f32 %v595, %v597
    %v599 = vadd.f32 %v595, %v598
    %vm600 = vweird.f32 %v594
    %vm601 = vweird.f32 %v595
    %vm602 = vmor %vm600, %vm601
    %v603 = vsel %vm602, %v595, %v599
    %v604 = vand.u32 2147483647, %v594
    %vm605 = vcmp.eq.f32.partialorder %v604, 8.507059e+37
    %v606 = vand.u32 %v594, 2147483648
    %v607 = vor.u32 1.1754944e-38, %v606
    %v608 = vsel %vm605, %v607, %v603
    %v609 = vmul.f32 1.0, %v608
    %610 = vrot.lane.b32.xlu0 %v588, 32
    %v611 = vpop.permute.xlu0 %610
    %v613 = vmul.f32 %v609, %v611
    %615 = vrot.lane.b32.xlu0 %v613, 96
    %v616 = vpop.permute.xlu0 %615
    %v618 = vadd.f32 %v86, %v616
    %v619 = vtanh.pop %v618
    %v620 = vsub.f32 1.0, %v609
    %622 = vrot.lane.b32.xlu0 %v619, 64
    %v623 = vpop.permute.xlu0 %622
    %v625 = vmul.f32 %v620, %v623
    %v626 = vrot.slane %v560, 6
    %v628 = vmul.f32 %v609, %v626
    %v629 = vadd.f32 %v625, %v628
    %v630 = vperm.slane %v46, 0
    %v631 = vrot.slane %v56, 4
    %v632 = vsel %vm58, %v631, 0
    %634 = vmatpush.msra.mxu0 0.0
    %635 = vmatpush.msra.mxu0 0.0
    %636 = vmatpush.msra.mxu0 0.0
    %637 = vmatpush.msra.mxu0 0.0
    %638 = vmatpush.msra.mxu0 0.0
    %639 = vmatpush.msra.mxu0 0.0
    %640 = vmatpush.msra.mxu0 0.0
    %641 = vmatpush.msra.mxu0 0.0
    %642 = vmatpush.msra.mxu0 0.0
    %643 = vmatpush.msra.mxu0 0.0
    %644 = vmatpush.msra.mxu0 0.0
    %645 = vmatpush.msra.mxu0 0.0
    %646 = vmatpush.msra.mxu0 0.0
    %647 = vmatpush.msra.mxu0 0.0
    %648 = vmatpush.msra.mxu0 %v45
    %649 = vmatpush.msra.mxu0 %v44
    %650 = vmatmul.f32.gmra.mxu0 %v632
    %v651 = vpop.f32.mrf.mxu0
    %v652 = vadd.f32 %v630, %v651
    %653 = vdwg.mxu0
    %v655 = vrot.slane %v629, 6
    %v658 = vrot.slane %v652, 6
    %659 = vrot.lane.b32.xlu0 %v658, 64
    %v660 = vpop.permute.xlu0 %659
    %vm662 = vcmask 1041408
    %v663 = vsel %vm662, %v655, %v660
    %vm664 = vcmask 1043456
    %v665 = vsel %vm664, %v663, %v660
    %vm666 = vcmask 1045504
    %v667 = vsel %vm666, %v665, %v629
    %669 = vset.pattern.permute.xlu0 8
    %670 = vperm.xlu0 %669, %v47
    %v671 = vpop.permute.xlu0 %670
    %674 = vrot.lane.b32.xlu0 %v667, 64
    %v675 = vpop.permute.xlu0 %674
    %vm677 = vcmask 64512
    %v678 = vsel %vm677, %v47, 0
    %680 = vmatpush.msra.mxu0 0.0
    %681 = vmatpush.msra.mxu0 0.0
    %682 = vmatpush.msra.mxu0 0.0
    %683 = vmatpush.msra.mxu0 0.0
    %684 = vmatpush.msra.mxu0 0.0
    %685 = vmatpush.msra.mxu0 0.0
    %686 = vmatpush.msra.mxu0 0.0
    %687 = vmatpush.msra.mxu0 0.0
    %688 = vmatpush.msra.mxu0 0.0
    %689 = vmatpush.msra.mxu0 0.0
    %690 = vmatpush.msra.mxu0 0.0
    %691 = vmatpush.msra.mxu0 0.0
    %692 = vmatpush.msra.mxu0 0.0
    %693 = vmatpush.msra.mxu0 0.0
    %694 = vmatpush.msra.mxu0 0.0
    %695 = vmatpush.msra.mxu0 %v675
    %696 = vmatmul.f32.gmra.mxu0 %v678
    %v697 = vpop.f32.mrf.mxu0
    %v698 = vadd.f32 %v671, %v697
    %699 = vdwg.mxu0
    %v700 = vsel %vm89, %v698, 0.0
    %701 = vadd.xlane.f32.xlu0 %v700
    %v702 = vpop.xlane.xlu0 %701
    %v703 = vrcp.pop 32.0
    %v704 = vmul.f32 32.0, %v703
    %v705 = vsub.f32 1.0, %v704
    %v706 = vmul.f32 %v703, %v705
    %v707 = vadd.f32 %v703, %v706
    %vm708 = vweird.f32 %v703
    %v709 = vsel %vm708, %v703, %v707
    %v710 = vmul.f32 %v702, %v709
    %v711 = vsub.f32 %v698, %v710
    %v712 = vmul.f32 %v711, %v711
    %v713 = vsel %vm89, %v712, 0.0
    %714 = vadd.xlane.f32.xlu0 %v713
    %v715 = vpop.xlane.xlu0 %714
    %v716 = vmul.f32 %v715, %v709
    %v717 = vadd.f32 %v716, 1e-05
    %v718 = vrsqrt.pop %v717
    %v719 = vmul.f32 %v718, %v717
    %v720 = vmul.f32 %v719, %v718
    %v721 = vmul.f32 0.5, %v720
    %v722 = vsub.f32 1.5, %v721
    %v723 = vmul.f32 %v718, %v722
    %vm724 = vweird.f32 %v717
    %vm725 = vweird.f32 %v718
    %vm726 = vmor %vm724, %vm725
    %v727 = vsel %vm726, %v718, %v723
    %v728 = vmul.f32 %v711, %v727
    %v729 = vperm.slane %v46, 1
    %v730 = vmul.f32 %v728, %v729
    %732 = vrot.lane.b32.xlu0 %v730, 64
    %v733 = vpop.permute.xlu0 %732
    %v735 = vadd.f32 %v667, %v733
    %v736 = vperm.slane %v46, 3
    %738 = vrot.lane.b32.xlu0 %v736, 64
    %v739 = vpop.permute.xlu0 %738
    %v741 = vadd.f32 %v735, %v739
    %743 = vset.pattern.permute.xlu0 8
    %744 = vperm.xlu0 %743, %v48
    %v745 = vpop.permute.xlu0 %744
    %748 = vrot.lane.b32.xlu0 %v741, 64
    %v749 = vpop.permute.xlu0 %748
    %v751 = vsel %vm677, %v48, 0
    %753 = vmatpush.msra.mxu0 0.0
    %754 = vmatpush.msra.mxu0 0.0
    %755 = vmatpush.msra.mxu0 0.0
    %756 = vmatpush.msra.mxu0 0.0
    %757 = vmatpush.msra.mxu0 0.0
    %758 = vmatpush.msra.mxu0 0.0
    %759 = vmatpush.msra.mxu0 0.0
    %760 = vmatpush.msra.mxu0 0.0
    %761 = vmatpush.msra.mxu0 0.0
    %762 = vmatpush.msra.mxu0 0.0
    %763 = vmatpush.msra.mxu0 0.0
    %764 = vmatpush.msra.mxu0 0.0
    %765 = vmatpush.msra.mxu0 0.0
    %766 = vmatpush.msra.mxu0 0.0
    %767 = vmatpush.msra.mxu0 0.0
    %768 = vmatpush.msra.mxu0 %v749
    %769 = vmatmul.f32.gmra.mxu0 %v751
    %v770 = vpop.f32.mrf.mxu0
    %v771 = vadd.f32 %v745, %v770
    %772 = vdwg.mxu0
    %v773 = vsel %vm89, %v771, 0.0
    %774 = vadd.xlane.f32.xlu0 %v773
    %v775 = vpop.xlane.xlu0 %774
    %v776 = vmul.f32 %v775, %v709
    %v777 = vsub.f32 %v771, %v776
    %v778 = vmul.f32 %v777, %v777
    %v779 = vsel %vm89, %v778, 0.0
    %780 = vadd.xlane.f32.xlu0 %v779
    %v781 = vpop.xlane.xlu0 %780
    %v782 = vmul.f32 %v781, %v709
    %v783 = vadd.f32 %v782, 1e-05
    %v784 = vrsqrt.pop %v783
    %v785 = vmul.f32 %v784, %v783
    %v786 = vmul.f32 %v785, %v784
    %v787 = vmul.f32 0.5, %v786
    %v788 = vsub.f32 1.5, %v787
    %v789 = vmul.f32 %v784, %v788
    %vm790 = vweird.f32 %v783
    %vm791 = vweird.f32 %v784
    %vm792 = vmor %vm790, %vm791
    %v793 = vsel %vm792, %v784, %v789
    %v794 = vmul.f32 %v777, %v793
    %v795 = vperm.slane %v46, 2
    %v796 = vmul.f32 %v794, %v795
    %798 = vrot.lane.b32.xlu0 %v796, 64
    %v799 = vpop.permute.xlu0 %798
    %v801 = vadd.f32 %v741, %v799
    %v802 = vperm.slane %v46, 4
    %804 = vrot.lane.b32.xlu0 %v802, 64
    %v805 = vpop.permute.xlu0 %804
    %v807 = vadd.f32 %v801, %v805
    %809 = vrot.lane.b32.xlu0 %v807, 64
    %v810 = vpop.permute.xlu0 %809
    %v813 = vsel %vm677, %v49, 0
    %815 = vmatpush.msra.mxu0 0.0
    %816 = vmatpush.msra.mxu0 0.0
    %817 = vmatpush.msra.mxu0 0.0
    %818 = vmatpush.msra.mxu0 0.0
    %819 = vmatpush.msra.mxu0 0.0
    %820 = vmatpush.msra.mxu0 0.0
    %821 = vmatpush.msra.mxu0 0.0
    %822 = vmatpush.msra.mxu0 0.0
    %823 = vmatpush.msra.mxu0 0.0
    %824 = vmatpush.msra.mxu0 0.0
    %825 = vmatpush.msra.mxu0 0.0
    %826 = vmatpush.msra.mxu0 0.0
    %827 = vmatpush.msra.mxu0 0.0
    %828 = vmatpush.msra.mxu0 0.0
    %829 = vmatpush.msra.mxu0 0.0
    %830 = vmatpush.msra.mxu0 %v810
    %831 = vmatmul.f32.gmra.mxu0 %v813
    %v832 = vpop.f32.mrf.mxu0
    %v833 = vadd.f32 0.0, %v832
    %834 = vdwg.mxu0
    %v835 = vperm.slane %v54, 0
    %v837 = vsel %vm89, %v833, 0
    %839 = vmatpush.msra.mxu0 0.0
    %840 = vmatpush.msra.mxu0 0.0
    %841 = vmatpush.msra.mxu0 0.0
    %842 = vmatpush.msra.mxu0 0.0
    %843 = vmatpush.msra.mxu0 0.0
    %844 = vmatpush.msra.mxu0 0.0
    %845 = vmatpush.msra.mxu0 0.0
    %846 = vmatpush.msra.mxu0 0.0
    %847 = vmatpush.msra.mxu0 0.0
    %848 = vmatpush.msra.mxu0 0.0
    %849 = vmatpush.msra.mxu0 0.0
    %850 = vmatpush.msra.mxu0 0.0
    %851 = vmatpush.msra.mxu0 %v53
    %852 = vmatpush.msra.mxu0 %v52
    %853 = vmatpush.msra.mxu0 %v51
    %854 = vmatpush.msra.mxu0 %v50
    %855 = vmatmul.f32.gmra.mxu0 %v837
    %v856 = vpop.f32.mrf.mxu0
    %v857 = vadd.f32 %v835, %v856
    %858 = vdwg.mxu0
    %v860 = vsel %vm58, %v857, 0
    %862 = vmatpush.msra.mxu0 0.0
    %863 = vmatpush.msra.mxu0 0.0
    %864 = vmatpush.msra.mxu0 0.0
    %865 = vmatpush.msra.mxu0 0.0
    %866 = vmatpush.msra.mxu0 0.0
    %867 = vmatpush.msra.mxu0 0.0
    %868 = vmatpush.msra.mxu0 0.0
    %869 = vmatpush.msra.mxu0 0.0
    %870 = vmatpush.msra.mxu0 0.0
    %871 = vmatpush.msra.mxu0 0.0
    %872 = vmatpush.msra.mxu0 0.0
    %873 = vmatpush.msra.mxu0 0.0
    %874 = vmatpush.msra.mxu0 0.0
    %875 = vmatpush.msra.mxu0 0.0
    %876 = vmatpush.msra.mxu0 %v45
    %877 = vmatpush.msra.mxu0 %v44
    %878 = vmatmul.f32.gmra.mxu0 %v860
    %v879 = vpop.f32.mrf.mxu0
    %v880 = vadd.f32 %v630, %v879
    %881 = vdwg.mxu0
    %882 = vmatpush.msra.mxu0 0.0
    %883 = vmatpush.msra.mxu0 0.0
    %884 = vmatpush.msra.mxu0 0.0
    %885 = vmatpush.msra.mxu0 0.0
    %886 = vmatpush.msra.mxu0 0.0
    %887 = vmatpush.msra.mxu0 0.0
    %888 = vmatpush.msra.mxu0 0.0
    %889 = vmatpush.msra.mxu0 0.0
    %890 = vmatpush.msra.mxu0 0.0
    %891 = vmatpush.msra.mxu0 0.0
    %892 = vmatpush.msra.mxu0 0.0
    %893 = vmatpush.msra.mxu0 0.0
    %894 = vmatpush.msra.mxu0 0.0
    %895 = vmatpush.msra.mxu0 0.0
    %896 = vmatpush.msra.mxu0 %v38
    %897 = vmatpush.msra.mxu0 %v37
    %898 = vmatmul.f32.gmra.mxu0 %v860
    %v899 = vpop.f32.mrf.mxu0
    %v900 = vadd.f32 %v57, %v899
    %901 = vdwg.mxu0
    %902 = vrot.lane.b32.xlu0 %v655, 64
    %v903 = vpop.permute.xlu0 %902
    %v904 = vsel %vm89, %v903, 0
    %906 = vmatpush.msra.mxu0 0.0
    %907 = vmatpush.msra.mxu0 0.0
    %908 = vmatpush.msra.mxu0 0.0
    %909 = vmatpush.msra.mxu0 0.0
    %910 = vmatpush.msra.mxu0 0.0
    %911 = vmatpush.msra.mxu0 0.0
    %912 = vmatpush.msra.mxu0 0.0
    %913 = vmatpush.msra.mxu0 0.0
    %914 = vmatpush.msra.mxu0 0.0
    %915 = vmatpush.msra.mxu0 0.0
    %916 = vmatpush.msra.mxu0 0.0
    %917 = vmatpush.msra.mxu0 0.0
    %918 = vmatpush.msra.mxu0 %v42
    %919 = vmatpush.msra.mxu0 %v41
    %920 = vmatpush.msra.mxu0 %v40
    %921 = vmatpush.msra.mxu0 %v39
    %922 = vmatmul.f32.gmra.mxu0 %v904
    %v923 = vpop.f32.mrf.mxu0
    %v924 = vadd.f32 %v88, %v923
    %925 = vdwg.mxu0
    %v926 = vadd.f32 %v900, %v924
    %v927 = vxor.u32 %v926, 2147483648
    %v928 = vmul.f32 %v927, 1.442695
    %v929 = vpow.pop %v928
    %v930 = vadd.f32 %v929, 1.0
    %v931 = vrcp.pop %v930
    %v932 = vmul.f32 %v930, %v931
    %v933 = vsub.f32 1.0, %v932
    %v934 = vmul.f32 %v931, %v933
    %v935 = vadd.f32 %v931, %v934
    %vm936 = vweird.f32 %v930
    %vm937 = vweird.f32 %v931
    %vm938 = vmor %vm936, %vm937
    %v939 = vsel %vm938, %v931, %v935
    %v940 = vand.u32 2147483647, %v930
    %vm941 = vcmp.eq.f32.partialorder %v940, 8.507059e+37
    %v942 = vand.u32 %v930, 2147483648
    %v943 = vor.u32 1.1754944e-38, %v942
    %v944 = vsel %vm941, %v943, %v939
    %v945 = vmul.f32 1.0, %v944
    %947 = vrot.lane.b32.xlu0 %v924, 32
    %v948 = vpop.permute.xlu0 %947
    %v950 = vmul.f32 %v945, %v948
    %952 = vrot.lane.b32.xlu0 %v950, 96
    %v953 = vpop.permute.xlu0 %952
    %v955 = vadd.f32 %v900, %v953
    %v956 = vtanh.pop %v955
    %v957 = vsub.f32 1.0, %v945
    %959 = vrot.lane.b32.xlu0 %v956, 64
    %v960 = vpop.permute.xlu0 %959
    %v962 = vmul.f32 %v957, %v960
    %v963 = vmul.f32 %v945, %v655
    %v964 = vadd.f32 %v962, %v963
    %965 = vrot.lane.b32.xlu0 %v652, 64
    %v966 = vpop.permute.xlu0 %965
    %v969 = vrot.slane %v880, 4
    %970 = vrot.lane.b32.xlu0 %v969, 64
    %v971 = vpop.permute.xlu0 %970
    %v974 = vrot.slane %v964, 2
    %v976 = vsel %vm662, %v655, %v966
    %v977 = vsel %vm664, %v976, %v971
    %v978 = vsel %vm666, %v977, %v974
    %980 = vrot.lane.b32.xlu0 %v978, 64
    %v981 = vpop.permute.xlu0 %980
    %983 = vmatpush.msra.mxu0 0.0
    %984 = vmatpush.msra.mxu0 0.0
    %985 = vmatpush.msra.mxu0 0.0
    %986 = vmatpush.msra.mxu0 0.0
    %987 = vmatpush.msra.mxu0 0.0
    %988 = vmatpush.msra.mxu0 0.0
    %989 = vmatpush.msra.mxu0 0.0
    %990 = vmatpush.msra.mxu0 0.0
    %991 = vmatpush.msra.mxu0 0.0
    %992 = vmatpush.msra.mxu0 0.0
    %993 = vmatpush.msra.mxu0 0.0
    %994 = vmatpush.msra.mxu0 0.0
    %995 = vmatpush.msra.mxu0 0.0
    %996 = vmatpush.msra.mxu0 0.0
    %997 = vmatpush.msra.mxu0 0.0
    %998 = vmatpush.msra.mxu0 %v981
    %999 = vmatmul.f32.gmra.mxu0 %v678
    %v1000 = vpop.f32.mrf.mxu0
    %v1001 = vadd.f32 %v671, %v1000
    %1002 = vdwg.mxu0
    %v1003 = vsel %vm89, %v1001, 0.0
    %1004 = vadd.xlane.f32.xlu0 %v1003
    %v1005 = vpop.xlane.xlu0 %1004
    %v1006 = vmul.f32 %v1005, %v709
    %v1007 = vsub.f32 %v1001, %v1006
    %v1008 = vmul.f32 %v1007, %v1007
    %v1009 = vsel %vm89, %v1008, 0.0
    %1010 = vadd.xlane.f32.xlu0 %v1009
    %v1011 = vpop.xlane.xlu0 %1010
    %v1012 = vmul.f32 %v1011, %v709
    %v1013 = vadd.f32 %v1012, 1e-05
    %v1014 = vrsqrt.pop %v1013
    %v1015 = vmul.f32 %v1014, %v1013
    %v1016 = vmul.f32 %v1015, %v1014
    %v1017 = vmul.f32 0.5, %v1016
    %v1018 = vsub.f32 1.5, %v1017
    %v1019 = vmul.f32 %v1014, %v1018
    %vm1020 = vweird.f32 %v1013
    %vm1021 = vweird.f32 %v1014
    %vm1022 = vmor %vm1020, %vm1021
    %v1023 = vsel %vm1022, %v1014, %v1019
    %v1024 = vmul.f32 %v1007, %v1023
    %v1025 = vmul.f32 %v1024, %v729
    %1027 = vrot.lane.b32.xlu0 %v1025, 64
    %v1028 = vpop.permute.xlu0 %1027
    %v1030 = vadd.f32 %v978, %v1028
    %v1031 = vadd.f32 %v1030, %v739
    %1033 = vrot.lane.b32.xlu0 %v1031, 64
    %v1034 = vpop.permute.xlu0 %1033
    %1036 = vmatpush.msra.mxu0 0.0
    %1037 = vmatpush.msra.mxu0 0.0
    %1038 = vmatpush.msra.mxu0 0.0
    %1039 = vmatpush.msra.mxu0 0.0
    %1040 = vmatpush.msra.mxu0 0.0
    %1041 = vmatpush.msra.mxu0 0.0
    %1042 = vmatpush.msra.mxu0 0.0
    %1043 = vmatpush.msra.mxu0 0.0
    %1044 = vmatpush.msra.mxu0 0.0
    %1045 = vmatpush.msra.mxu0 0.0
    %1046 = vmatpush.msra.mxu0 0.0
    %1047 = vmatpush.msra.mxu0 0.0
    %1048 = vmatpush.msra.mxu0 0.0
    %1049 = vmatpush.msra.mxu0 0.0
    %1050 = vmatpush.msra.mxu0 0.0
    %1051 = vmatpush.msra.mxu0 %v1034
    %1052 = vmatmul.f32.gmra.mxu0 %v751
    %v1053 = vpop.f32.mrf.mxu0
    %v1054 = vadd.f32 %v745, %v1053
    %1055 = vdwg.mxu0
    %v1056 = vsel %vm89, %v1054, 0.0
    %1057 = vadd.xlane.f32.xlu0 %v1056
    %v1058 = vpop.xlane.xlu0 %1057
    %v1059 = vmul.f32 %v1058, %v709
    %v1060 = vsub.f32 %v1054, %v1059
    %v1061 = vmul.f32 %v1060, %v1060
    %v1062 = vsel %vm89, %v1061, 0.0
    %1063 = vadd.xlane.f32.xlu0 %v1062
    %v1064 = vpop.xlane.xlu0 %1063
    %v1065 = vmul.f32 %v1064, %v709
    %v1066 = vadd.f32 %v1065, 1e-05
    %v1067 = vrsqrt.pop %v1066
    %v1068 = vmul.f32 %v1067, %v1066
    %v1069 = vmul.f32 %v1068, %v1067
    %v1070 = vmul.f32 0.5, %v1069
    %v1071 = vsub.f32 1.5, %v1070
    %v1072 = vmul.f32 %v1067, %v1071
    %vm1073 = vweird.f32 %v1066
    %vm1074 = vweird.f32 %v1067
    %vm1075 = vmor %vm1073, %vm1074
    %v1076 = vsel %vm1075, %v1067, %v1072
    %v1077 = vmul.f32 %v1060, %v1076
    %v1078 = vmul.f32 %v1077, %v795
    %1080 = vrot.lane.b32.xlu0 %v1078, 64
    %v1081 = vpop.permute.xlu0 %1080
    %v1083 = vadd.f32 %v1031, %v1081
    %v1084 = vadd.f32 %v1083, %v805
    %1086 = vrot.lane.b32.xlu0 %v1084, 64
    %v1087 = vpop.permute.xlu0 %1086
    %1089 = vmatpush.msra.mxu0 0.0
    %1090 = vmatpush.msra.mxu0 0.0
    %1091 = vmatpush.msra.mxu0 0.0
    %1092 = vmatpush.msra.mxu0 0.0
    %1093 = vmatpush.msra.mxu0 0.0
    %1094 = vmatpush.msra.mxu0 0.0
    %1095 = vmatpush.msra.mxu0 0.0
    %1096 = vmatpush.msra.mxu0 0.0
    %1097 = vmatpush.msra.mxu0 0.0
    %1098 = vmatpush.msra.mxu0 0.0
    %1099 = vmatpush.msra.mxu0 0.0
    %1100 = vmatpush.msra.mxu0 0.0
    %1101 = vmatpush.msra.mxu0 0.0
    %1102 = vmatpush.msra.mxu0 0.0
    %1103 = vmatpush.msra.mxu0 0.0
    %1104 = vmatpush.msra.mxu0 %v1087
    %1105 = vmatmul.f32.gmra.mxu0 %v813
    %v1106 = vpop.f32.mrf.mxu0
    %v1107 = vadd.f32 0.0, %v1106
    %1108 = vdwg.mxu0
    %v1110 = vsel %vm89, %v1107, 0
    %1112 = vmatpush.msra.mxu0 0.0
    %1113 = vmatpush.msra.mxu0 0.0
    %1114 = vmatpush.msra.mxu0 0.0
    %1115 = vmatpush.msra.mxu0 0.0
    %1116 = vmatpush.msra.mxu0 0.0
    %1117 = vmatpush.msra.mxu0 0.0
    %1118 = vmatpush.msra.mxu0 0.0
    %1119 = vmatpush.msra.mxu0 0.0
    %1120 = vmatpush.msra.mxu0 0.0
    %1121 = vmatpush.msra.mxu0 0.0
    %1122 = vmatpush.msra.mxu0 0.0
    %1123 = vmatpush.msra.mxu0 0.0
    %1124 = vmatpush.msra.mxu0 %v53
    %1125 = vmatpush.msra.mxu0 %v52
    %1126 = vmatpush.msra.mxu0 %v51
    %1127 = vmatpush.msra.mxu0 %v50
    %1128 = vmatmul.f32.gmra.mxu0 %v1110
    %v1129 = vpop.f32.mrf.mxu0
    %v1130 = vadd.f32 %v835, %v1129
    %1131 = vdwg.mxu0
    %v1133 = vsel %vm58, %v1130, 0
    %1135 = vmatpush.msra.mxu0 0.0
    %1136 = vmatpush.msra.mxu0 0.0
    %1137 = vmatpush.msra.mxu0 0.0
    %1138 = vmatpush.msra.mxu0 0.0
    %1139 = vmatpush.msra.mxu0 0.0
    %1140 = vmatpush.msra.mxu0 0.0
    %1141 = vmatpush.msra.mxu0 0.0
    %1142 = vmatpush.msra.mxu0 0.0
    %1143 = vmatpush.msra.mxu0 0.0
    %1144 = vmatpush.msra.mxu0 0.0
    %1145 = vmatpush.msra.mxu0 0.0
    %1146 = vmatpush.msra.mxu0 0.0
    %1147 = vmatpush.msra.mxu0 0.0
    %1148 = vmatpush.msra.mxu0 0.0
    %1149 = vmatpush.msra.mxu0 %v45
    %1150 = vmatpush.msra.mxu0 %v44
    %1151 = vmatmul.f32.gmra.mxu0 %v1133
    %v1152 = vpop.f32.mrf.mxu0
    %v1153 = vadd.f32 %v630, %v1152
    %1154 = vdwg.mxu0
    %1155 = vmatpush.msra.mxu0 0.0
    %1156 = vmatpush.msra.mxu0 0.0
    %1157 = vmatpush.msra.mxu0 0.0
    %1158 = vmatpush.msra.mxu0 0.0
    %1159 = vmatpush.msra.mxu0 0.0
    %1160 = vmatpush.msra.mxu0 0.0
    %1161 = vmatpush.msra.mxu0 0.0
    %1162 = vmatpush.msra.mxu0 0.0
    %1163 = vmatpush.msra.mxu0 0.0
    %1164 = vmatpush.msra.mxu0 0.0
    %1165 = vmatpush.msra.mxu0 0.0
    %1166 = vmatpush.msra.mxu0 0.0
    %1167 = vmatpush.msra.mxu0 0.0
    %1168 = vmatpush.msra.mxu0 0.0
    %1169 = vmatpush.msra.mxu0 %v38
    %1170 = vmatpush.msra.mxu0 %v37
    %1171 = vmatmul.f32.gmra.mxu0 %v1133
    %v1172 = vpop.f32.mrf.mxu0
    %v1173 = vadd.f32 %v57, %v1172
    %1174 = vdwg.mxu0
    %1175 = vrot.lane.b32.xlu0 %v964, 64
    %v1176 = vpop.permute.xlu0 %1175
    %v1177 = vsel %vm89, %v1176, 0
    %1179 = vmatpush.msra.mxu0 0.0
    %1180 = vmatpush.msra.mxu0 0.0
    %1181 = vmatpush.msra.mxu0 0.0
    %1182 = vmatpush.msra.mxu0 0.0
    %1183 = vmatpush.msra.mxu0 0.0
    %1184 = vmatpush.msra.mxu0 0.0
    %1185 = vmatpush.msra.mxu0 0.0
    %1186 = vmatpush.msra.mxu0 0.0
    %1187 = vmatpush.msra.mxu0 0.0
    %1188 = vmatpush.msra.mxu0 0.0
    %1189 = vmatpush.msra.mxu0 0.0
    %1190 = vmatpush.msra.mxu0 0.0
    %1191 = vmatpush.msra.mxu0 %v42
    %1192 = vmatpush.msra.mxu0 %v41
    %1193 = vmatpush.msra.mxu0 %v40
    %1194 = vmatpush.msra.mxu0 %v39
    %1195 = vmatmul.f32.gmra.mxu0 %v1177
    %v1196 = vpop.f32.mrf.mxu0
    %v1197 = vadd.f32 %v88, %v1196
    %1198 = vdwg.mxu0
    %v1199 = vadd.f32 %v1173, %v1197
    %v1200 = vxor.u32 %v1199, 2147483648
    %v1201 = vmul.f32 %v1200, 1.442695
    %v1202 = vpow.pop %v1201
    %v1203 = vadd.f32 %v1202, 1.0
    %v1204 = vrcp.pop %v1203
    %v1205 = vmul.f32 %v1203, %v1204
    %v1206 = vsub.f32 1.0, %v1205
    %v1207 = vmul.f32 %v1204, %v1206
    %v1208 = vadd.f32 %v1204, %v1207
    %vm1209 = vweird.f32 %v1203
    %vm1210 = vweird.f32 %v1204
    %vm1211 = vmor %vm1209, %vm1210
    %v1212 = vsel %vm1211, %v1204, %v1208
    %v1213 = vand.u32 2147483647, %v1203
    %vm1214 = vcmp.eq.f32.partialorder %v1213, 8.507059e+37
    %v1215 = vand.u32 %v1203, 2147483648
    %v1216 = vor.u32 1.1754944e-38, %v1215
    %v1217 = vsel %vm1214, %v1216, %v1212
    %v1218 = vmul.f32 1.0, %v1217
    %1220 = vrot.lane.b32.xlu0 %v1197, 32
    %v1221 = vpop.permute.xlu0 %1220
    %v1223 = vmul.f32 %v1218, %v1221
    %1225 = vrot.lane.b32.xlu0 %v1223, 96
    %v1226 = vpop.permute.xlu0 %1225
    %v1228 = vadd.f32 %v1173, %v1226
    %v1229 = vtanh.pop %v1228
    %v1230 = vsub.f32 1.0, %v1218
    %1232 = vrot.lane.b32.xlu0 %v1229, 64
    %v1233 = vpop.permute.xlu0 %1232
    %v1235 = vmul.f32 %v1230, %v1233
    %v1236 = vmul.f32 %v1218, %v964
    %v1237 = vadd.f32 %v1235, %v1236
    %v1238 = vrot.slane %v880, 6
    %1239 = vrot.lane.b32.xlu0 %v1238, 64
    %v1240 = vpop.permute.xlu0 %1239
    %v1243 = vrot.slane %v1153, 4
    %1244 = vrot.lane.b32.xlu0 %v1243, 64
    %v1245 = vpop.permute.xlu0 %1244
    %v1248 = vrot.slane %v1237, 2
    %v1250 = vsel %vm662, %v655, %v1240
    %v1251 = vsel %vm664, %v1250, %v1245
    %v1252 = vsel %vm666, %v1251, %v1248
    %1254 = vrot.lane.b32.xlu0 %v1252, 64
    %v1255 = vpop.permute.xlu0 %1254
    %1257 = vmatpush.msra.mxu0 0.0
    %1258 = vmatpush.msra.mxu0 0.0
    %1259 = vmatpush.msra.mxu0 0.0
    %1260 = vmatpush.msra.mxu0 0.0
    %1261 = vmatpush.msra.mxu0 0.0
    %1262 = vmatpush.msra.mxu0 0.0
    %1263 = vmatpush.msra.mxu0 0.0
    %1264 = vmatpush.msra.mxu0 0.0
    %1265 = vmatpush.msra.mxu0 0.0
    %1266 = vmatpush.msra.mxu0 0.0
    %1267 = vmatpush.msra.mxu0 0.0
    %1268 = vmatpush.msra.mxu0 0.0
    %1269 = vmatpush.msra.mxu0 0.0
    %1270 = vmatpush.msra.mxu0 0.0
    %1271 = vmatpush.msra.mxu0 0.0
    %1272 = vmatpush.msra.mxu0 %v1255
    %1273 = vmatmul.f32.gmra.mxu0 %v678
    %v1274 = vpop.f32.mrf.mxu0
    %v1275 = vadd.f32 %v671, %v1274
    %1276 = vdwg.mxu0
    %v1277 = vsel %vm89, %v1275, 0.0
    %1278 = vadd.xlane.f32.xlu0 %v1277
    %v1279 = vpop.xlane.xlu0 %1278
    %v1280 = vmul.f32 %v1279, %v709
    %v1281 = vsub.f32 %v1275, %v1280
    %v1282 = vmul.f32 %v1281, %v1281
    %v1283 = vsel %vm89, %v1282, 0.0
    %1284 = vadd.xlane.f32.xlu0 %v1283
    %v1285 = vpop.xlane.xlu0 %1284
    %v1286 = vmul.f32 %v1285, %v709
    %v1287 = vadd.f32 %v1286, 1e-05
    %v1288 = vrsqrt.pop %v1287
    %v1289 = vmul.f32 %v1288, %v1287
    %v1290 = vmul.f32 %v1289, %v1288
    %v1291 = vmul.f32 0.5, %v1290
    %v1292 = vsub.f32 1.5, %v1291
    %v1293 = vmul.f32 %v1288, %v1292
    %vm1294 = vweird.f32 %v1287
    %vm1295 = vweird.f32 %v1288
    %vm1296 = vmor %vm1294, %vm1295
    %v1297 = vsel %vm1296, %v1288, %v1293
    %v1298 = vmul.f32 %v1281, %v1297
    %v1299 = vmul.f32 %v1298, %v729
    %1301 = vrot.lane.b32.xlu0 %v1299, 64
    %v1302 = vpop.permute.xlu0 %1301
    %v1304 = vadd.f32 %v1252, %v1302
    %v1305 = vadd.f32 %v1304, %v739
    %1307 = vrot.lane.b32.xlu0 %v1305, 64
    %v1308 = vpop.permute.xlu0 %1307
    %1310 = vmatpush.msra.mxu0 0.0
    %1311 = vmatpush.msra.mxu0 0.0
    %1312 = vmatpush.msra.mxu0 0.0
    %1313 = vmatpush.msra.mxu0 0.0
    %1314 = vmatpush.msra.mxu0 0.0
    %1315 = vmatpush.msra.mxu0 0.0
    %1316 = vmatpush.msra.mxu0 0.0
    %1317 = vmatpush.msra.mxu0 0.0
    %1318 = vmatpush.msra.mxu0 0.0
    %1319 = vmatpush.msra.mxu0 0.0
    %1320 = vmatpush.msra.mxu0 0.0
    %1321 = vmatpush.msra.mxu0 0.0
    %1322 = vmatpush.msra.mxu0 0.0
    %1323 = vmatpush.msra.mxu0 0.0
    %1324 = vmatpush.msra.mxu0 0.0
    %1325 = vmatpush.msra.mxu0 %v1308
    %1326 = vmatmul.f32.gmra.mxu0 %v751
    %v1327 = vpop.f32.mrf.mxu0
    %v1328 = vadd.f32 %v745, %v1327
    %1329 = vdwg.mxu0
    %v1330 = vsel %vm89, %v1328, 0.0
    %1331 = vadd.xlane.f32.xlu0 %v1330
    %v1332 = vpop.xlane.xlu0 %1331
    %v1333 = vmul.f32 %v1332, %v709
    %v1334 = vsub.f32 %v1328, %v1333
    %v1335 = vmul.f32 %v1334, %v1334
    %v1336 = vsel %vm89, %v1335, 0.0
    %1337 = vadd.xlane.f32.xlu0 %v1336
    %v1338 = vpop.xlane.xlu0 %1337
    %v1339 = vmul.f32 %v1338, %v709
    %v1340 = vadd.f32 %v1339, 1e-05
    %v1341 = vrsqrt.pop %v1340
    %v1342 = vmul.f32 %v1341, %v1340
    %v1343 = vmul.f32 %v1342, %v1341
    %v1344 = vmul.f32 0.5, %v1343
    %v1345 = vsub.f32 1.5, %v1344
    %v1346 = vmul.f32 %v1341, %v1345
    %vm1347 = vweird.f32 %v1340
    %vm1348 = vweird.f32 %v1341
    %vm1349 = vmor %vm1347, %vm1348
    %v1350 = vsel %vm1349, %v1341, %v1346
    %v1351 = vmul.f32 %v1334, %v1350
    %v1352 = vmul.f32 %v1351, %v795
    %1354 = vrot.lane.b32.xlu0 %v1352, 64
    %v1355 = vpop.permute.xlu0 %1354
    %v1357 = vadd.f32 %v1305, %v1355
    %v1358 = vadd.f32 %v1357, %v805
    %1360 = vrot.lane.b32.xlu0 %v1358, 64
    %v1361 = vpop.permute.xlu0 %1360
    %1363 = vmatpush.msra.mxu0 0.0
    %1364 = vmatpush.msra.mxu0 0.0
    %1365 = vmatpush.msra.mxu0 0.0
    %1366 = vmatpush.msra.mxu0 0.0
    %1367 = vmatpush.msra.mxu0 0.0
    %1368 = vmatpush.msra.mxu0 0.0
    %1369 = vmatpush.msra.mxu0 0.0
    %1370 = vmatpush.msra.mxu0 0.0
    %1371 = vmatpush.msra.mxu0 0.0
    %1372 = vmatpush.msra.mxu0 0.0
    %1373 = vmatpush.msra.mxu0 0.0
    %1374 = vmatpush.msra.mxu0 0.0
    %1375 = vmatpush.msra.mxu0 0.0
    %1376 = vmatpush.msra.mxu0 0.0
    %1377 = vmatpush.msra.mxu0 0.0
    %1378 = vmatpush.msra.mxu0 %v1361
    %1379 = vmatmul.f32.gmra.mxu0 %v813
    %v1380 = vpop.f32.mrf.mxu0
    %v1381 = vadd.f32 0.0, %v1380
    %1382 = vdwg.mxu0
    %v1384 = vsel %vm89, %v1381, 0
    %1386 = vmatpush.msra.mxu0 0.0
    %1387 = vmatpush.msra.mxu0 0.0
    %1388 = vmatpush.msra.mxu0 0.0
    %1389 = vmatpush.msra.mxu0 0.0
    %1390 = vmatpush.msra.mxu0 0.0
    %1391 = vmatpush.msra.mxu0 0.0
    %1392 = vmatpush.msra.mxu0 0.0
    %1393 = vmatpush.msra.mxu0 0.0
    %1394 = vmatpush.msra.mxu0 0.0
    %1395 = vmatpush.msra.mxu0 0.0
    %1396 = vmatpush.msra.mxu0 0.0
    %1397 = vmatpush.msra.mxu0 0.0
    %1398 = vmatpush.msra.mxu0 %v53
    %1399 = vmatpush.msra.mxu0 %v52
    %1400 = vmatpush.msra.mxu0 %v51
    %1401 = vmatpush.msra.mxu0 %v50
    %1402 = vmatmul.f32.gmra.mxu0 %v1384
    %v1403 = vpop.f32.mrf.mxu0
    %v1404 = vadd.f32 %v835, %v1403
    %1405 = vdwg.mxu0
    %v1407 = vsel %vm58, %v1404, 0
    %1409 = vmatpush.msra.mxu0 0.0
    %1410 = vmatpush.msra.mxu0 0.0
    %1411 = vmatpush.msra.mxu0 0.0
    %1412 = vmatpush.msra.mxu0 0.0
    %1413 = vmatpush.msra.mxu0 0.0
    %1414 = vmatpush.msra.mxu0 0.0
    %1415 = vmatpush.msra.mxu0 0.0
    %1416 = vmatpush.msra.mxu0 0.0
    %1417 = vmatpush.msra.mxu0 0.0
    %1418 = vmatpush.msra.mxu0 0.0
    %1419 = vmatpush.msra.mxu0 0.0
    %1420 = vmatpush.msra.mxu0 0.0
    %1421 = vmatpush.msra.mxu0 0.0
    %1422 = vmatpush.msra.mxu0 0.0
    %1423 = vmatpush.msra.mxu0 %v45
    %1424 = vmatpush.msra.mxu0 %v44
    %1425 = vmatmul.f32.gmra.mxu0 %v1407
    %v1426 = vpop.f32.mrf.mxu0
    %v1427 = vadd.f32 %v630, %v1426
    %1428 = vdwg.mxu0
    %1429 = vmatpush.msra.mxu0 0.0
    %1430 = vmatpush.msra.mxu0 0.0
    %1431 = vmatpush.msra.mxu0 0.0
    %1432 = vmatpush.msra.mxu0 0.0
    %1433 = vmatpush.msra.mxu0 0.0
    %1434 = vmatpush.msra.mxu0 0.0
    %1435 = vmatpush.msra.mxu0 0.0
    %1436 = vmatpush.msra.mxu0 0.0
    %1437 = vmatpush.msra.mxu0 0.0
    %1438 = vmatpush.msra.mxu0 0.0
    %1439 = vmatpush.msra.mxu0 0.0
    %1440 = vmatpush.msra.mxu0 0.0
    %1441 = vmatpush.msra.mxu0 0.0
    %1442 = vmatpush.msra.mxu0 0.0
    %1443 = vmatpush.msra.mxu0 %v38
    %1444 = vmatpush.msra.mxu0 %v37
    %1445 = vmatmul.f32.gmra.mxu0 %v1407
    %v1446 = vpop.f32.mrf.mxu0
    %v1447 = vadd.f32 %v57, %v1446
    %1448 = vdwg.mxu0
    %1449 = vrot.lane.b32.xlu0 %v1237, 64
    %v1450 = vpop.permute.xlu0 %1449
    %v1451 = vsel %vm89, %v1450, 0
    %1453 = vmatpush.msra.mxu0 0.0
    %1454 = vmatpush.msra.mxu0 0.0
    %1455 = vmatpush.msra.mxu0 0.0
    %1456 = vmatpush.msra.mxu0 0.0
    %1457 = vmatpush.msra.mxu0 0.0
    %1458 = vmatpush.msra.mxu0 0.0
    %1459 = vmatpush.msra.mxu0 0.0
    %1460 = vmatpush.msra.mxu0 0.0
    %1461 = vmatpush.msra.mxu0 0.0
    %1462 = vmatpush.msra.mxu0 0.0
    %1463 = vmatpush.msra.mxu0 0.0
    %1464 = vmatpush.msra.mxu0 0.0
    %1465 = vmatpush.msra.mxu0 %v42
    %1466 = vmatpush.msra.mxu0 %v41
    %1467 = vmatpush.msra.mxu0 %v40
    %1468 = vmatpush.msra.mxu0 %v39
    %1469 = vmatmul.f32.gmra.mxu0 %v1451
    %v1470 = vpop.f32.mrf.mxu0
    %v1471 = vadd.f32 %v88, %v1470
    %1472 = vdwg.mxu0
    %v1473 = vadd.f32 %v1447, %v1471
    %v1474 = vxor.u32 %v1473, 2147483648
    %v1475 = vmul.f32 %v1474, 1.442695
    %v1476 = vpow.pop %v1475
    %v1477 = vadd.f32 %v1476, 1.0
    %v1478 = vrcp.pop %v1477
    %v1479 = vmul.f32 %v1477, %v1478
    %v1480 = vsub.f32 1.0, %v1479
    %v1481 = vmul.f32 %v1478, %v1480
    %v1482 = vadd.f32 %v1478, %v1481
    %vm1483 = vweird.f32 %v1477
    %vm1484 = vweird.f32 %v1478
    %vm1485 = vmor %vm1483, %vm1484
    %v1486 = vsel %vm1485, %v1478, %v1482
    %v1487 = vand.u32 2147483647, %v1477
    %vm1488 = vcmp.eq.f32.partialorder %v1487, 8.507059e+37
    %v1489 = vand.u32 %v1477, 2147483648
    %v1490 = vor.u32 1.1754944e-38, %v1489
    %v1491 = vsel %vm1488, %v1490, %v1486
    %v1492 = vmul.f32 1.0, %v1491
    %1494 = vrot.lane.b32.xlu0 %v1471, 32
    %v1495 = vpop.permute.xlu0 %1494
    %v1497 = vmul.f32 %v1492, %v1495
    %1499 = vrot.lane.b32.xlu0 %v1497, 96
    %v1500 = vpop.permute.xlu0 %1499
    %v1502 = vadd.f32 %v1447, %v1500
    %v1503 = vtanh.pop %v1502
    %v1504 = vsub.f32 1.0, %v1492
    %1506 = vrot.lane.b32.xlu0 %v1503, 64
    %v1507 = vpop.permute.xlu0 %1506
    %v1509 = vmul.f32 %v1504, %v1507
    %v1510 = vmul.f32 %v1492, %v1237
    %v1511 = vadd.f32 %v1509, %v1510
    %v1512 = vrot.slane %v1153, 6
    %1513 = vrot.lane.b32.xlu0 %v1512, 64
    %v1514 = vpop.permute.xlu0 %1513
    %v1517 = vrot.slane %v1427, 4
    %1518 = vrot.lane.b32.xlu0 %v1517, 64
    %v1519 = vpop.permute.xlu0 %1518
    %v1522 = vrot.slane %v1511, 2
    %v1524 = vsel %vm662, %v655, %v1514
    %v1525 = vsel %vm664, %v1524, %v1519
    %v1526 = vsel %vm666, %v1525, %v1522
    %1528 = vrot.lane.b32.xlu0 %v1526, 64
    %v1529 = vpop.permute.xlu0 %1528
    %1531 = vmatpush.msra.mxu0 0.0
    %1532 = vmatpush.msra.mxu0 0.0
    %1533 = vmatpush.msra.mxu0 0.0
    %1534 = vmatpush.msra.mxu0 0.0
    %1535 = vmatpush.msra.mxu0 0.0
    %1536 = vmatpush.msra.mxu0 0.0
    %1537 = vmatpush.msra.mxu0 0.0
    %1538 = vmatpush.msra.mxu0 0.0
    %1539 = vmatpush.msra.mxu0 0.0
    %1540 = vmatpush.msra.mxu0 0.0
    %1541 = vmatpush.msra.mxu0 0.0
    %1542 = vmatpush.msra.mxu0 0.0
    %1543 = vmatpush.msra.mxu0 0.0
    %1544 = vmatpush.msra.mxu0 0.0
    %1545 = vmatpush.msra.mxu0 0.0
    %1546 = vmatpush.msra.mxu0 %v1529
    %1547 = vmatmul.f32.gmra.mxu0 %v678
    %v1548 = vpop.f32.mrf.mxu0
    %v1549 = vadd.f32 %v671, %v1548
    %1550 = vdwg.mxu0
    %v1551 = vsel %vm89, %v1549, 0.0
    %1552 = vadd.xlane.f32.xlu0 %v1551
    %v1553 = vpop.xlane.xlu0 %1552
    %v1554 = vmul.f32 %v1553, %v709
    %v1555 = vsub.f32 %v1549, %v1554
    %v1556 = vmul.f32 %v1555, %v1555
    %v1557 = vsel %vm89, %v1556, 0.0
    %1558 = vadd.xlane.f32.xlu0 %v1557
    %v1559 = vpop.xlane.xlu0 %1558
    %v1560 = vmul.f32 %v1559, %v709
    %v1561 = vadd.f32 %v1560, 1e-05
    %v1562 = vrsqrt.pop %v1561
    %v1563 = vmul.f32 %v1562, %v1561
    %v1564 = vmul.f32 %v1563, %v1562
    %v1565 = vmul.f32 0.5, %v1564
    %v1566 = vsub.f32 1.5, %v1565
    %v1567 = vmul.f32 %v1562, %v1566
    %vm1568 = vweird.f32 %v1561
    %vm1569 = vweird.f32 %v1562
    %vm1570 = vmor %vm1568, %vm1569
    %v1571 = vsel %vm1570, %v1562, %v1567
    %v1572 = vmul.f32 %v1555, %v1571
    %v1573 = vmul.f32 %v1572, %v729
    %1575 = vrot.lane.b32.xlu0 %v1573, 64
    %v1576 = vpop.permute.xlu0 %1575
    %v1578 = vadd.f32 %v1526, %v1576
    %v1579 = vadd.f32 %v1578, %v739
    %1581 = vrot.lane.b32.xlu0 %v1579, 64
    %v1582 = vpop.permute.xlu0 %1581
    %1584 = vmatpush.msra.mxu0 0.0
    %1585 = vmatpush.msra.mxu0 0.0
    %1586 = vmatpush.msra.mxu0 0.0
    %1587 = vmatpush.msra.mxu0 0.0
    %1588 = vmatpush.msra.mxu0 0.0
    %1589 = vmatpush.msra.mxu0 0.0
    %1590 = vmatpush.msra.mxu0 0.0
    %1591 = vmatpush.msra.mxu0 0.0
    %1592 = vmatpush.msra.mxu0 0.0
    %1593 = vmatpush.msra.mxu0 0.0
    %1594 = vmatpush.msra.mxu0 0.0
    %1595 = vmatpush.msra.mxu0 0.0
    %1596 = vmatpush.msra.mxu0 0.0
    %1597 = vmatpush.msra.mxu0 0.0
    %1598 = vmatpush.msra.mxu0 0.0
    %1599 = vmatpush.msra.mxu0 %v1582
    %1600 = vmatmul.f32.gmra.mxu0 %v751
    %v1601 = vpop.f32.mrf.mxu0
    %v1602 = vadd.f32 %v745, %v1601
    %1603 = vdwg.mxu0
    %v1604 = vsel %vm89, %v1602, 0.0
    %1605 = vadd.xlane.f32.xlu0 %v1604
    %v1606 = vpop.xlane.xlu0 %1605
    %v1607 = vmul.f32 %v1606, %v709
    %v1608 = vsub.f32 %v1602, %v1607
    %v1609 = vmul.f32 %v1608, %v1608
    %v1610 = vsel %vm89, %v1609, 0.0
    %1611 = vadd.xlane.f32.xlu0 %v1610
    %v1612 = vpop.xlane.xlu0 %1611
    %v1613 = vmul.f32 %v1612, %v709
    %v1614 = vadd.f32 %v1613, 1e-05
    %v1615 = vrsqrt.pop %v1614
    %v1616 = vmul.f32 %v1615, %v1614
    %v1617 = vmul.f32 %v1616, %v1615
    %v1618 = vmul.f32 0.5, %v1617
    %v1619 = vsub.f32 1.5, %v1618
    %v1620 = vmul.f32 %v1615, %v1619
    %vm1621 = vweird.f32 %v1614
    %vm1622 = vweird.f32 %v1615
    %vm1623 = vmor %vm1621, %vm1622
    %v1624 = vsel %vm1623, %v1615, %v1620
    %v1625 = vmul.f32 %v1608, %v1624
    %v1626 = vmul.f32 %v1625, %v795
    %1628 = vrot.lane.b32.xlu0 %v1626, 64
    %v1629 = vpop.permute.xlu0 %1628
    %v1631 = vadd.f32 %v1579, %v1629
    %v1632 = vadd.f32 %v1631, %v805
    %1634 = vrot.lane.b32.xlu0 %v1632, 64
    %v1635 = vpop.permute.xlu0 %1634
    %1637 = vmatpush.msra.mxu0 0.0
    %1638 = vmatpush.msra.mxu0 0.0
    %1639 = vmatpush.msra.mxu0 0.0
    %1640 = vmatpush.msra.mxu0 0.0
    %1641 = vmatpush.msra.mxu0 0.0
    %1642 = vmatpush.msra.mxu0 0.0
    %1643 = vmatpush.msra.mxu0 0.0
    %1644 = vmatpush.msra.mxu0 0.0
    %1645 = vmatpush.msra.mxu0 0.0
    %1646 = vmatpush.msra.mxu0 0.0
    %1647 = vmatpush.msra.mxu0 0.0
    %1648 = vmatpush.msra.mxu0 0.0
    %1649 = vmatpush.msra.mxu0 0.0
    %1650 = vmatpush.msra.mxu0 0.0
    %1651 = vmatpush.msra.mxu0 0.0
    %1652 = vmatpush.msra.mxu0 %v1635
    %1653 = vmatmul.f32.gmra.mxu0 %v813
    %v1654 = vpop.f32.mrf.mxu0
    %v1655 = vadd.f32 0.0, %v1654
    %1656 = vdwg.mxu0
    %v1658 = vsel %vm89, %v1655, 0
    %1660 = vmatpush.msra.mxu0 0.0
    %1661 = vmatpush.msra.mxu0 0.0
    %1662 = vmatpush.msra.mxu0 0.0
    %1663 = vmatpush.msra.mxu0 0.0
    %1664 = vmatpush.msra.mxu0 0.0
    %1665 = vmatpush.msra.mxu0 0.0
    %1666 = vmatpush.msra.mxu0 0.0
    %1667 = vmatpush.msra.mxu0 0.0
    %1668 = vmatpush.msra.mxu0 0.0
    %1669 = vmatpush.msra.mxu0 0.0
    %1670 = vmatpush.msra.mxu0 0.0
    %1671 = vmatpush.msra.mxu0 0.0
    %1672 = vmatpush.msra.mxu0 %v53
    %1673 = vmatpush.msra.mxu0 %v52
    %1674 = vmatpush.msra.mxu0 %v51
    %1675 = vmatpush.msra.mxu0 %v50
    %1676 = vmatmul.f32.gmra.mxu0 %v1658
    %v1677 = vpop.f32.mrf.mxu0
    %v1678 = vadd.f32 %v835, %v1677
    %1679 = vdwg.mxu0
    %v1681 = vsel %vm58, %v1678, 0
    %1683 = vmatpush.msra.mxu0 0.0
    %1684 = vmatpush.msra.mxu0 0.0
    %1685 = vmatpush.msra.mxu0 0.0
    %1686 = vmatpush.msra.mxu0 0.0
    %1687 = vmatpush.msra.mxu0 0.0
    %1688 = vmatpush.msra.mxu0 0.0
    %1689 = vmatpush.msra.mxu0 0.0
    %1690 = vmatpush.msra.mxu0 0.0
    %1691 = vmatpush.msra.mxu0 0.0
    %1692 = vmatpush.msra.mxu0 0.0
    %1693 = vmatpush.msra.mxu0 0.0
    %1694 = vmatpush.msra.mxu0 0.0
    %1695 = vmatpush.msra.mxu0 0.0
    %1696 = vmatpush.msra.mxu0 0.0
    %1697 = vmatpush.msra.mxu0 %v45
    %1698 = vmatpush.msra.mxu0 %v44
    %1699 = vmatmul.f32.gmra.mxu0 %v1681
    %v1700 = vpop.f32.mrf.mxu0
    %v1701 = vadd.f32 %v630, %v1700
    %1702 = vdwg.mxu0
    %1703 = vmatpush.msra.mxu0 0.0
    %1704 = vmatpush.msra.mxu0 0.0
    %1705 = vmatpush.msra.mxu0 0.0
    %1706 = vmatpush.msra.mxu0 0.0
    %1707 = vmatpush.msra.mxu0 0.0
    %1708 = vmatpush.msra.mxu0 0.0
    %1709 = vmatpush.msra.mxu0 0.0
    %1710 = vmatpush.msra.mxu0 0.0
    %1711 = vmatpush.msra.mxu0 0.0
    %1712 = vmatpush.msra.mxu0 0.0
    %1713 = vmatpush.msra.mxu0 0.0
    %1714 = vmatpush.msra.mxu0 0.0
    %1715 = vmatpush.msra.mxu0 0.0
    %1716 = vmatpush.msra.mxu0 0.0
    %1717 = vmatpush.msra.mxu0 %v38
    %1718 = vmatpush.msra.mxu0 %v37
    %1719 = vmatmul.f32.gmra.mxu0 %v1681
    %v1720 = vpop.f32.mrf.mxu0
    %v1721 = vadd.f32 %v57, %v1720
    %1722 = vdwg.mxu0
    %1723 = vrot.lane.b32.xlu0 %v1511, 64
    %v1724 = vpop.permute.xlu0 %1723
    %v1725 = vsel %vm89, %v1724, 0
    %1727 = vmatpush.msra.mxu0 0.0
    %1728 = vmatpush.msra.mxu0 0.0
    %1729 = vmatpush.msra.mxu0 0.0
    %1730 = vmatpush.msra.mxu0 0.0
    %1731 = vmatpush.msra.mxu0 0.0
    %1732 = vmatpush.msra.mxu0 0.0
    %1733 = vmatpush.msra.mxu0 0.0
    %1734 = vmatpush.msra.mxu0 0.0
    %1735 = vmatpush.msra.mxu0 0.0
    %1736 = vmatpush.msra.mxu0 0.0
    %1737 = vmatpush.msra.mxu0 0.0
    %1738 = vmatpush.msra.mxu0 0.0
    %1739 = vmatpush.msra.mxu0 %v42
    %1740 = vmatpush.msra.mxu0 %v41
    %1741 = vmatpush.msra.mxu0 %v40
    %1742 = vmatpush.msra.mxu0 %v39
    %1743 = vmatmul.f32.gmra.mxu0 %v1725
    %v1744 = vpop.f32.mrf.mxu0
    %v1745 = vadd.f32 %v88, %v1744
    %1746 = vdwg.mxu0
    %v1747 = vadd.f32 %v1721, %v1745
    %v1748 = vxor.u32 %v1747, 2147483648
    %v1749 = vmul.f32 %v1748, 1.442695
    %v1750 = vpow.pop %v1749
    %v1751 = vadd.f32 %v1750, 1.0
    %v1752 = vrcp.pop %v1751
    %v1753 = vmul.f32 %v1751, %v1752
    %v1754 = vsub.f32 1.0, %v1753
    %v1755 = vmul.f32 %v1752, %v1754
    %v1756 = vadd.f32 %v1752, %v1755
    %vm1757 = vweird.f32 %v1751
    %vm1758 = vweird.f32 %v1752
    %vm1759 = vmor %vm1757, %vm1758
    %v1760 = vsel %vm1759, %v1752, %v1756
    %v1761 = vand.u32 2147483647, %v1751
    %vm1762 = vcmp.eq.f32.partialorder %v1761, 8.507059e+37
    %v1763 = vand.u32 %v1751, 2147483648
    %v1764 = vor.u32 1.1754944e-38, %v1763
    %v1765 = vsel %vm1762, %v1764, %v1760
    %v1766 = vmul.f32 1.0, %v1765
    %1768 = vrot.lane.b32.xlu0 %v1745, 32
    %v1769 = vpop.permute.xlu0 %1768
    %v1771 = vmul.f32 %v1766, %v1769
    %1773 = vrot.lane.b32.xlu0 %v1771, 96
    %v1774 = vpop.permute.xlu0 %1773
    %v1776 = vadd.f32 %v1721, %v1774
    %v1777 = vtanh.pop %v1776
    %v1778 = vsub.f32 1.0, %v1766
    %1780 = vrot.lane.b32.xlu0 %v1777, 64
    %v1781 = vpop.permute.xlu0 %1780
    %v1783 = vmul.f32 %v1778, %v1781
    %v1784 = vmul.f32 %v1766, %v1511
    %v1785 = vadd.f32 %v1783, %v1784
    %v1786 = vrot.slane %v1427, 6
    %1787 = vrot.lane.b32.xlu0 %v1786, 64
    %v1788 = vpop.permute.xlu0 %1787
    %v1791 = vrot.slane %v1701, 4
    %1792 = vrot.lane.b32.xlu0 %v1791, 64
    %v1793 = vpop.permute.xlu0 %1792
    %v1796 = vrot.slane %v1785, 2
    %v1798 = vsel %vm662, %v655, %v1788
    %v1799 = vsel %vm664, %v1798, %v1793
    %v1800 = vsel %vm666, %v1799, %v1796
    %1802 = vrot.lane.b32.xlu0 %v1800, 64
    %v1803 = vpop.permute.xlu0 %1802
    %1805 = vmatpush.msra.mxu0 0.0
    %1806 = vmatpush.msra.mxu0 0.0
    %1807 = vmatpush.msra.mxu0 0.0
    %1808 = vmatpush.msra.mxu0 0.0
    %1809 = vmatpush.msra.mxu0 0.0
    %1810 = vmatpush.msra.mxu0 0.0
    %1811 = vmatpush.msra.mxu0 0.0
    %1812 = vmatpush.msra.mxu0 0.0
    %1813 = vmatpush.msra.mxu0 0.0
    %1814 = vmatpush.msra.mxu0 0.0
    %1815 = vmatpush.msra.mxu0 0.0
    %1816 = vmatpush.msra.mxu0 0.0
    %1817 = vmatpush.msra.mxu0 0.0
    %1818 = vmatpush.msra.mxu0 0.0
    %1819 = vmatpush.msra.mxu0 0.0
    %1820 = vmatpush.msra.mxu0 %v1803
    %1821 = vmatmul.f32.gmra.mxu0 %v678
    %v1822 = vpop.f32.mrf.mxu0
    %v1823 = vadd.f32 %v671, %v1822
    %1824 = vdwg.mxu0
    %v1825 = vsel %vm89, %v1823, 0.0
    %1826 = vadd.xlane.f32.xlu0 %v1825
    %v1827 = vpop.xlane.xlu0 %1826
    %v1828 = vmul.f32 %v1827, %v709
    %v1829 = vsub.f32 %v1823, %v1828
    %v1830 = vmul.f32 %v1829, %v1829
    %v1831 = vsel %vm89, %v1830, 0.0
    %1832 = vadd.xlane.f32.xlu0 %v1831
    %v1833 = vpop.xlane.xlu0 %1832
    %v1834 = vmul.f32 %v1833, %v709
    %v1835 = vadd.f32 %v1834, 1e-05
    %v1836 = vrsqrt.pop %v1835
    %v1837 = vmul.f32 %v1836, %v1835
    %v1838 = vmul.f32 %v1837, %v1836
    %v1839 = vmul.f32 0.5, %v1838
    %v1840 = vsub.f32 1.5, %v1839
    %v1841 = vmul.f32 %v1836, %v1840
    %vm1842 = vweird.f32 %v1835
    %vm1843 = vweird.f32 %v1836
    %vm1844 = vmor %vm1842, %vm1843
    %v1845 = vsel %vm1844, %v1836, %v1841
    %v1846 = vmul.f32 %v1829, %v1845
    %v1847 = vmul.f32 %v1846, %v729
    %1849 = vrot.lane.b32.xlu0 %v1847, 64
    %v1850 = vpop.permute.xlu0 %1849
    %v1852 = vadd.f32 %v1800, %v1850
    %v1853 = vadd.f32 %v1852, %v739
    %1855 = vrot.lane.b32.xlu0 %v1853, 64
    %v1856 = vpop.permute.xlu0 %1855
    %1858 = vmatpush.msra.mxu0 0.0
    %1859 = vmatpush.msra.mxu0 0.0
    %1860 = vmatpush.msra.mxu0 0.0
    %1861 = vmatpush.msra.mxu0 0.0
    %1862 = vmatpush.msra.mxu0 0.0
    %1863 = vmatpush.msra.mxu0 0.0
    %1864 = vmatpush.msra.mxu0 0.0
    %1865 = vmatpush.msra.mxu0 0.0
    %1866 = vmatpush.msra.mxu0 0.0
    %1867 = vmatpush.msra.mxu0 0.0
    %1868 = vmatpush.msra.mxu0 0.0
    %1869 = vmatpush.msra.mxu0 0.0
    %1870 = vmatpush.msra.mxu0 0.0
    %1871 = vmatpush.msra.mxu0 0.0
    %1872 = vmatpush.msra.mxu0 0.0
    %1873 = vmatpush.msra.mxu0 %v1856
    %1874 = vmatmul.f32.gmra.mxu0 %v751
    %v1875 = vpop.f32.mrf.mxu0
    %v1876 = vadd.f32 %v745, %v1875
    %1877 = vdwg.mxu0
    %v1878 = vsel %vm89, %v1876, 0.0
    %1879 = vadd.xlane.f32.xlu0 %v1878
    %v1880 = vpop.xlane.xlu0 %1879
    %v1881 = vmul.f32 %v1880, %v709
    %v1882 = vsub.f32 %v1876, %v1881
    %v1883 = vmul.f32 %v1882, %v1882
    %v1884 = vsel %vm89, %v1883, 0.0
    %1885 = vadd.xlane.f32.xlu0 %v1884
    %v1886 = vpop.xlane.xlu0 %1885
    %v1887 = vmul.f32 %v1886, %v709
    %v1888 = vadd.f32 %v1887, 1e-05
    %v1889 = vrsqrt.pop %v1888
    %v1890 = vmul.f32 %v1889, %v1888
    %v1891 = vmul.f32 %v1890, %v1889
    %v1892 = vmul.f32 0.5, %v1891
    %v1893 = vsub.f32 1.5, %v1892
    %v1894 = vmul.f32 %v1889, %v1893
    %vm1895 = vweird.f32 %v1888
    %vm1896 = vweird.f32 %v1889
    %vm1897 = vmor %vm1895, %vm1896
    %v1898 = vsel %vm1897, %v1889, %v1894
    %v1899 = vmul.f32 %v1882, %v1898
    %v1900 = vmul.f32 %v1899, %v795
    %1902 = vrot.lane.b32.xlu0 %v1900, 64
    %v1903 = vpop.permute.xlu0 %1902
    %v1905 = vadd.f32 %v1853, %v1903
    %v1906 = vadd.f32 %v1905, %v805
    %1908 = vrot.lane.b32.xlu0 %v1906, 64
    %v1909 = vpop.permute.xlu0 %1908
    %1911 = vmatpush.msra.mxu0 0.0
    %1912 = vmatpush.msra.mxu0 0.0
    %1913 = vmatpush.msra.mxu0 0.0
    %1914 = vmatpush.msra.mxu0 0.0
    %1915 = vmatpush.msra.mxu0 0.0
    %1916 = vmatpush.msra.mxu0 0.0
    %1917 = vmatpush.msra.mxu0 0.0
    %1918 = vmatpush.msra.mxu0 0.0
    %1919 = vmatpush.msra.mxu0 0.0
    %1920 = vmatpush.msra.mxu0 0.0
    %1921 = vmatpush.msra.mxu0 0.0
    %1922 = vmatpush.msra.mxu0 0.0
    %1923 = vmatpush.msra.mxu0 0.0
    %1924 = vmatpush.msra.mxu0 0.0
    %1925 = vmatpush.msra.mxu0 0.0
    %1926 = vmatpush.msra.mxu0 %v1909
    %1927 = vmatmul.f32.gmra.mxu0 %v813
    %v1928 = vpop.f32.mrf.mxu0
    %v1929 = vadd.f32 0.0, %v1928
    %1930 = vdwg.mxu0
    %v1932 = vsel %vm89, %v1929, 0
    %1934 = vmatpush.msra.mxu0 0.0
    %1935 = vmatpush.msra.mxu0 0.0
    %1936 = vmatpush.msra.mxu0 0.0
    %1937 = vmatpush.msra.mxu0 0.0
    %1938 = vmatpush.msra.mxu0 0.0
    %1939 = vmatpush.msra.mxu0 0.0
    %1940 = vmatpush.msra.mxu0 0.0
    %1941 = vmatpush.msra.mxu0 0.0
    %1942 = vmatpush.msra.mxu0 0.0
    %1943 = vmatpush.msra.mxu0 0.0
    %1944 = vmatpush.msra.mxu0 0.0
    %1945 = vmatpush.msra.mxu0 0.0
    %1946 = vmatpush.msra.mxu0 %v53
    %1947 = vmatpush.msra.mxu0 %v52
    %1948 = vmatpush.msra.mxu0 %v51
    %1949 = vmatpush.msra.mxu0 %v50
    %1950 = vmatmul.f32.gmra.mxu0 %v1932
    %v1951 = vpop.f32.mrf.mxu0
    %v1952 = vadd.f32 %v835, %v1951
    %1953 = vdwg.mxu0
    %v1955 = vsel %vm58, %v1952, 0
    %1957 = vmatpush.msra.mxu0 0.0
    %1958 = vmatpush.msra.mxu0 0.0
    %1959 = vmatpush.msra.mxu0 0.0
    %1960 = vmatpush.msra.mxu0 0.0
    %1961 = vmatpush.msra.mxu0 0.0
    %1962 = vmatpush.msra.mxu0 0.0
    %1963 = vmatpush.msra.mxu0 0.0
    %1964 = vmatpush.msra.mxu0 0.0
    %1965 = vmatpush.msra.mxu0 0.0
    %1966 = vmatpush.msra.mxu0 0.0
    %1967 = vmatpush.msra.mxu0 0.0
    %1968 = vmatpush.msra.mxu0 0.0
    %1969 = vmatpush.msra.mxu0 0.0
    %1970 = vmatpush.msra.mxu0 0.0
    %1971 = vmatpush.msra.mxu0 %v45
    %1972 = vmatpush.msra.mxu0 %v44
    %1973 = vmatmul.f32.gmra.mxu0 %v1955
    %v1974 = vpop.f32.mrf.mxu0
    %v1975 = vadd.f32 %v630, %v1974
    %1976 = vdwg.mxu0
    %1977 = vmatpush.msra.mxu0 0.0
    %1978 = vmatpush.msra.mxu0 0.0
    %1979 = vmatpush.msra.mxu0 0.0
    %1980 = vmatpush.msra.mxu0 0.0
    %1981 = vmatpush.msra.mxu0 0.0
    %1982 = vmatpush.msra.mxu0 0.0
    %1983 = vmatpush.msra.mxu0 0.0
    %1984 = vmatpush.msra.mxu0 0.0
    %1985 = vmatpush.msra.mxu0 0.0
    %1986 = vmatpush.msra.mxu0 0.0
    %1987 = vmatpush.msra.mxu0 0.0
    %1988 = vmatpush.msra.mxu0 0.0
    %1989 = vmatpush.msra.mxu0 0.0
    %1990 = vmatpush.msra.mxu0 0.0
    %1991 = vmatpush.msra.mxu0 %v38
    %1992 = vmatpush.msra.mxu0 %v37
    %1993 = vmatmul.f32.gmra.mxu0 %v1955
    %v1994 = vpop.f32.mrf.mxu0
    %v1995 = vadd.f32 %v57, %v1994
    %1996 = vdwg.mxu0
    %1997 = vrot.lane.b32.xlu0 %v1785, 64
    %v1998 = vpop.permute.xlu0 %1997
    %v1999 = vsel %vm89, %v1998, 0
    %2001 = vmatpush.msra.mxu0 0.0
    %2002 = vmatpush.msra.mxu0 0.0
    %2003 = vmatpush.msra.mxu0 0.0
    %2004 = vmatpush.msra.mxu0 0.0
    %2005 = vmatpush.msra.mxu0 0.0
    %2006 = vmatpush.msra.mxu0 0.0
    %2007 = vmatpush.msra.mxu0 0.0
    %2008 = vmatpush.msra.mxu0 0.0
    %2009 = vmatpush.msra.mxu0 0.0
    %2010 = vmatpush.msra.mxu0 0.0
    %2011 = vmatpush.msra.mxu0 0.0
    %2012 = vmatpush.msra.mxu0 0.0
    %2013 = vmatpush.msra.mxu0 %v42
    %2014 = vmatpush.msra.mxu0 %v41
    %2015 = vmatpush.msra.mxu0 %v40
    %2016 = vmatpush.msra.mxu0 %v39
    %2017 = vmatmul.f32.gmra.mxu0 %v1999
    %v2018 = vpop.f32.mrf.mxu0
    %v2019 = vadd.f32 %v88, %v2018
    %2020 = vdwg.mxu0
    %v2021 = vadd.f32 %v1995, %v2019
    %v2022 = vxor.u32 %v2021, 2147483648
    %v2023 = vmul.f32 %v2022, 1.442695
    %v2024 = vpow.pop %v2023
    %v2025 = vadd.f32 %v2024, 1.0
    %v2026 = vrcp.pop %v2025
    %v2027 = vmul.f32 %v2025, %v2026
    %v2028 = vsub.f32 1.0, %v2027
    %v2029 = vmul.f32 %v2026, %v2028
    %v2030 = vadd.f32 %v2026, %v2029
    %vm2031 = vweird.f32 %v2025
    %vm2032 = vweird.f32 %v2026
    %vm2033 = vmor %vm2031, %vm2032
    %v2034 = vsel %vm2033, %v2026, %v2030
    %v2035 = vand.u32 2147483647, %v2025
    %vm2036 = vcmp.eq.f32.partialorder %v2035, 8.507059e+37
    %v2037 = vand.u32 %v2025, 2147483648
    %v2038 = vor.u32 1.1754944e-38, %v2037
    %v2039 = vsel %vm2036, %v2038, %v2034
    %v2040 = vmul.f32 1.0, %v2039
    %2042 = vrot.lane.b32.xlu0 %v2019, 32
    %v2043 = vpop.permute.xlu0 %2042
    %v2045 = vmul.f32 %v2040, %v2043
    %2047 = vrot.lane.b32.xlu0 %v2045, 96
    %v2048 = vpop.permute.xlu0 %2047
    %v2050 = vadd.f32 %v1995, %v2048
    %v2051 = vtanh.pop %v2050
    %v2052 = vsub.f32 1.0, %v2040
    %2054 = vrot.lane.b32.xlu0 %v2051, 64
    %v2055 = vpop.permute.xlu0 %2054
    %v2057 = vmul.f32 %v2052, %v2055
    %v2058 = vmul.f32 %v2040, %v1785
    %v2059 = vadd.f32 %v2057, %v2058
    %v2060 = vrot.slane %v1701, 6
    %2061 = vrot.lane.b32.xlu0 %v2060, 64
    %v2062 = vpop.permute.xlu0 %2061
    %v2065 = vrot.slane %v1975, 4
    %2066 = vrot.lane.b32.xlu0 %v2065, 64
    %v2067 = vpop.permute.xlu0 %2066
    %v2070 = vrot.slane %v2059, 2
    %v2072 = vsel %vm662, %v655, %v2062
    %v2073 = vsel %vm664, %v2072, %v2067
    %v2074 = vsel %vm666, %v2073, %v2070
    %2076 = vrot.lane.b32.xlu0 %v2074, 64
    %v2077 = vpop.permute.xlu0 %2076
    %2079 = vmatpush.msra.mxu0 0.0
    %2080 = vmatpush.msra.mxu0 0.0
    %2081 = vmatpush.msra.mxu0 0.0
    %2082 = vmatpush.msra.mxu0 0.0
    %2083 = vmatpush.msra.mxu0 0.0
    %2084 = vmatpush.msra.mxu0 0.0
    %2085 = vmatpush.msra.mxu0 0.0
    %2086 = vmatpush.msra.mxu0 0.0
    %2087 = vmatpush.msra.mxu0 0.0
    %2088 = vmatpush.msra.mxu0 0.0
    %2089 = vmatpush.msra.mxu0 0.0
    %2090 = vmatpush.msra.mxu0 0.0
    %2091 = vmatpush.msra.mxu0 0.0
    %2092 = vmatpush.msra.mxu0 0.0
    %2093 = vmatpush.msra.mxu0 0.0
    %2094 = vmatpush.msra.mxu0 %v2077
    %2095 = vmatmul.f32.gmra.mxu0 %v678
    %v2096 = vpop.f32.mrf.mxu0
    %v2097 = vadd.f32 %v671, %v2096
    %2098 = vdwg.mxu0
    %v2099 = vsel %vm89, %v2097, 0.0
    %2100 = vadd.xlane.f32.xlu0 %v2099
    %v2101 = vpop.xlane.xlu0 %2100
    %v2102 = vmul.f32 %v2101, %v709
    %v2103 = vsub.f32 %v2097, %v2102
    %v2104 = vmul.f32 %v2103, %v2103
    %v2105 = vsel %vm89, %v2104, 0.0
    %2106 = vadd.xlane.f32.xlu0 %v2105
    %v2107 = vpop.xlane.xlu0 %2106
    %v2108 = vmul.f32 %v2107, %v709
    %v2109 = vadd.f32 %v2108, 1e-05
    %v2110 = vrsqrt.pop %v2109
    %v2111 = vmul.f32 %v2110, %v2109
    %v2112 = vmul.f32 %v2111, %v2110
    %v2113 = vmul.f32 0.5, %v2112
    %v2114 = vsub.f32 1.5, %v2113
    %v2115 = vmul.f32 %v2110, %v2114
    %vm2116 = vweird.f32 %v2109
    %vm2117 = vweird.f32 %v2110
    %vm2118 = vmor %vm2116, %vm2117
    %v2119 = vsel %vm2118, %v2110, %v2115
    %v2120 = vmul.f32 %v2103, %v2119
    %v2121 = vmul.f32 %v2120, %v729
    %2123 = vrot.lane.b32.xlu0 %v2121, 64
    %v2124 = vpop.permute.xlu0 %2123
    %v2126 = vadd.f32 %v2074, %v2124
    %v2127 = vadd.f32 %v2126, %v739
    %2129 = vrot.lane.b32.xlu0 %v2127, 64
    %v2130 = vpop.permute.xlu0 %2129
    %2132 = vmatpush.msra.mxu0 0.0
    %2133 = vmatpush.msra.mxu0 0.0
    %2134 = vmatpush.msra.mxu0 0.0
    %2135 = vmatpush.msra.mxu0 0.0
    %2136 = vmatpush.msra.mxu0 0.0
    %2137 = vmatpush.msra.mxu0 0.0
    %2138 = vmatpush.msra.mxu0 0.0
    %2139 = vmatpush.msra.mxu0 0.0
    %2140 = vmatpush.msra.mxu0 0.0
    %2141 = vmatpush.msra.mxu0 0.0
    %2142 = vmatpush.msra.mxu0 0.0
    %2143 = vmatpush.msra.mxu0 0.0
    %2144 = vmatpush.msra.mxu0 0.0
    %2145 = vmatpush.msra.mxu0 0.0
    %2146 = vmatpush.msra.mxu0 0.0
    %2147 = vmatpush.msra.mxu0 %v2130
    %2148 = vmatmul.f32.gmra.mxu0 %v751
    %v2149 = vpop.f32.mrf.mxu0
    %v2150 = vadd.f32 %v745, %v2149
    %2151 = vdwg.mxu0
    %v2152 = vsel %vm89, %v2150, 0.0
    %2153 = vadd.xlane.f32.xlu0 %v2152
    %v2154 = vpop.xlane.xlu0 %2153
    %v2155 = vmul.f32 %v2154, %v709
    %v2156 = vsub.f32 %v2150, %v2155
    %v2157 = vmul.f32 %v2156, %v2156
    %v2158 = vsel %vm89, %v2157, 0.0
    %2159 = vadd.xlane.f32.xlu0 %v2158
    %v2160 = vpop.xlane.xlu0 %2159
    %v2161 = vmul.f32 %v2160, %v709
    %v2162 = vadd.f32 %v2161, 1e-05
    %v2163 = vrsqrt.pop %v2162
    %v2164 = vmul.f32 %v2163, %v2162
    %v2165 = vmul.f32 %v2164, %v2163
    %v2166 = vmul.f32 0.5, %v2165
    %v2167 = vsub.f32 1.5, %v2166
    %v2168 = vmul.f32 %v2163, %v2167
    %vm2169 = vweird.f32 %v2162
    %vm2170 = vweird.f32 %v2163
    %vm2171 = vmor %vm2169, %vm2170
    %v2172 = vsel %vm2171, %v2163, %v2168
    %v2173 = vmul.f32 %v2156, %v2172
    %v2174 = vmul.f32 %v2173, %v795
    %2176 = vrot.lane.b32.xlu0 %v2174, 64
    %v2177 = vpop.permute.xlu0 %2176
    %v2179 = vadd.f32 %v2127, %v2177
    %v2180 = vadd.f32 %v2179, %v805
    %2182 = vrot.lane.b32.xlu0 %v2180, 64
    %v2183 = vpop.permute.xlu0 %2182
    %2185 = vmatpush.msra.mxu0 0.0
    %2186 = vmatpush.msra.mxu0 0.0
    %2187 = vmatpush.msra.mxu0 0.0
    %2188 = vmatpush.msra.mxu0 0.0
    %2189 = vmatpush.msra.mxu0 0.0
    %2190 = vmatpush.msra.mxu0 0.0
    %2191 = vmatpush.msra.mxu0 0.0
    %2192 = vmatpush.msra.mxu0 0.0
    %2193 = vmatpush.msra.mxu0 0.0
    %2194 = vmatpush.msra.mxu0 0.0
    %2195 = vmatpush.msra.mxu0 0.0
    %2196 = vmatpush.msra.mxu0 0.0
    %2197 = vmatpush.msra.mxu0 0.0
    %2198 = vmatpush.msra.mxu0 0.0
    %2199 = vmatpush.msra.mxu0 0.0
    %2200 = vmatpush.msra.mxu0 %v2183
    %2201 = vmatmul.f32.gmra.mxu0 %v813
    %v2202 = vpop.f32.mrf.mxu0
    %v2203 = vadd.f32 0.0, %v2202
    %2204 = vdwg.mxu0
    %v2206 = vsel %vm89, %v2203, 0
    %2208 = vmatpush.msra.mxu0 0.0
    %2209 = vmatpush.msra.mxu0 0.0
    %2210 = vmatpush.msra.mxu0 0.0
    %2211 = vmatpush.msra.mxu0 0.0
    %2212 = vmatpush.msra.mxu0 0.0
    %2213 = vmatpush.msra.mxu0 0.0
    %2214 = vmatpush.msra.mxu0 0.0
    %2215 = vmatpush.msra.mxu0 0.0
    %2216 = vmatpush.msra.mxu0 0.0
    %2217 = vmatpush.msra.mxu0 0.0
    %2218 = vmatpush.msra.mxu0 0.0
    %2219 = vmatpush.msra.mxu0 0.0
    %2220 = vmatpush.msra.mxu0 %v53
    %2221 = vmatpush.msra.mxu0 %v52
    %2222 = vmatpush.msra.mxu0 %v51
    %2223 = vmatpush.msra.mxu0 %v50
    %2224 = vmatmul.f32.gmra.mxu0 %v2206
    %v2225 = vpop.f32.mrf.mxu0
    %v2226 = vadd.f32 %v835, %v2225
    %2227 = vdwg.mxu0
    %v2229 = vsel %vm58, %v2226, 0
    %2231 = vmatpush.msra.mxu0 0.0
    %2232 = vmatpush.msra.mxu0 0.0
    %2233 = vmatpush.msra.mxu0 0.0
    %2234 = vmatpush.msra.mxu0 0.0
    %2235 = vmatpush.msra.mxu0 0.0
    %2236 = vmatpush.msra.mxu0 0.0
    %2237 = vmatpush.msra.mxu0 0.0
    %2238 = vmatpush.msra.mxu0 0.0
    %2239 = vmatpush.msra.mxu0 0.0
    %2240 = vmatpush.msra.mxu0 0.0
    %2241 = vmatpush.msra.mxu0 0.0
    %2242 = vmatpush.msra.mxu0 0.0
    %2243 = vmatpush.msra.mxu0 0.0
    %2244 = vmatpush.msra.mxu0 0.0
    %2245 = vmatpush.msra.mxu0 %v45
    %2246 = vmatpush.msra.mxu0 %v44
    %2247 = vmatmul.f32.gmra.mxu0 %v2229
    %v2248 = vpop.f32.mrf.mxu0
    %v2249 = vadd.f32 %v630, %v2248
    %2250 = vdwg.mxu0
    %2251 = vmatpush.msra.mxu0 0.0
    %2252 = vmatpush.msra.mxu0 0.0
    %2253 = vmatpush.msra.mxu0 0.0
    %2254 = vmatpush.msra.mxu0 0.0
    %2255 = vmatpush.msra.mxu0 0.0
    %2256 = vmatpush.msra.mxu0 0.0
    %2257 = vmatpush.msra.mxu0 0.0
    %2258 = vmatpush.msra.mxu0 0.0
    %2259 = vmatpush.msra.mxu0 0.0
    %2260 = vmatpush.msra.mxu0 0.0
    %2261 = vmatpush.msra.mxu0 0.0
    %2262 = vmatpush.msra.mxu0 0.0
    %2263 = vmatpush.msra.mxu0 0.0
    %2264 = vmatpush.msra.mxu0 0.0
    %2265 = vmatpush.msra.mxu0 %v38
    %2266 = vmatpush.msra.mxu0 %v37
    %2267 = vmatmul.f32.gmra.mxu0 %v2229
    %v2268 = vpop.f32.mrf.mxu0
    %v2269 = vadd.f32 %v57, %v2268
    %2270 = vdwg.mxu0
    %2271 = vrot.lane.b32.xlu0 %v2059, 64
    %v2272 = vpop.permute.xlu0 %2271
    %v2273 = vsel %vm89, %v2272, 0
    %2275 = vmatpush.msra.mxu0 0.0
    %2276 = vmatpush.msra.mxu0 0.0
    %2277 = vmatpush.msra.mxu0 0.0
    %2278 = vmatpush.msra.mxu0 0.0
    %2279 = vmatpush.msra.mxu0 0.0
    %2280 = vmatpush.msra.mxu0 0.0
    %2281 = vmatpush.msra.mxu0 0.0
    %2282 = vmatpush.msra.mxu0 0.0
    %2283 = vmatpush.msra.mxu0 0.0
    %2284 = vmatpush.msra.mxu0 0.0
    %2285 = vmatpush.msra.mxu0 0.0
    %2286 = vmatpush.msra.mxu0 0.0
    %2287 = vmatpush.msra.mxu0 %v42
    %2288 = vmatpush.msra.mxu0 %v41
    %2289 = vmatpush.msra.mxu0 %v40
    %2290 = vmatpush.msra.mxu0 %v39
    %2291 = vmatmul.f32.gmra.mxu0 %v2273
    %v2292 = vpop.f32.mrf.mxu0
    %v2293 = vadd.f32 %v88, %v2292
    %2294 = vdwg.mxu0
    %v2295 = vadd.f32 %v2269, %v2293
    %v2296 = vxor.u32 %v2295, 2147483648
    %v2297 = vmul.f32 %v2296, 1.442695
    %v2298 = vpow.pop %v2297
    %v2299 = vadd.f32 %v2298, 1.0
    %v2300 = vrcp.pop %v2299
    %v2301 = vmul.f32 %v2299, %v2300
    %v2302 = vsub.f32 1.0, %v2301
    %v2303 = vmul.f32 %v2300, %v2302
    %v2304 = vadd.f32 %v2300, %v2303
    %vm2305 = vweird.f32 %v2299
    %vm2306 = vweird.f32 %v2300
    %vm2307 = vmor %vm2305, %vm2306
    %v2308 = vsel %vm2307, %v2300, %v2304
    %v2309 = vand.u32 2147483647, %v2299
    %vm2310 = vcmp.eq.f32.partialorder %v2309, 8.507059e+37
    %v2311 = vand.u32 %v2299, 2147483648
    %v2312 = vor.u32 1.1754944e-38, %v2311
    %v2313 = vsel %vm2310, %v2312, %v2308
    %v2314 = vmul.f32 1.0, %v2313
    %2316 = vrot.lane.b32.xlu0 %v2293, 32
    %v2317 = vpop.permute.xlu0 %2316
    %v2319 = vmul.f32 %v2314, %v2317
    %2321 = vrot.lane.b32.xlu0 %v2319, 96
    %v2322 = vpop.permute.xlu0 %2321
    %v2324 = vadd.f32 %v2269, %v2322
    %v2325 = vtanh.pop %v2324
    %v2326 = vsub.f32 1.0, %v2314
    %2328 = vrot.lane.b32.xlu0 %v2325, 64
    %v2329 = vpop.permute.xlu0 %2328
    %v2331 = vmul.f32 %v2326, %v2329
    %v2332 = vmul.f32 %v2314, %v2059
    %v2333 = vadd.f32 %v2331, %v2332
    %v2334 = vrot.slane %v1975, 6
    %2335 = vrot.lane.b32.xlu0 %v2334, 64
    %v2336 = vpop.permute.xlu0 %2335
    %v2339 = vrot.slane %v2249, 4
    %2340 = vrot.lane.b32.xlu0 %v2339, 64
    %v2341 = vpop.permute.xlu0 %2340
    %v2344 = vrot.slane %v2333, 2
    %v2346 = vsel %vm662, %v655, %v2336
    %v2347 = vsel %vm664, %v2346, %v2341
    %v2348 = vsel %vm666, %v2347, %v2344
    %2350 = vrot.lane.b32.xlu0 %v2348, 64
    %v2351 = vpop.permute.xlu0 %2350
    %2353 = vmatpush.msra.mxu0 0.0
    %2354 = vmatpush.msra.mxu0 0.0
    %2355 = vmatpush.msra.mxu0 0.0
    %2356 = vmatpush.msra.mxu0 0.0
    %2357 = vmatpush.msra.mxu0 0.0
    %2358 = vmatpush.msra.mxu0 0.0
    %2359 = vmatpush.msra.mxu0 0.0
    %2360 = vmatpush.msra.mxu0 0.0
    %2361 = vmatpush.msra.mxu0 0.0
    %2362 = vmatpush.msra.mxu0 0.0
    %2363 = vmatpush.msra.mxu0 0.0
    %2364 = vmatpush.msra.mxu0 0.0
    %2365 = vmatpush.msra.mxu0 0.0
    %2366 = vmatpush.msra.mxu0 0.0
    %2367 = vmatpush.msra.mxu0 0.0
    %2368 = vmatpush.msra.mxu0 %v2351
    %2369 = vmatmul.f32.gmra.mxu0 %v678
    %v2370 = vpop.f32.mrf.mxu0
    %v2371 = vadd.f32 %v671, %v2370
    %2372 = vdwg.mxu0
    %v2373 = vsel %vm89, %v2371, 0.0
    %2374 = vadd.xlane.f32.xlu0 %v2373
    %v2375 = vpop.xlane.xlu0 %2374
    %v2376 = vmul.f32 %v2375, %v709
    %v2377 = vsub.f32 %v2371, %v2376
    %v2378 = vmul.f32 %v2377, %v2377
    %v2379 = vsel %vm89, %v2378, 0.0
    %2380 = vadd.xlane.f32.xlu0 %v2379
    %v2381 = vpop.xlane.xlu0 %2380
    %v2382 = vmul.f32 %v2381, %v709
    %v2383 = vadd.f32 %v2382, 1e-05
    %v2384 = vrsqrt.pop %v2383
    %v2385 = vmul.f32 %v2384, %v2383
    %v2386 = vmul.f32 %v2385, %v2384
    %v2387 = vmul.f32 0.5, %v2386
    %v2388 = vsub.f32 1.5, %v2387
    %v2389 = vmul.f32 %v2384, %v2388
    %vm2390 = vweird.f32 %v2383
    %vm2391 = vweird.f32 %v2384
    %vm2392 = vmor %vm2390, %vm2391
    %v2393 = vsel %vm2392, %v2384, %v2389
    %v2394 = vmul.f32 %v2377, %v2393
    %v2395 = vmul.f32 %v2394, %v729
    %2397 = vrot.lane.b32.xlu0 %v2395, 64
    %v2398 = vpop.permute.xlu0 %2397
    %v2400 = vadd.f32 %v2348, %v2398
    %v2401 = vadd.f32 %v2400, %v739
    %2403 = vrot.lane.b32.xlu0 %v2401, 64
    %v2404 = vpop.permute.xlu0 %2403
    %2406 = vmatpush.msra.mxu0 0.0
    %2407 = vmatpush.msra.mxu0 0.0
    %2408 = vmatpush.msra.mxu0 0.0
    %2409 = vmatpush.msra.mxu0 0.0
    %2410 = vmatpush.msra.mxu0 0.0
    %2411 = vmatpush.msra.mxu0 0.0
    %2412 = vmatpush.msra.mxu0 0.0
    %2413 = vmatpush.msra.mxu0 0.0
    %2414 = vmatpush.msra.mxu0 0.0
    %2415 = vmatpush.msra.mxu0 0.0
    %2416 = vmatpush.msra.mxu0 0.0
    %2417 = vmatpush.msra.mxu0 0.0
    %2418 = vmatpush.msra.mxu0 0.0
    %2419 = vmatpush.msra.mxu0 0.0
    %2420 = vmatpush.msra.mxu0 0.0
    %2421 = vmatpush.msra.mxu0 %v2404
    %2422 = vmatmul.f32.gmra.mxu0 %v751
    %v2423 = vpop.f32.mrf.mxu0
    %v2424 = vadd.f32 %v745, %v2423
    %2425 = vdwg.mxu0
    %v2426 = vsel %vm89, %v2424, 0.0
    %2427 = vadd.xlane.f32.xlu0 %v2426
    %v2428 = vpop.xlane.xlu0 %2427
    %v2429 = vmul.f32 %v2428, %v709
    %v2430 = vsub.f32 %v2424, %v2429
    %v2431 = vmul.f32 %v2430, %v2430
    %v2432 = vsel %vm89, %v2431, 0.0
    %2433 = vadd.xlane.f32.xlu0 %v2432
    %v2434 = vpop.xlane.xlu0 %2433
    %v2435 = vmul.f32 %v2434, %v709
    %v2436 = vadd.f32 %v2435, 1e-05
    %v2437 = vrsqrt.pop %v2436
    %v2438 = vmul.f32 %v2437, %v2436
    %v2439 = vmul.f32 %v2438, %v2437
    %v2440 = vmul.f32 0.5, %v2439
    %v2441 = vsub.f32 1.5, %v2440
    %v2442 = vmul.f32 %v2437, %v2441
    %vm2443 = vweird.f32 %v2436
    %vm2444 = vweird.f32 %v2437
    %vm2445 = vmor %vm2443, %vm2444
    %v2446 = vsel %vm2445, %v2437, %v2442
    %v2447 = vmul.f32 %v2430, %v2446
    %v2448 = vmul.f32 %v2447, %v795
    %2450 = vrot.lane.b32.xlu0 %v2448, 64
    %v2451 = vpop.permute.xlu0 %2450
    %v2453 = vadd.f32 %v2401, %v2451
    %v2454 = vadd.f32 %v2453, %v805
    %2456 = vrot.lane.b32.xlu0 %v2454, 64
    %v2457 = vpop.permute.xlu0 %2456
    %2459 = vmatpush.msra.mxu0 0.0
    %2460 = vmatpush.msra.mxu0 0.0
    %2461 = vmatpush.msra.mxu0 0.0
    %2462 = vmatpush.msra.mxu0 0.0
    %2463 = vmatpush.msra.mxu0 0.0
    %2464 = vmatpush.msra.mxu0 0.0
    %2465 = vmatpush.msra.mxu0 0.0
    %2466 = vmatpush.msra.mxu0 0.0
    %2467 = vmatpush.msra.mxu0 0.0
    %2468 = vmatpush.msra.mxu0 0.0
    %2469 = vmatpush.msra.mxu0 0.0
    %2470 = vmatpush.msra.mxu0 0.0
    %2471 = vmatpush.msra.mxu0 0.0
    %2472 = vmatpush.msra.mxu0 0.0
    %2473 = vmatpush.msra.mxu0 0.0
    %2474 = vmatpush.msra.mxu0 %v2457
    %2475 = vmatmul.f32.gmra.mxu0 %v813
    %v2476 = vpop.f32.mrf.mxu0
    %v2477 = vadd.f32 0.0, %v2476
    %2478 = vdwg.mxu0
    %v2480 = vsel %vm89, %v2477, 0
    %2482 = vmatpush.msra.mxu0 0.0
    %2483 = vmatpush.msra.mxu0 0.0
    %2484 = vmatpush.msra.mxu0 0.0
    %2485 = vmatpush.msra.mxu0 0.0
    %2486 = vmatpush.msra.mxu0 0.0
    %2487 = vmatpush.msra.mxu0 0.0
    %2488 = vmatpush.msra.mxu0 0.0
    %2489 = vmatpush.msra.mxu0 0.0
    %2490 = vmatpush.msra.mxu0 0.0
    %2491 = vmatpush.msra.mxu0 0.0
    %2492 = vmatpush.msra.mxu0 0.0
    %2493 = vmatpush.msra.mxu0 0.0
    %2494 = vmatpush.msra.mxu0 %v53
    %2495 = vmatpush.msra.mxu0 %v52
    %2496 = vmatpush.msra.mxu0 %v51
    %2497 = vmatpush.msra.mxu0 %v50
    %2498 = vmatmul.f32.gmra.mxu0 %v2480
    %v2499 = vpop.f32.mrf.mxu0
    %v2500 = vadd.f32 %v835, %v2499
    %2501 = vdwg.mxu0
    %v2503 = vsel %vm58, %v2500, 0
    %2505 = vmatpush.msra.mxu0 0.0
    %2506 = vmatpush.msra.mxu0 0.0
    %2507 = vmatpush.msra.mxu0 0.0
    %2508 = vmatpush.msra.mxu0 0.0
    %2509 = vmatpush.msra.mxu0 0.0
    %2510 = vmatpush.msra.mxu0 0.0
    %2511 = vmatpush.msra.mxu0 0.0
    %2512 = vmatpush.msra.mxu0 0.0
    %2513 = vmatpush.msra.mxu0 0.0
    %2514 = vmatpush.msra.mxu0 0.0
    %2515 = vmatpush.msra.mxu0 0.0
    %2516 = vmatpush.msra.mxu0 0.0
    %2517 = vmatpush.msra.mxu0 0.0
    %2518 = vmatpush.msra.mxu0 0.0
    %2519 = vmatpush.msra.mxu0 %v45
    %2520 = vmatpush.msra.mxu0 %v44
    %2521 = vmatmul.f32.gmra.mxu0 %v2503
    %v2522 = vpop.f32.mrf.mxu0
    %v2523 = vadd.f32 %v630, %v2522
    %2524 = vdwg.mxu0
    %2525 = vmatpush.msra.mxu0 0.0
    %2526 = vmatpush.msra.mxu0 0.0
    %2527 = vmatpush.msra.mxu0 0.0
    %2528 = vmatpush.msra.mxu0 0.0
    %2529 = vmatpush.msra.mxu0 0.0
    %2530 = vmatpush.msra.mxu0 0.0
    %2531 = vmatpush.msra.mxu0 0.0
    %2532 = vmatpush.msra.mxu0 0.0
    %2533 = vmatpush.msra.mxu0 0.0
    %2534 = vmatpush.msra.mxu0 0.0
    %2535 = vmatpush.msra.mxu0 0.0
    %2536 = vmatpush.msra.mxu0 0.0
    %2537 = vmatpush.msra.mxu0 0.0
    %2538 = vmatpush.msra.mxu0 0.0
    %2539 = vmatpush.msra.mxu0 %v38
    %2540 = vmatpush.msra.mxu0 %v37
    %2541 = vmatmul.f32.gmra.mxu0 %v2503
    %v2542 = vpop.f32.mrf.mxu0
    %v2543 = vadd.f32 %v57, %v2542
    %2544 = vdwg.mxu0
    %2545 = vrot.lane.b32.xlu0 %v2333, 64
    %v2546 = vpop.permute.xlu0 %2545
    %v2547 = vsel %vm89, %v2546, 0
    %2549 = vmatpush.msra.mxu0 0.0
    %2550 = vmatpush.msra.mxu0 0.0
    %2551 = vmatpush.msra.mxu0 0.0
    %2552 = vmatpush.msra.mxu0 0.0
    %2553 = vmatpush.msra.mxu0 0.0
    %2554 = vmatpush.msra.mxu0 0.0
    %2555 = vmatpush.msra.mxu0 0.0
    %2556 = vmatpush.msra.mxu0 0.0
    %2557 = vmatpush.msra.mxu0 0.0
    %2558 = vmatpush.msra.mxu0 0.0
    %2559 = vmatpush.msra.mxu0 0.0
    %2560 = vmatpush.msra.mxu0 0.0
    %2561 = vmatpush.msra.mxu0 %v42
    %2562 = vmatpush.msra.mxu0 %v41
    %2563 = vmatpush.msra.mxu0 %v40
    %2564 = vmatpush.msra.mxu0 %v39
    %2565 = vmatmul.f32.gmra.mxu0 %v2547
    %v2566 = vpop.f32.mrf.mxu0
    %v2567 = vadd.f32 %v88, %v2566
    %2568 = vdwg.mxu0
    %v2569 = vadd.f32 %v2543, %v2567
    %v2570 = vxor.u32 %v2569, 2147483648
    %v2571 = vmul.f32 %v2570, 1.442695
    %v2572 = vpow.pop %v2571
    %v2573 = vadd.f32 %v2572, 1.0
    %v2574 = vrcp.pop %v2573
    %v2575 = vmul.f32 %v2573, %v2574
    %v2576 = vsub.f32 1.0, %v2575
    %v2577 = vmul.f32 %v2574, %v2576
    %v2578 = vadd.f32 %v2574, %v2577
    %vm2579 = vweird.f32 %v2573
    %vm2580 = vweird.f32 %v2574
    %vm2581 = vmor %vm2579, %vm2580
    %v2582 = vsel %vm2581, %v2574, %v2578
    %v2583 = vand.u32 2147483647, %v2573
    %vm2584 = vcmp.eq.f32.partialorder %v2583, 8.507059e+37
    %v2585 = vand.u32 %v2573, 2147483648
    %v2586 = vor.u32 1.1754944e-38, %v2585
    %v2587 = vsel %vm2584, %v2586, %v2582
    %v2588 = vmul.f32 1.0, %v2587
    %2590 = vrot.lane.b32.xlu0 %v2567, 32
    %v2591 = vpop.permute.xlu0 %2590
    %v2593 = vmul.f32 %v2588, %v2591
    %2595 = vrot.lane.b32.xlu0 %v2593, 96
    %v2596 = vpop.permute.xlu0 %2595
    %v2598 = vadd.f32 %v2543, %v2596
    %v2599 = vtanh.pop %v2598
    %v2600 = vsub.f32 1.0, %v2588
    %2602 = vrot.lane.b32.xlu0 %v2599, 64
    %v2603 = vpop.permute.xlu0 %2602
    %v2605 = vmul.f32 %v2600, %v2603
    %v2606 = vmul.f32 %v2588, %v2333
    %v2607 = vadd.f32 %v2605, %v2606
    %v2608 = vrot.slane %v2249, 6
    %2609 = vrot.lane.b32.xlu0 %v2608, 64
    %v2610 = vpop.permute.xlu0 %2609
    %v2613 = vrot.slane %v2523, 4
    %2614 = vrot.lane.b32.xlu0 %v2613, 64
    %v2615 = vpop.permute.xlu0 %2614
    %v2618 = vrot.slane %v2607, 2
    %v2620 = vsel %vm662, %v655, %v2610
    %v2621 = vsel %vm664, %v2620, %v2615
    %v2622 = vsel %vm666, %v2621, %v2618
    %2624 = vrot.lane.b32.xlu0 %v2622, 64
    %v2625 = vpop.permute.xlu0 %2624
    %2627 = vmatpush.msra.mxu0 0.0
    %2628 = vmatpush.msra.mxu0 0.0
    %2629 = vmatpush.msra.mxu0 0.0
    %2630 = vmatpush.msra.mxu0 0.0
    %2631 = vmatpush.msra.mxu0 0.0
    %2632 = vmatpush.msra.mxu0 0.0
    %2633 = vmatpush.msra.mxu0 0.0
    %2634 = vmatpush.msra.mxu0 0.0
    %2635 = vmatpush.msra.mxu0 0.0
    %2636 = vmatpush.msra.mxu0 0.0
    %2637 = vmatpush.msra.mxu0 0.0
    %2638 = vmatpush.msra.mxu0 0.0
    %2639 = vmatpush.msra.mxu0 0.0
    %2640 = vmatpush.msra.mxu0 0.0
    %2641 = vmatpush.msra.mxu0 0.0
    %2642 = vmatpush.msra.mxu0 %v2625
    %2643 = vmatmul.f32.gmra.mxu0 %v678
    %v2644 = vpop.f32.mrf.mxu0
    %v2645 = vadd.f32 %v671, %v2644
    %2646 = vdwg.mxu0
    %v2647 = vsel %vm89, %v2645, 0.0
    %2648 = vadd.xlane.f32.xlu0 %v2647
    %v2649 = vpop.xlane.xlu0 %2648
    %v2650 = vmul.f32 %v2649, %v709
    %v2651 = vsub.f32 %v2645, %v2650
    %v2652 = vmul.f32 %v2651, %v2651
    %v2653 = vsel %vm89, %v2652, 0.0
    %2654 = vadd.xlane.f32.xlu0 %v2653
    %v2655 = vpop.xlane.xlu0 %2654
    %v2656 = vmul.f32 %v2655, %v709
    %v2657 = vadd.f32 %v2656, 1e-05
    %v2658 = vrsqrt.pop %v2657
    %v2659 = vmul.f32 %v2658, %v2657
    %v2660 = vmul.f32 %v2659, %v2658
    %v2661 = vmul.f32 0.5, %v2660
    %v2662 = vsub.f32 1.5, %v2661
    %v2663 = vmul.f32 %v2658, %v2662
    %vm2664 = vweird.f32 %v2657
    %vm2665 = vweird.f32 %v2658
    %vm2666 = vmor %vm2664, %vm2665
    %v2667 = vsel %vm2666, %v2658, %v2663
    %v2668 = vmul.f32 %v2651, %v2667
    %v2669 = vmul.f32 %v2668, %v729
    %2671 = vrot.lane.b32.xlu0 %v2669, 64
    %v2672 = vpop.permute.xlu0 %2671
    %v2674 = vadd.f32 %v2622, %v2672
    %v2675 = vadd.f32 %v2674, %v739
    %2677 = vrot.lane.b32.xlu0 %v2675, 64
    %v2678 = vpop.permute.xlu0 %2677
    %2680 = vmatpush.msra.mxu0 0.0
    %2681 = vmatpush.msra.mxu0 0.0
    %2682 = vmatpush.msra.mxu0 0.0
    %2683 = vmatpush.msra.mxu0 0.0
    %2684 = vmatpush.msra.mxu0 0.0
    %2685 = vmatpush.msra.mxu0 0.0
    %2686 = vmatpush.msra.mxu0 0.0
    %2687 = vmatpush.msra.mxu0 0.0
    %2688 = vmatpush.msra.mxu0 0.0
    %2689 = vmatpush.msra.mxu0 0.0
    %2690 = vmatpush.msra.mxu0 0.0
    %2691 = vmatpush.msra.mxu0 0.0
    %2692 = vmatpush.msra.mxu0 0.0
    %2693 = vmatpush.msra.mxu0 0.0
    %2694 = vmatpush.msra.mxu0 0.0
    %2695 = vmatpush.msra.mxu0 %v2678
    %2696 = vmatmul.f32.gmra.mxu0 %v751
    %v2697 = vpop.f32.mrf.mxu0
    %v2698 = vadd.f32 %v745, %v2697
    %2699 = vdwg.mxu0
    %v2700 = vsel %vm89, %v2698, 0.0
    %2701 = vadd.xlane.f32.xlu0 %v2700
    %v2702 = vpop.xlane.xlu0 %2701
    %v2703 = vmul.f32 %v2702, %v709
    %v2704 = vsub.f32 %v2698, %v2703
    %v2705 = vmul.f32 %v2704, %v2704
    %v2706 = vsel %vm89, %v2705, 0.0
    %2707 = vadd.xlane.f32.xlu0 %v2706
    %v2708 = vpop.xlane.xlu0 %2707
    %v2709 = vmul.f32 %v2708, %v709
    %v2710 = vadd.f32 %v2709, 1e-05
    %v2711 = vrsqrt.pop %v2710
    %v2712 = vmul.f32 %v2711, %v2710
    %v2713 = vmul.f32 %v2712, %v2711
    %v2714 = vmul.f32 0.5, %v2713
    %v2715 = vsub.f32 1.5, %v2714
    %v2716 = vmul.f32 %v2711, %v2715
    %vm2717 = vweird.f32 %v2710
    %vm2718 = vweird.f32 %v2711
    %vm2719 = vmor %vm2717, %vm2718
    %v2720 = vsel %vm2719, %v2711, %v2716
    %v2721 = vmul.f32 %v2704, %v2720
    %v2722 = vmul.f32 %v2721, %v795
    %2724 = vrot.lane.b32.xlu0 %v2722, 64
    %v2725 = vpop.permute.xlu0 %2724
    %v2727 = vadd.f32 %v2675, %v2725
    %v2728 = vadd.f32 %v2727, %v805
    %2730 = vrot.lane.b32.xlu0 %v2728, 64
    %v2731 = vpop.permute.xlu0 %2730
    %2733 = vmatpush.msra.mxu0 0.0
    %2734 = vmatpush.msra.mxu0 0.0
    %2735 = vmatpush.msra.mxu0 0.0
    %2736 = vmatpush.msra.mxu0 0.0
    %2737 = vmatpush.msra.mxu0 0.0
    %2738 = vmatpush.msra.mxu0 0.0
    %2739 = vmatpush.msra.mxu0 0.0
    %2740 = vmatpush.msra.mxu0 0.0
    %2741 = vmatpush.msra.mxu0 0.0
    %2742 = vmatpush.msra.mxu0 0.0
    %2743 = vmatpush.msra.mxu0 0.0
    %2744 = vmatpush.msra.mxu0 0.0
    %2745 = vmatpush.msra.mxu0 0.0
    %2746 = vmatpush.msra.mxu0 0.0
    %2747 = vmatpush.msra.mxu0 0.0
    %2748 = vmatpush.msra.mxu0 %v2731
    %2749 = vmatmul.f32.gmra.mxu0 %v813
    %v2750 = vpop.f32.mrf.mxu0
    %v2751 = vadd.f32 0.0, %v2750
    %2752 = vdwg.mxu0
    %v2754 = vsel %vm89, %v2751, 0
    %2756 = vmatpush.msra.mxu0 0.0
    %2757 = vmatpush.msra.mxu0 0.0
    %2758 = vmatpush.msra.mxu0 0.0
    %2759 = vmatpush.msra.mxu0 0.0
    %2760 = vmatpush.msra.mxu0 0.0
    %2761 = vmatpush.msra.mxu0 0.0
    %2762 = vmatpush.msra.mxu0 0.0
    %2763 = vmatpush.msra.mxu0 0.0
    %2764 = vmatpush.msra.mxu0 0.0
    %2765 = vmatpush.msra.mxu0 0.0
    %2766 = vmatpush.msra.mxu0 0.0
    %2767 = vmatpush.msra.mxu0 0.0
    %2768 = vmatpush.msra.mxu0 %v53
    %2769 = vmatpush.msra.mxu0 %v52
    %2770 = vmatpush.msra.mxu0 %v51
    %2771 = vmatpush.msra.mxu0 %v50
    %2772 = vmatmul.f32.gmra.mxu0 %v2754
    %v2773 = vpop.f32.mrf.mxu0
    %v2774 = vadd.f32 %v835, %v2773
    %2775 = vdwg.mxu0
    %2776 = vrot.lane.b32.xlu0 %v1130, 16
    %v2777 = vpop.permute.xlu0 %2776
    %2779 = vrot.lane.b32.xlu0 %v1404, 32
    %v2780 = vpop.permute.xlu0 %2779
    %2782 = vrot.lane.b32.xlu0 %v1678, 48
    %v2783 = vpop.permute.xlu0 %2782
    %2785 = vrot.lane.b32.xlu0 %v1952, 64
    %v2786 = vpop.permute.xlu0 %2785
    %2788 = vrot.lane.b32.xlu0 %v2226, 80
    %v2789 = vpop.permute.xlu0 %2788
    %2791 = vrot.lane.b32.xlu0 %v2500, 96
    %v2792 = vpop.permute.xlu0 %2791
    %2795 = vrot.lane.b32.xlu0 %v2774, 112
    %v2796 = vpop.permute.xlu0 %2795
    %v2798 = vsel %vm58, %v857, %v2777
    %v2799 = vsel %vm89, %v2798, %v2780
    %vm2800 = vcmask 392192
    %v2801 = vsel %vm2800, %v2799, %v2783
    %vm2802 = vcmask 523264
    %v2803 = vsel %vm2802, %v2801, %v2786
    %vm2804 = vcmask 654336
    %v2805 = vsel %vm2804, %v2803, %v2789
    %vm2806 = vcmask 785408
    %v2807 = vsel %vm2806, %v2805, %v2792
    %vm2808 = vcmask 916480
    %v2809 = vsel %vm2808, %v2807, %v2796
    %2810 = vst [vmem:[#allocation5] sm:$0x3] %v2809
    // Predicated region
    $region26: #{tpu_custom_call.1} parent=1 // pred_check
      _
    $region27: #{tpu_custom_call.1} parent=1 // pred_check_branch
      %2812 = sbr.rel (0) target = $region29
    $region28: #{tpu_custom_call.1} parent=1 // pred_region
      %2814 = vsyncadd [#allocation4], 0
      %s2816 = sshll.u32 [#allocation5], 4
      %s2817 = int_to_ptr.vmem [resolvable:$true] %s2816
      %s2818 = sshll.u32 %s5, 4
      %s2819 = int_to_ptr.hbm [resolvable:$true] %s2818
      %2821 = dma.vmem_to_hbm [thread:$0]  %s2817, 32, %s2819, [#allocation4]
    $region29: #{tpu_custom_call.1} parent=1 // pred_fallthru
      _
    // Predicated region
    $region30: #{tpu_custom_call.1} parent=1 // pred_check
      _
    $region31: #{tpu_custom_call.1} parent=1 // pred_check_branch
      %2823 = sbr.rel (0) target = $region33
    $region32: #{tpu_custom_call.1} parent=1 // pred_region
      %2825 = dma.done [#allocation4], 32
    $region33: #{tpu_custom_call.1} parent=1 // pred_fallthru
      _
    %2826 = vsyncpa [#allocation3], 1
    %2827 = vsyncpa [#allocation4], 1

</llo_original>
